<compile_context>
chip_gen: v7x
topology: tpu7x:2x2x1
jax: 0.10.0
libtpu: 0.0.40
codegen_flags: <defaults>
</compile_context>

<pallas_src>
import functools

import jax
import jax.numpy as jnp
from jax.experimental import pallas as pl
from jax.experimental.pallas import tpu as pltpu

# ----------------------------- configuration --------------------------------
B = 2            # number of windows (batch)
L = 8            # tokens per window
D_MODEL = 32     # d_model
NHEAD = 4        # num heads
HEAD_DIM = D_MODEL // NHEAD
DIM_FF = 64      # dim_feedforward (small for the demo; module default is 512)
LN_EPS = 1e-5
SCALE = HEAD_DIM ** (-0.5)

# vec_c row indices (packed width-C parameter vectors)
_PROJ_B, _LN1_G, _LN1_B, _LIN2_B, _LN2_G, _LN2_B = range(6)


def _layer_norm(t, g, b):
    mu = jnp.mean(t, axis=-1, keepdims=True)
    var = jnp.mean(jnp.square(t - mu), axis=-1, keepdims=True)
    return (t - mu) * jax.lax.rsqrt(var + LN_EPS) * g + b


# ------------------------------- Pallas kernel ------------------------------
def encoder_layer_kernel(
    x_ref, pos_ref,
    qkv_w_ref,        # (3, H, hd, C)   q-scale pre-folded
    qkv_b_ref,        # (3, H, 1, hd)   q-scale pre-folded
    proj_w_ref,       # (H, hd, C)
    lin1_w_ref,       # (C, FF)
    lin1_b_ref,       # (1, FF)
    lin2_w_ref,       # (FF, C)
    vec_c_ref,        # (6, 1, C): proj_b, ln1_g, ln1_b, lin2_b, ln2_g, ln2_b
    out_ref,
    *, nhead, head_dim, windows, win_len,
):
    f32 = jnp.float32
    rows = windows * win_len

    # Packed width-C parameter vectors: load once per grid step.
    vec_c = vec_c_ref[...].astype(f32)                                 # (6, 1, C)

    # with_pos_embed: the pos-added tensor feeds attention AND the residual.
    x = (x_ref[...] + pos_ref[...]).astype(f32)                        # (rows, C)

    # ---- WindowAttention ----------------------------------------------------
    # Per-head matmuls with pre-split weights (leading-dim head indexing only),
    # k-transpose folded into dot_general, per-head projection accumulated
    # through proj_w[h] so heads never need a lane-dim concat.
    attn_acc = None
    for h in range(nhead):                                             # static unroll
        q = jax.lax.dot_general(x, qkv_w_ref[0, h], (((1,), (1,)), ((), ())),
                                preferred_element_type=f32) + qkv_b_ref[0, h]
        k = jax.lax.dot_general(x, qkv_w_ref[1, h], (((1,), (1,)), ((), ())),
                                preferred_element_type=f32) + qkv_b_ref[1, h]
        v = jax.lax.dot_general(x, qkv_w_ref[2, h], (((1,), (1,)), ((), ())),
                                preferred_element_type=f32) + qkv_b_ref[2, h]

        # Attention is block-diagonal per window within the slab.
        q3 = q.reshape(windows, win_len, head_dim)
        k3 = k.reshape(windows, win_len, head_dim)
        v3 = v.reshape(windows, win_len, head_dim)

        s = jax.lax.dot_general(q3, k3, (((2,), (2,)), ((0,), (0,))),
                                preferred_element_type=f32)            # (W, L, L)
        s = s - jnp.max(s, axis=-1, keepdims=True)
        p = jnp.exp(s)
        p = p * pl.reciprocal(jnp.sum(p, axis=-1, keepdims=True), approx=True)
        o = jax.lax.dot_general(p, v3, (((2,), (1,)), ((0,), (0,))),
                                preferred_element_type=f32)            # (W, L, hd)

        head_proj = jnp.dot(o.reshape(rows, head_dim), proj_w_ref[h],
                            preferred_element_type=f32)                # (rows, C)
        attn_acc = head_proj if attn_acc is None else attn_acc + head_proj

    # residual + proj bias, LayerNorm1
    src = _layer_norm(x + attn_acc + vec_c[_PROJ_B],
                      vec_c[_LN1_G], vec_c[_LN1_B])

    # ---- FFN: linear1 -> relu -> linear2 -------------------------------------
    h1 = jnp.dot(src, lin1_w_ref[...],
                 preferred_element_type=f32) + lin1_b_ref[...]         # (rows, FF)
    h1 = jnp.maximum(h1, 0.0)
    src2 = jnp.dot(h1, lin2_w_ref[...], preferred_element_type=f32)    # (rows, C)

    # residual + lin2 bias, LayerNorm2
    src = _layer_norm(src + src2 + vec_c[_LIN2_B],
                      vec_c[_LN2_G], vec_c[_LN2_B])

    out_ref[...] = src.astype(out_ref.dtype)


# ------------------------------ host wrapper ---------------------------------
def pack_params(tp):
    """Convert torch-layout params to the kernel layout."""
    # torch qkv.weight is (3C, C) with out-dim layout (num=3, nhead, head_dim).
    qkv_w = tp["qkv_w"].reshape(3, NHEAD, HEAD_DIM, D_MODEL)
    qkv_b = tp["qkv_b"].reshape(3, NHEAD, 1, HEAD_DIM)
    # fold the softmax scale into the query weight & bias (removes in-kernel mul)
    qkv_w = qkv_w.at[0].multiply(SCALE)
    qkv_b = qkv_b.at[0].multiply(SCALE)
    # torch proj.weight is (C_out, C_in); per-head, lane-dense (H, hd, C_out)
    proj_w = tp["proj_w"].reshape(D_MODEL, NHEAD, HEAD_DIM).transpose(1, 2, 0)
    vec_c = jnp.stack([tp["proj_b"], tp["ln1_g"], tp["ln1_b"],
                       tp["lin2_b"], tp["ln2_g"], tp["ln2_b"]])[:, None, :]  # (6,1,C)
    return {
        "qkv_w": qkv_w,
        "qkv_b": qkv_b,
        "proj_w": proj_w,
        "lin1_w": tp["lin1_w"].T,                 # (C, FF)
        "lin1_b": tp["lin1_b"].reshape(1, DIM_FF),
        "lin2_w": tp["lin2_w"].T,                 # (FF, C)
        "vec_c": vec_c,
    }


def encoder_layer(src, src_pos, kp, *, windows_per_block=None):
    """src, src_pos: (B, L, C) float32.  kp: pack_params(...) output."""
    Bn, Ln, Cn = src.shape
    if windows_per_block is None:
        # Keep >=2 grid steps when possible so both v7x TensorCores get work;
        # on v5e/v6e (1 TC) a single step (windows_per_block=Bn) is slightly better.
        windows_per_block = Bn // 2 if (Bn >= 2 and Bn % 2 == 0) else 1
    assert Bn % windows_per_block == 0
    n_blocks = Bn // windows_per_block
    rows = windows_per_block * Ln

    # Flatten windows into one row slab so each grid step sees (rows, C).
    x2 = src.reshape(Bn * Ln, Cn)
    p2 = src_pos.reshape(Bn * Ln, Cn)

    def row_spec():
        return pl.BlockSpec((rows, Cn), lambda i: (i, 0))

    def full_spec(a):
        nd = a.ndim
        return pl.BlockSpec(a.shape, lambda i, _nd=nd: (0,) * _nd)

    kernel = functools.partial(
        encoder_layer_kernel,
        nhead=NHEAD, head_dim=HEAD_DIM,
        windows=windows_per_block, win_len=Ln)

    out2 = pl.pallas_call(
        kernel,
        out_shape=jax.ShapeDtypeStruct((Bn * Ln, Cn), src.dtype),
        grid=(n_blocks,),
        in_specs=[
            row_spec(),                # x
            row_spec(),                # pos
            full_spec(kp["qkv_w"]),
            full_spec(kp["qkv_b"]),
            full_spec(kp["proj_w"]),
            full_spec(kp["lin1_w"]),
            full_spec(kp["lin1_b"]),
            full_spec(kp["lin2_w"]),
            full_spec(kp["vec_c"]),
        ],
        out_specs=row_spec(),
        compiler_params=pltpu.CompilerParams(
            dimension_semantics=("parallel",)),
    )(x2, p2, kp["qkv_w"], kp["qkv_b"], kp["proj_w"],
      kp["lin1_w"], kp["lin1_b"], kp["lin2_w"], kp["vec_c"])

    return out2.reshape(Bn, Ln, Cn)


# -------------------------- pure-JAX reference (torch layout) ----------------
def encoder_layer_ref(src, src_pos, tp):
    x = src + src_pos                                                  # (B, L, C)
    Bn, Ln, Cn = x.shape

    qkv = x @ tp["qkv_w"].T + tp["qkv_b"]                              # (B, L, 3C)
    qkv = qkv.reshape(Bn, Ln, 3, NHEAD, HEAD_DIM).transpose(2, 0, 3, 1, 4)
    q, k, v = qkv[0] * SCALE, qkv[1], qkv[2]
    attn = jax.nn.softmax(jnp.einsum("bhqd,bhkd->bhqk", q, k), axis=-1)
    o = jnp.einsum("bhqk,bhkd->bhqd", attn, v)
    o = o.transpose(0, 2, 1, 3).reshape(Bn, Ln, Cn)
    src2 = o @ tp["proj_w"].T + tp["proj_b"]

    def ln(t, g, b):
        mu = jnp.mean(t, -1, keepdims=True)
        var = jnp.mean((t - mu) ** 2, -1, keepdims=True)
        return (t - mu) * jax.lax.rsqrt(var + LN_EPS) * g + b

    s = ln(x + src2, tp["ln1_g"], tp["ln1_b"])
    h1 = jnp.maximum(s @ tp["lin1_w"].T + tp["lin1_b"], 0.0)
    s2 = h1 @ tp["lin2_w"].T + tp["lin2_b"]
    return ln(s + s2, tp["ln2_g"], tp["ln2_b"])


# ----------------------------------- main ------------------------------------
def make_torch_params(key):
    """Parameters in the PyTorch module's native layouts (Linear: (out, in))."""
    ks = jax.random.split(key, 8)
    s = 0.05
    return {
        "qkv_w":  s * jax.random.normal(ks[0], (3 * D_MODEL, D_MODEL), jnp.float32),
        "qkv_b":  s * jax.random.normal(ks[1], (3 * D_MODEL,), jnp.float32),
        "proj_w": s * jax.random.normal(ks[2], (D_MODEL, D_MODEL), jnp.float32),
        "proj_b": s * jax.random.normal(ks[3], (D_MODEL,), jnp.float32),
        "lin1_w": s * jax.random.normal(ks[4], (DIM_FF, D_MODEL), jnp.float32),
        "lin1_b": s * jax.random.normal(ks[5], (DIM_FF,), jnp.float32),
        "lin2_w": s * jax.random.normal(ks[6], (D_MODEL, DIM_FF), jnp.float32),
        "lin2_b": s * jax.random.normal(ks[7], (D_MODEL,), jnp.float32),
        "ln1_g":  jnp.ones((D_MODEL,), jnp.float32),
        "ln1_b":  jnp.zeros((D_MODEL,), jnp.float32),
        "ln2_g":  jnp.ones((D_MODEL,), jnp.float32),
        "ln2_b":  jnp.zeros((D_MODEL,), jnp.float32),
    }


if __name__ == "__main__":
    key = jax.random.PRNGKey(0)
    k_src, k_pos, k_par = jax.random.split(key, 3)

    src = jax.random.normal(k_src, (B, L, D_MODEL), jnp.float32)
    src_pos = 0.1 * jax.random.normal(k_pos, (B, L, D_MODEL), jnp.float32)

    torch_params = make_torch_params(k_par)
    kernel_params = pack_params(torch_params)

    # jit the wrapper so the flatten/unflatten reshapes fuse around pallas_call.
    encoder_fn = jax.jit(encoder_layer)
    out = encoder_fn(src, src_pos, kernel_params)
    out = jax.block_until_ready(out)

    ref = encoder_layer_ref(src, src_pos, torch_params)
    assert out.shape == (B, L, D_MODEL)
    # tolerance slightly relaxed vs 1e-4 to accommodate the EUP approximate
    # reciprocal in the softmax denominator (pl.reciprocal(..., approx=True)).
    assert jnp.allclose(out, ref, atol=1e-3, rtol=1e-3), "mismatch vs reference"

    print("KERNEL_OK")
</pallas_src>

<mosaic_0001>
module attributes {stable_mosaic.version = 11 : i64} {
  func.func @encoder_layer_kernel(%arg0: i32, %arg1: memref<8x32xf32, #tpu.memory_space<vmem>>, %arg2: memref<8x32xf32, #tpu.memory_space<vmem>>, %arg3: memref<3x4x8x32xf32, #tpu.memory_space<vmem>>, %arg4: memref<3x4x1x8xf32, #tpu.memory_space<vmem>>, %arg5: memref<4x8x32xf32, #tpu.memory_space<vmem>>, %arg6: memref<32x64xf32, #tpu.memory_space<vmem>>, %arg7: memref<1x64xf32, #tpu.memory_space<vmem>>, %arg8: memref<64x32xf32, #tpu.memory_space<vmem>>, %arg9: memref<6x1x32xf32, #tpu.memory_space<vmem>>, %arg10: memref<8x32xf32, #tpu.memory_space<vmem>>) attributes {dimension_semantics = [#tpu.dimension_semantics<parallel>], iteration_bounds = array<i64: 2>, scalar_prefetch = 0 : i64, scratch_operands = 0 : i64, tpu.core_type = #tpu.core_type<tc>, window_params = [{transform_indices = @transform_0, window_bounds = array<i64: 8, 32>}, {transform_indices = @transform_1, window_bounds = array<i64: 8, 32>}, {pipeline_mode = #tpu.pipeline_mode<synchronous>, transform_indices = @transform_2, window_bounds = array<i64: 3, 4, 8, 32>}, {pipeline_mode = #tpu.pipeline_mode<synchronous>, transform_indices = @transform_3, window_bounds = array<i64: 3, 4, 1, 8>}, {pipeline_mode = #tpu.pipeline_mode<synchronous>, transform_indices = @transform_4, window_bounds = array<i64: 4, 8, 32>}, {pipeline_mode = #tpu.pipeline_mode<synchronous>, transform_indices = @transform_5, window_bounds = array<i64: 32, 64>}, {pipeline_mode = #tpu.pipeline_mode<synchronous>, transform_indices = @transform_6, window_bounds = array<i64: 1, 64>}, {pipeline_mode = #tpu.pipeline_mode<synchronous>, transform_indices = @transform_7, window_bounds = array<i64: 64, 32>}, {pipeline_mode = #tpu.pipeline_mode<synchronous>, transform_indices = @transform_8, window_bounds = array<i64: 6, 1, 32>}, {transform_indices = @transform_9, window_bounds = array<i64: 8, 32>}]} {
    %c0 = arith.constant 0 : index
    %c0_0 = arith.constant 0 : index
    %c0_1 = arith.constant 0 : index
    %0 = vector.load %arg9[%c0, %c0_0, %c0_1] : memref<6x1x32xf32, #tpu.memory_space<vmem>>, vector<6x1x32xf32>
    %c0_2 = arith.constant 0 : index
    %c0_3 = arith.constant 0 : index
    %1 = vector.load %arg1[%c0_2, %c0_3] : memref<8x32xf32, #tpu.memory_space<vmem>>, vector<8x32xf32>
    %c0_4 = arith.constant 0 : index
    %c0_5 = arith.constant 0 : index
    %2 = vector.load %arg2[%c0_4, %c0_5] : memref<8x32xf32, #tpu.memory_space<vmem>>, vector<8x32xf32>
    %3 = arith.addf %1, %2 : vector<8x32xf32>
    %c0_6 = arith.constant 0 : index
    %c0_7 = arith.constant 0 : index
    %c0_8 = arith.constant 0 : index
    %c0_9 = arith.constant 0 : index
    %4 = vector.load %arg3[%c0_6, %c0_7, %c0_8, %c0_9] : memref<3x4x8x32xf32, #tpu.memory_space<vmem>>, vector<1x1x8x32xf32>
    %5 = vector.shape_cast %4 : vector<1x1x8x32xf32> to vector<8x32xf32>
    %cst = arith.constant dense<0.000000e+00> : vector<8x8xf32>
    %6 = tpu.matmul %3, %5, %cst {dimension_numbers = #tpu.dot_dimension_numbers<[1], [1], [0], [0], [0, 0, 1, 0], [], []>} : vector<8x32xf32>, vector<8x32xf32>, vector<8x8xf32> -> vector<8x8xf32>
    %c0_10 = arith.constant 0 : index
    %c0_11 = arith.constant 0 : index
    %c0_12 = arith.constant 0 : index
    %c0_13 = arith.constant 0 : index
    %7 = vector.load %arg4[%c0_10, %c0_11, %c0_12, %c0_13] : memref<3x4x1x8xf32, #tpu.memory_space<vmem>>, vector<1x1x1x8xf32>
    %8 = vector.shape_cast %7 : vector<1x1x1x8xf32> to vector<1x8xf32>
    %9 = vector.broadcast %8 : vector<1x8xf32> to vector<8x8xf32>
    %10 = arith.addf %6, %9 : vector<8x8xf32>
    %c1 = arith.constant 1 : index
    %c0_14 = arith.constant 0 : index
    %c0_15 = arith.constant 0 : index
    %c0_16 = arith.constant 0 : index
    %11 = vector.load %arg3[%c1, %c0_14, %c0_15, %c0_16] : memref<3x4x8x32xf32, #tpu.memory_space<vmem>>, vector<1x1x8x32xf32>
    %12 = vector.shape_cast %11 : vector<1x1x8x32xf32> to vector<8x32xf32>
    %cst_17 = arith.constant dense<0.000000e+00> : vector<8x8xf32>
    %13 = tpu.matmul %3, %12, %cst_17 {dimension_numbers = #tpu.dot_dimension_numbers<[1], [1], [0], [0], [0, 0, 1, 0], [], []>} : vector<8x32xf32>, vector<8x32xf32>, vector<8x8xf32> -> vector<8x8xf32>
    %c1_18 = arith.constant 1 : index
    %c0_19 = arith.constant 0 : index
    %c0_20 = arith.constant 0 : index
    %c0_21 = arith.constant 0 : index
    %14 = vector.load %arg4[%c1_18, %c0_19, %c0_20, %c0_21] : memref<3x4x1x8xf32, #tpu.memory_space<vmem>>, vector<1x1x1x8xf32>
    %15 = vector.shape_cast %14 : vector<1x1x1x8xf32> to vector<1x8xf32>
    %16 = vector.broadcast %15 : vector<1x8xf32> to vector<8x8xf32>
    %17 = arith.addf %13, %16 : vector<8x8xf32>
    %c2 = arith.constant 2 : index
    %c0_22 = arith.constant 0 : index
    %c0_23 = arith.constant 0 : index
    %c0_24 = arith.constant 0 : index
    %18 = vector.load %arg3[%c2, %c0_22, %c0_23, %c0_24] : memref<3x4x8x32xf32, #tpu.memory_space<vmem>>, vector<1x1x8x32xf32>
    %19 = vector.shape_cast %18 : vector<1x1x8x32xf32> to vector<8x32xf32>
    %cst_25 = arith.constant dense<0.000000e+00> : vector<8x8xf32>
    %20 = tpu.matmul %3, %19, %cst_25 {dimension_numbers = #tpu.dot_dimension_numbers<[1], [1], [0], [0], [0, 0, 1, 0], [], []>} : vector<8x32xf32>, vector<8x32xf32>, vector<8x8xf32> -> vector<8x8xf32>
    %c2_26 = arith.constant 2 : index
    %c0_27 = arith.constant 0 : index
    %c0_28 = arith.constant 0 : index
    %c0_29 = arith.constant 0 : index
    %21 = vector.load %arg4[%c2_26, %c0_27, %c0_28, %c0_29] : memref<3x4x1x8xf32, #tpu.memory_space<vmem>>, vector<1x1x1x8xf32>
    %22 = vector.shape_cast %21 : vector<1x1x1x8xf32> to vector<1x8xf32>
    %23 = vector.broadcast %22 : vector<1x8xf32> to vector<8x8xf32>
    %24 = arith.addf %20, %23 : vector<8x8xf32>
    %25 = vector.shape_cast %10 : vector<8x8xf32> to vector<1x8x8xf32>
    %26 = vector.shape_cast %17 : vector<8x8xf32> to vector<1x8x8xf32>
    %27 = vector.shape_cast %24 : vector<8x8xf32> to vector<1x8x8xf32>
    %cst_30 = arith.constant dense<0.000000e+00> : vector<1x8x8xf32>
    %28 = tpu.matmul %25, %26, %cst_30 {dimension_numbers = #tpu.dot_dimension_numbers<[2], [2], [1], [1], [0, 0, 0, 1, 1, 1], [0], [0]>} : vector<1x8x8xf32>, vector<1x8x8xf32>, vector<1x8x8xf32> -> vector<1x8x8xf32>
    %cst_31 = arith.constant dense<0xFF800000> : vector<1x8xf32>
    %29 = vector.multi_reduction <maximumf>, %28, %cst_31 [2] : vector<1x8x8xf32> to vector<1x8xf32>
    %30 = vector.shape_cast %29 : vector<1x8xf32> to vector<1x8x1xf32>
    %31 = vector.broadcast %30 : vector<1x8x1xf32> to vector<1x8x8xf32>
    %32 = arith.subf %28, %31 : vector<1x8x8xf32>
    %33 = math.exp %32 : vector<1x8x8xf32>
    %cst_32 = arith.constant dense<0.000000e+00> : vector<1x8xf32>
    %34 = vector.multi_reduction <add>, %33, %cst_32 [2] : vector<1x8x8xf32> to vector<1x8xf32>
    %35 = vector.shape_cast %34 : vector<1x8xf32> to vector<1x8x1xf32>
    %36 = tpu.reciprocal %35 {approx = true} : vector<1x8x1xf32> -> vector<1x8x1xf32>
    %37 = vector.broadcast %36 : vector<1x8x1xf32> to vector<1x8x8xf32>
    %38 = arith.mulf %33, %37 : vector<1x8x8xf32>
    %cst_33 = arith.constant dense<0.000000e+00> : vector<1x8x8xf32>
    %39 = tpu.matmul %38, %27, %cst_33 {dimension_numbers = #tpu.dot_dimension_numbers<[2], [1], [1], [2], [0, 0, 0, 1, 1, 2], [0], [0]>} : vector<1x8x8xf32>, vector<1x8x8xf32>, vector<1x8x8xf32> -> vector<1x8x8xf32>
    %40 = vector.shape_cast %39 : vector<1x8x8xf32> to vector<8x8xf32>
    %c0_34 = arith.constant 0 : index
    %c0_35 = arith.constant 0 : index
    %c0_36 = arith.constant 0 : index
    %41 = vector.load %arg5[%c0_34, %c0_35, %c0_36] : memref<4x8x32xf32, #tpu.memory_space<vmem>>, vector<1x8x32xf32>
    %42 = vector.shape_cast %41 : vector<1x8x32xf32> to vector<8x32xf32>
    %cst_37 = arith.constant dense<0.000000e+00> : vector<8x32xf32>
    %43 = tpu.matmul %40, %42, %cst_37 {dimension_numbers = #tpu.dot_dimension_numbers<[1], [0], [0], [1], [0, 0, 1, 1], [], []>} : vector<8x8xf32>, vector<8x32xf32>, vector<8x32xf32> -> vector<8x32xf32>
    %c0_38 = arith.constant 0 : index
    %c1_39 = arith.constant 1 : index
    %c0_40 = arith.constant 0 : index
    %c0_41 = arith.constant 0 : index
    %44 = vector.load %arg3[%c0_38, %c1_39, %c0_40, %c0_41] : memref<3x4x8x32xf32, #tpu.memory_space<vmem>>, vector<1x1x8x32xf32>
    %45 = vector.shape_cast %44 : vector<1x1x8x32xf32> to vector<8x32xf32>
    %cst_42 = arith.constant dense<0.000000e+00> : vector<8x8xf32>
    %46 = tpu.matmul %3, %45, %cst_42 {dimension_numbers = #tpu.dot_dimension_numbers<[1], [1], [0], [0], [0, 0, 1, 0], [], []>} : vector<8x32xf32>, vector<8x32xf32>, vector<8x8xf32> -> vector<8x8xf32>
    %c0_43 = arith.constant 0 : index
    %c1_44 = arith.constant 1 : index
    %c0_45 = arith.constant 0 : index
    %c0_46 = arith.constant 0 : index
    %47 = vector.load %arg4[%c0_43, %c1_44, %c0_45, %c0_46] : memref<3x4x1x8xf32, #tpu.memory_space<vmem>>, vector<1x1x1x8xf32>
    %48 = vector.shape_cast %47 : vector<1x1x1x8xf32> to vector<1x8xf32>
    %49 = vector.broadcast %48 : vector<1x8xf32> to vector<8x8xf32>
    %50 = arith.addf %46, %49 : vector<8x8xf32>
    %c1_47 = arith.constant 1 : index
    %c1_48 = arith.constant 1 : index
    %c0_49 = arith.constant 0 : index
    %c0_50 = arith.constant 0 : index
    %51 = vector.load %arg3[%c1_47, %c1_48, %c0_49, %c0_50] : memref<3x4x8x32xf32, #tpu.memory_space<vmem>>, vector<1x1x8x32xf32>
    %52 = vector.shape_cast %51 : vector<1x1x8x32xf32> to vector<8x32xf32>
    %cst_51 = arith.constant dense<0.000000e+00> : vector<8x8xf32>
    %53 = tpu.matmul %3, %52, %cst_51 {dimension_numbers = #tpu.dot_dimension_numbers<[1], [1], [0], [0], [0, 0, 1, 0], [], []>} : vector<8x32xf32>, vector<8x32xf32>, vector<8x8xf32> -> vector<8x8xf32>
    %c1_52 = arith.constant 1 : index
    %c1_53 = arith.constant 1 : index
    %c0_54 = arith.constant 0 : index
    %c0_55 = arith.constant 0 : index
    %54 = vector.load %arg4[%c1_52, %c1_53, %c0_54, %c0_55] : memref<3x4x1x8xf32, #tpu.memory_space<vmem>>, vector<1x1x1x8xf32>
    %55 = vector.shape_cast %54 : vector<1x1x1x8xf32> to vector<1x8xf32>
    %56 = vector.broadcast %55 : vector<1x8xf32> to vector<8x8xf32>
    %57 = arith.addf %53, %56 : vector<8x8xf32>
    %c2_56 = arith.constant 2 : index
    %c1_57 = arith.constant 1 : index
    %c0_58 = arith.constant 0 : index
    %c0_59 = arith.constant 0 : index
    %58 = vector.load %arg3[%c2_56, %c1_57, %c0_58, %c0_59] : memref<3x4x8x32xf32, #tpu.memory_space<vmem>>, vector<1x1x8x32xf32>
    %59 = vector.shape_cast %58 : vector<1x1x8x32xf32> to vector<8x32xf32>
    %cst_60 = arith.constant dense<0.000000e+00> : vector<8x8xf32>
    %60 = tpu.matmul %3, %59, %cst_60 {dimension_numbers = #tpu.dot_dimension_numbers<[1], [1], [0], [0], [0, 0, 1, 0], [], []>} : vector<8x32xf32>, vector<8x32xf32>, vector<8x8xf32> -> vector<8x8xf32>
    %c2_61 = arith.constant 2 : index
    %c1_62 = arith.constant 1 : index
    %c0_63 = arith.constant 0 : index
    %c0_64 = arith.constant 0 : index
    %61 = vector.load %arg4[%c2_61, %c1_62, %c0_63, %c0_64] : memref<3x4x1x8xf32, #tpu.memory_space<vmem>>, vector<1x1x1x8xf32>
    %62 = vector.shape_cast %61 : vector<1x1x1x8xf32> to vector<1x8xf32>
    %63 = vector.broadcast %62 : vector<1x8xf32> to vector<8x8xf32>
    %64 = arith.addf %60, %63 : vector<8x8xf32>
    %65 = vector.shape_cast %50 : vector<8x8xf32> to vector<1x8x8xf32>
    %66 = vector.shape_cast %57 : vector<8x8xf32> to vector<1x8x8xf32>
    %67 = vector.shape_cast %64 : vector<8x8xf32> to vector<1x8x8xf32>
    %cst_65 = arith.constant dense<0.000000e+00> : vector<1x8x8xf32>
    %68 = tpu.matmul %65, %66, %cst_65 {dimension_numbers = #tpu.dot_dimension_numbers<[2], [2], [1], [1], [0, 0, 0, 1, 1, 1], [0], [0]>} : vector<1x8x8xf32>, vector<1x8x8xf32>, vector<1x8x8xf32> -> vector<1x8x8xf32>
    %cst_66 = arith.constant dense<0xFF800000> : vector<1x8xf32>
    %69 = vector.multi_reduction <maximumf>, %68, %cst_66 [2] : vector<1x8x8xf32> to vector<1x8xf32>
    %70 = vector.shape_cast %69 : vector<1x8xf32> to vector<1x8x1xf32>
    %71 = vector.broadcast %70 : vector<1x8x1xf32> to vector<1x8x8xf32>
    %72 = arith.subf %68, %71 : vector<1x8x8xf32>
    %73 = math.exp %72 : vector<1x8x8xf32>
    %cst_67 = arith.constant dense<0.000000e+00> : vector<1x8xf32>
    %74 = vector.multi_reduction <add>, %73, %cst_67 [2] : vector<1x8x8xf32> to vector<1x8xf32>
    %75 = vector.shape_cast %74 : vector<1x8xf32> to vector<1x8x1xf32>
    %76 = tpu.reciprocal %75 {approx = true} : vector<1x8x1xf32> -> vector<1x8x1xf32>
    %77 = vector.broadcast %76 : vector<1x8x1xf32> to vector<1x8x8xf32>
    %78 = arith.mulf %73, %77 : vector<1x8x8xf32>
    %cst_68 = arith.constant dense<0.000000e+00> : vector<1x8x8xf32>
    %79 = tpu.matmul %78, %67, %cst_68 {dimension_numbers = #tpu.dot_dimension_numbers<[2], [1], [1], [2], [0, 0, 0, 1, 1, 2], [0], [0]>} : vector<1x8x8xf32>, vector<1x8x8xf32>, vector<1x8x8xf32> -> vector<1x8x8xf32>
    %80 = vector.shape_cast %79 : vector<1x8x8xf32> to vector<8x8xf32>
    %c1_69 = arith.constant 1 : index
    %c0_70 = arith.constant 0 : index
    %c0_71 = arith.constant 0 : index
    %81 = vector.load %arg5[%c1_69, %c0_70, %c0_71] : memref<4x8x32xf32, #tpu.memory_space<vmem>>, vector<1x8x32xf32>
    %82 = vector.shape_cast %81 : vector<1x8x32xf32> to vector<8x32xf32>
    %cst_72 = arith.constant dense<0.000000e+00> : vector<8x32xf32>
    %83 = tpu.matmul %80, %82, %cst_72 {dimension_numbers = #tpu.dot_dimension_numbers<[1], [0], [0], [1], [0, 0, 1, 1], [], []>} : vector<8x8xf32>, vector<8x32xf32>, vector<8x32xf32> -> vector<8x32xf32>
    %84 = arith.addf %43, %83 : vector<8x32xf32>
    %c0_73 = arith.constant 0 : index
    %c2_74 = arith.constant 2 : index
    %c0_75 = arith.constant 0 : index
    %c0_76 = arith.constant 0 : index
    %85 = vector.load %arg3[%c0_73, %c2_74, %c0_75, %c0_76] : memref<3x4x8x32xf32, #tpu.memory_space<vmem>>, vector<1x1x8x32xf32>
    %86 = vector.shape_cast %85 : vector<1x1x8x32xf32> to vector<8x32xf32>
    %cst_77 = arith.constant dense<0.000000e+00> : vector<8x8xf32>
    %87 = tpu.matmul %3, %86, %cst_77 {dimension_numbers = #tpu.dot_dimension_numbers<[1], [1], [0], [0], [0, 0, 1, 0], [], []>} : vector<8x32xf32>, vector<8x32xf32>, vector<8x8xf32> -> vector<8x8xf32>
    %c0_78 = arith.constant 0 : index
    %c2_79 = arith.constant 2 : index
    %c0_80 = arith.constant 0 : index
    %c0_81 = arith.constant 0 : index
    %88 = vector.load %arg4[%c0_78, %c2_79, %c0_80, %c0_81] : memref<3x4x1x8xf32, #tpu.memory_space<vmem>>, vector<1x1x1x8xf32>
    %89 = vector.shape_cast %88 : vector<1x1x1x8xf32> to vector<1x8xf32>
    %90 = vector.broadcast %89 : vector<1x8xf32> to vector<8x8xf32>
    %91 = arith.addf %87, %90 : vector<8x8xf32>
    %c1_82 = arith.constant 1 : index
    %c2_83 = arith.constant 2 : index
    %c0_84 = arith.constant 0 : index
    %c0_85 = arith.constant 0 : index
    %92 = vector.load %arg3[%c1_82, %c2_83, %c0_84, %c0_85] : memref<3x4x8x32xf32, #tpu.memory_space<vmem>>, vector<1x1x8x32xf32>
    %93 = vector.shape_cast %92 : vector<1x1x8x32xf32> to vector<8x32xf32>
    %cst_86 = arith.constant dense<0.000000e+00> : vector<8x8xf32>
    %94 = tpu.matmul %3, %93, %cst_86 {dimension_numbers = #tpu.dot_dimension_numbers<[1], [1], [0], [0], [0, 0, 1, 0], [], []>} : vector<8x32xf32>, vector<8x32xf32>, vector<8x8xf32> -> vector<8x8xf32>
    %c1_87 = arith.constant 1 : index
    %c2_88 = arith.constant 2 : index
    %c0_89 = arith.constant 0 : index
    %c0_90 = arith.constant 0 : index
    %95 = vector.load %arg4[%c1_87, %c2_88, %c0_89, %c0_90] : memref<3x4x1x8xf32, #tpu.memory_space<vmem>>, vector<1x1x1x8xf32>
    %96 = vector.shape_cast %95 : vector<1x1x1x8xf32> to vector<1x8xf32>
    %97 = vector.broadcast %96 : vector<1x8xf32> to vector<8x8xf32>
    %98 = arith.addf %94, %97 : vector<8x8xf32>
    %c2_91 = arith.constant 2 : index
    %c2_92 = arith.constant 2 : index
    %c0_93 = arith.constant 0 : index
    %c0_94 = arith.constant 0 : index
    %99 = vector.load %arg3[%c2_91, %c2_92, %c0_93, %c0_94] : memref<3x4x8x32xf32, #tpu.memory_space<vmem>>, vector<1x1x8x32xf32>
    %100 = vector.shape_cast %99 : vector<1x1x8x32xf32> to vector<8x32xf32>
    %cst_95 = arith.constant dense<0.000000e+00> : vector<8x8xf32>
    %101 = tpu.matmul %3, %100, %cst_95 {dimension_numbers = #tpu.dot_dimension_numbers<[1], [1], [0], [0], [0, 0, 1, 0], [], []>} : vector<8x32xf32>, vector<8x32xf32>, vector<8x8xf32> -> vector<8x8xf32>
    %c2_96 = arith.constant 2 : index
    %c2_97 = arith.constant 2 : index
    %c0_98 = arith.constant 0 : index
    %c0_99 = arith.constant 0 : index
    %102 = vector.load %arg4[%c2_96, %c2_97, %c0_98, %c0_99] : memref<3x4x1x8xf32, #tpu.memory_space<vmem>>, vector<1x1x1x8xf32>
    %103 = vector.shape_cast %102 : vector<1x1x1x8xf32> to vector<1x8xf32>
    %104 = vector.broadcast %103 : vector<1x8xf32> to vector<8x8xf32>
    %105 = arith.addf %101, %104 : vector<8x8xf32>
    %106 = vector.shape_cast %91 : vector<8x8xf32> to vector<1x8x8xf32>
    %107 = vector.shape_cast %98 : vector<8x8xf32> to vector<1x8x8xf32>
    %108 = vector.shape_cast %105 : vector<8x8xf32> to vector<1x8x8xf32>
    %cst_100 = arith.constant dense<0.000000e+00> : vector<1x8x8xf32>
    %109 = tpu.matmul %106, %107, %cst_100 {dimension_numbers = #tpu.dot_dimension_numbers<[2], [2], [1], [1], [0, 0, 0, 1, 1, 1], [0], [0]>} : vector<1x8x8xf32>, vector<1x8x8xf32>, vector<1x8x8xf32> -> vector<1x8x8xf32>
    %cst_101 = arith.constant dense<0xFF800000> : vector<1x8xf32>
    %110 = vector.multi_reduction <maximumf>, %109, %cst_101 [2] : vector<1x8x8xf32> to vector<1x8xf32>
    %111 = vector.shape_cast %110 : vector<1x8xf32> to vector<1x8x1xf32>
    %112 = vector.broadcast %111 : vector<1x8x1xf32> to vector<1x8x8xf32>
    %113 = arith.subf %109, %112 : vector<1x8x8xf32>
    %114 = math.exp %113 : vector<1x8x8xf32>
    %cst_102 = arith.constant dense<0.000000e+00> : vector<1x8xf32>
    %115 = vector.multi_reduction <add>, %114, %cst_102 [2] : vector<1x8x8xf32> to vector<1x8xf32>
    %116 = vector.shape_cast %115 : vector<1x8xf32> to vector<1x8x1xf32>
    %117 = tpu.reciprocal %116 {approx = true} : vector<1x8x1xf32> -> vector<1x8x1xf32>
    %118 = vector.broadcast %117 : vector<1x8x1xf32> to vector<1x8x8xf32>
    %119 = arith.mulf %114, %118 : vector<1x8x8xf32>
    %cst_103 = arith.constant dense<0.000000e+00> : vector<1x8x8xf32>
    %120 = tpu.matmul %119, %108, %cst_103 {dimension_numbers = #tpu.dot_dimension_numbers<[2], [1], [1], [2], [0, 0, 0, 1, 1, 2], [0], [0]>} : vector<1x8x8xf32>, vector<1x8x8xf32>, vector<1x8x8xf32> -> vector<1x8x8xf32>
    %121 = vector.shape_cast %120 : vector<1x8x8xf32> to vector<8x8xf32>
    %c2_104 = arith.constant 2 : index
    %c0_105 = arith.constant 0 : index
    %c0_106 = arith.constant 0 : index
    %122 = vector.load %arg5[%c2_104, %c0_105, %c0_106] : memref<4x8x32xf32, #tpu.memory_space<vmem>>, vector<1x8x32xf32>
    %123 = vector.shape_cast %122 : vector<1x8x32xf32> to vector<8x32xf32>
    %cst_107 = arith.constant dense<0.000000e+00> : vector<8x32xf32>
    %124 = tpu.matmul %121, %123, %cst_107 {dimension_numbers = #tpu.dot_dimension_numbers<[1], [0], [0], [1], [0, 0, 1, 1], [], []>} : vector<8x8xf32>, vector<8x32xf32>, vector<8x32xf32> -> vector<8x32xf32>
    %125 = arith.addf %84, %124 : vector<8x32xf32>
    %c0_108 = arith.constant 0 : index
    %c3 = arith.constant 3 : index
    %c0_109 = arith.constant 0 : index
    %c0_110 = arith.constant 0 : index
    %126 = vector.load %arg3[%c0_108, %c3, %c0_109, %c0_110] : memref<3x4x8x32xf32, #tpu.memory_space<vmem>>, vector<1x1x8x32xf32>
    %127 = vector.shape_cast %126 : vector<1x1x8x32xf32> to vector<8x32xf32>
    %cst_111 = arith.constant dense<0.000000e+00> : vector<8x8xf32>
    %128 = tpu.matmul %3, %127, %cst_111 {dimension_numbers = #tpu.dot_dimension_numbers<[1], [1], [0], [0], [0, 0, 1, 0], [], []>} : vector<8x32xf32>, vector<8x32xf32>, vector<8x8xf32> -> vector<8x8xf32>
    %c0_112 = arith.constant 0 : index
    %c3_113 = arith.constant 3 : index
    %c0_114 = arith.constant 0 : index
    %c0_115 = arith.constant 0 : index
    %129 = vector.load %arg4[%c0_112, %c3_113, %c0_114, %c0_115] : memref<3x4x1x8xf32, #tpu.memory_space<vmem>>, vector<1x1x1x8xf32>
    %130 = vector.shape_cast %129 : vector<1x1x1x8xf32> to vector<1x8xf32>
    %131 = vector.broadcast %130 : vector<1x8xf32> to vector<8x8xf32>
    %132 = arith.addf %128, %131 : vector<8x8xf32>
    %c1_116 = arith.constant 1 : index
    %c3_117 = arith.constant 3 : index
    %c0_118 = arith.constant 0 : index
    %c0_119 = arith.constant 0 : index
    %133 = vector.load %arg3[%c1_116, %c3_117, %c0_118, %c0_119] : memref<3x4x8x32xf32, #tpu.memory_space<vmem>>, vector<1x1x8x32xf32>
    %134 = vector.shape_cast %133 : vector<1x1x8x32xf32> to vector<8x32xf32>
    %cst_120 = arith.constant dense<0.000000e+00> : vector<8x8xf32>
    %135 = tpu.matmul %3, %134, %cst_120 {dimension_numbers = #tpu.dot_dimension_numbers<[1], [1], [0], [0], [0, 0, 1, 0], [], []>} : vector<8x32xf32>, vector<8x32xf32>, vector<8x8xf32> -> vector<8x8xf32>
    %c1_121 = arith.constant 1 : index
    %c3_122 = arith.constant 3 : index
    %c0_123 = arith.constant 0 : index
    %c0_124 = arith.constant 0 : index
    %136 = vector.load %arg4[%c1_121, %c3_122, %c0_123, %c0_124] : memref<3x4x1x8xf32, #tpu.memory_space<vmem>>, vector<1x1x1x8xf32>
    %137 = vector.shape_cast %136 : vector<1x1x1x8xf32> to vector<1x8xf32>
    %138 = vector.broadcast %137 : vector<1x8xf32> to vector<8x8xf32>
    %139 = arith.addf %135, %138 : vector<8x8xf32>
    %c2_125 = arith.constant 2 : index
    %c3_126 = arith.constant 3 : index
    %c0_127 = arith.constant 0 : index
    %c0_128 = arith.constant 0 : index
    %140 = vector.load %arg3[%c2_125, %c3_126, %c0_127, %c0_128] : memref<3x4x8x32xf32, #tpu.memory_space<vmem>>, vector<1x1x8x32xf32>
    %141 = vector.shape_cast %140 : vector<1x1x8x32xf32> to vector<8x32xf32>
    %cst_129 = arith.constant dense<0.000000e+00> : vector<8x8xf32>
    %142 = tpu.matmul %3, %141, %cst_129 {dimension_numbers = #tpu.dot_dimension_numbers<[1], [1], [0], [0], [0, 0, 1, 0], [], []>} : vector<8x32xf32>, vector<8x32xf32>, vector<8x8xf32> -> vector<8x8xf32>
    %c2_130 = arith.constant 2 : index
    %c3_131 = arith.constant 3 : index
    %c0_132 = arith.constant 0 : index
    %c0_133 = arith.constant 0 : index
    %143 = vector.load %arg4[%c2_130, %c3_131, %c0_132, %c0_133] : memref<3x4x1x8xf32, #tpu.memory_space<vmem>>, vector<1x1x1x8xf32>
    %144 = vector.shape_cast %143 : vector<1x1x1x8xf32> to vector<1x8xf32>
    %145 = vector.broadcast %144 : vector<1x8xf32> to vector<8x8xf32>
    %146 = arith.addf %142, %145 : vector<8x8xf32>
    %147 = vector.shape_cast %132 : vector<8x8xf32> to vector<1x8x8xf32>
    %148 = vector.shape_cast %139 : vector<8x8xf32> to vector<1x8x8xf32>
    %149 = vector.shape_cast %146 : vector<8x8xf32> to vector<1x8x8xf32>
    %cst_134 = arith.constant dense<0.000000e+00> : vector<1x8x8xf32>
    %150 = tpu.matmul %147, %148, %cst_134 {dimension_numbers = #tpu.dot_dimension_numbers<[2], [2], [1], [1], [0, 0, 0, 1, 1, 1], [0], [0]>} : vector<1x8x8xf32>, vector<1x8x8xf32>, vector<1x8x8xf32> -> vector<1x8x8xf32>
    %cst_135 = arith.constant dense<0xFF800000> : vector<1x8xf32>
    %151 = vector.multi_reduction <maximumf>, %150, %cst_135 [2] : vector<1x8x8xf32> to vector<1x8xf32>
    %152 = vector.shape_cast %151 : vector<1x8xf32> to vector<1x8x1xf32>
    %153 = vector.broadcast %152 : vector<1x8x1xf32> to vector<1x8x8xf32>
    %154 = arith.subf %150, %153 : vector<1x8x8xf32>
    %155 = math.exp %154 : vector<1x8x8xf32>
    %cst_136 = arith.constant dense<0.000000e+00> : vector<1x8xf32>
    %156 = vector.multi_reduction <add>, %155, %cst_136 [2] : vector<1x8x8xf32> to vector<1x8xf32>
    %157 = vector.shape_cast %156 : vector<1x8xf32> to vector<1x8x1xf32>
    %158 = tpu.reciprocal %157 {approx = true} : vector<1x8x1xf32> -> vector<1x8x1xf32>
    %159 = vector.broadcast %158 : vector<1x8x1xf32> to vector<1x8x8xf32>
    %160 = arith.mulf %155, %159 : vector<1x8x8xf32>
    %cst_137 = arith.constant dense<0.000000e+00> : vector<1x8x8xf32>
    %161 = tpu.matmul %160, %149, %cst_137 {dimension_numbers = #tpu.dot_dimension_numbers<[2], [1], [1], [2], [0, 0, 0, 1, 1, 2], [0], [0]>} : vector<1x8x8xf32>, vector<1x8x8xf32>, vector<1x8x8xf32> -> vector<1x8x8xf32>
    %162 = vector.shape_cast %161 : vector<1x8x8xf32> to vector<8x8xf32>
    %c3_138 = arith.constant 3 : index
    %c0_139 = arith.constant 0 : index
    %c0_140 = arith.constant 0 : index
    %163 = vector.load %arg5[%c3_138, %c0_139, %c0_140] : memref<4x8x32xf32, #tpu.memory_space<vmem>>, vector<1x8x32xf32>
    %164 = vector.shape_cast %163 : vector<1x8x32xf32> to vector<8x32xf32>
    %cst_141 = arith.constant dense<0.000000e+00> : vector<8x32xf32>
    %165 = tpu.matmul %162, %164, %cst_141 {dimension_numbers = #tpu.dot_dimension_numbers<[1], [0], [0], [1], [0, 0, 1, 1], [], []>} : vector<8x8xf32>, vector<8x32xf32>, vector<8x32xf32> -> vector<8x32xf32>
    %166 = arith.addf %125, %165 : vector<8x32xf32>
    %167 = arith.addf %3, %166 : vector<8x32xf32>
    %168 = vector.extract_strided_slice %0 {offsets = [0, 0, 0], sizes = [1, 1, 32], strides = [1, 1, 1]} : vector<6x1x32xf32> to vector<1x1x32xf32>
    %169 = vector.shape_cast %168 : vector<1x1x32xf32> to vector<1x32xf32>
    %170 = vector.broadcast %169 : vector<1x32xf32> to vector<8x32xf32>
    %171 = arith.addf %167, %170 : vector<8x32xf32>
    %172 = vector.extract_strided_slice %0 {offsets = [1, 0, 0], sizes = [1, 1, 32], strides = [1, 1, 1]} : vector<6x1x32xf32> to vector<1x1x32xf32>
    %173 = vector.shape_cast %172 : vector<1x1x32xf32> to vector<1x32xf32>
    %174 = vector.extract_strided_slice %0 {offsets = [2, 0, 0], sizes = [1, 1, 32], strides = [1, 1, 1]} : vector<6x1x32xf32> to vector<1x1x32xf32>
    %175 = vector.shape_cast %174 : vector<1x1x32xf32> to vector<1x32xf32>
    %cst_142 = arith.constant dense<0.000000e+00> : vector<8xf32>
    %176 = vector.multi_reduction <add>, %171, %cst_142 [1] : vector<8x32xf32> to vector<8xf32>
    %177 = vector.shape_cast %176 : vector<8xf32> to vector<8x1xf32>
    %cst_143 = arith.constant 3.200000e+01 : f32
    %178 = vector.broadcast %cst_143 : f32 to vector<8x1xf32>
    %179 = arith.divf %177, %178 : vector<8x1xf32>
    %180 = vector.broadcast %179 : vector<8x1xf32> to vector<8x32xf32>
    %181 = arith.subf %171, %180 : vector<8x32xf32>
    %182 = arith.mulf %181, %181 : vector<8x32xf32>
    %cst_144 = arith.constant dense<0.000000e+00> : vector<8xf32>
    %183 = vector.multi_reduction <add>, %182, %cst_144 [1] : vector<8x32xf32> to vector<8xf32>
    %184 = vector.shape_cast %183 : vector<8xf32> to vector<8x1xf32>
    %cst_145 = arith.constant 3.200000e+01 : f32
    %185 = vector.broadcast %cst_145 : f32 to vector<8x1xf32>
    %186 = arith.divf %184, %185 : vector<8x1xf32>
    %187 = vector.broadcast %179 : vector<8x1xf32> to vector<8x32xf32>
    %188 = arith.subf %171, %187 : vector<8x32xf32>
    %cst_146 = arith.constant 9.99999974E-6 : f32
    %189 = vector.broadcast %cst_146 : f32 to vector<8x1xf32>
    %190 = arith.addf %186, %189 : vector<8x1xf32>
    %191 = math.rsqrt %190 : vector<8x1xf32>
    %192 = vector.broadcast %191 : vector<8x1xf32> to vector<8x32xf32>
    %193 = arith.mulf %188, %192 : vector<8x32xf32>
    %194 = vector.broadcast %173 : vector<1x32xf32> to vector<8x32xf32>
    %195 = arith.mulf %193, %194 : vector<8x32xf32>
    %196 = vector.broadcast %175 : vector<1x32xf32> to vector<8x32xf32>
    %197 = arith.addf %195, %196 : vector<8x32xf32>
    %c0_147 = arith.constant 0 : index
    %c0_148 = arith.constant 0 : index
    %198 = vector.load %arg6[%c0_147, %c0_148] : memref<32x64xf32, #tpu.memory_space<vmem>>, vector<32x64xf32>
    %cst_149 = arith.constant dense<0.000000e+00> : vector<8x64xf32>
    %199 = tpu.matmul %197, %198, %cst_149 {dimension_numbers = #tpu.dot_dimension_numbers<[1], [0], [0], [1], [0, 0, 1, 1], [], []>} : vector<8x32xf32>, vector<32x64xf32>, vector<8x64xf32> -> vector<8x64xf32>
    %c0_150 = arith.constant 0 : index
    %c0_151 = arith.constant 0 : index
    %200 = vector.load %arg7[%c0_150, %c0_151] : memref<1x64xf32, #tpu.memory_space<vmem>>, vector<1x64xf32>
    %201 = vector.broadcast %200 : vector<1x64xf32> to vector<8x64xf32>
    %202 = arith.addf %199, %201 : vector<8x64xf32>
    %cst_152 = arith.constant 0.000000e+00 : f32
    %203 = vector.broadcast %cst_152 : f32 to vector<8x64xf32>
    %204 = arith.maximumf %202, %203 : vector<8x64xf32>
    %c0_153 = arith.constant 0 : index
    %c0_154 = arith.constant 0 : index
    %205 = vector.load %arg8[%c0_153, %c0_154] : memref<64x32xf32, #tpu.memory_space<vmem>>, vector<64x32xf32>
    %cst_155 = arith.constant dense<0.000000e+00> : vector<8x32xf32>
    %206 = tpu.matmul %204, %205, %cst_155 {dimension_numbers = #tpu.dot_dimension_numbers<[1], [0], [0], [1], [0, 0, 1, 1], [], []>} : vector<8x64xf32>, vector<64x32xf32>, vector<8x32xf32> -> vector<8x32xf32>
    %207 = arith.addf %197, %206 : vector<8x32xf32>
    %208 = vector.extract_strided_slice %0 {offsets = [3, 0, 0], sizes = [1, 1, 32], strides = [1, 1, 1]} : vector<6x1x32xf32> to vector<1x1x32xf32>
    %209 = vector.shape_cast %208 : vector<1x1x32xf32> to vector<1x32xf32>
    %210 = vector.broadcast %209 : vector<1x32xf32> to vector<8x32xf32>
    %211 = arith.addf %207, %210 : vector<8x32xf32>
    %212 = vector.extract_strided_slice %0 {offsets = [4, 0, 0], sizes = [1, 1, 32], strides = [1, 1, 1]} : vector<6x1x32xf32> to vector<1x1x32xf32>
    %213 = vector.shape_cast %212 : vector<1x1x32xf32> to vector<1x32xf32>
    %214 = vector.extract_strided_slice %0 {offsets = [5, 0, 0], sizes = [1, 1, 32], strides = [1, 1, 1]} : vector<6x1x32xf32> to vector<1x1x32xf32>
    %215 = vector.shape_cast %214 : vector<1x1x32xf32> to vector<1x32xf32>
    %cst_156 = arith.constant dense<0.000000e+00> : vector<8xf32>
    %216 = vector.multi_reduction <add>, %211, %cst_156 [1] : vector<8x32xf32> to vector<8xf32>
    %217 = vector.shape_cast %216 : vector<8xf32> to vector<8x1xf32>
    %cst_157 = arith.constant 3.200000e+01 : f32
    %218 = vector.broadcast %cst_157 : f32 to vector<8x1xf32>
    %219 = arith.divf %217, %218 : vector<8x1xf32>
    %220 = vector.broadcast %219 : vector<8x1xf32> to vector<8x32xf32>
    %221 = arith.subf %211, %220 : vector<8x32xf32>
    %222 = arith.mulf %221, %221 : vector<8x32xf32>
    %cst_158 = arith.constant dense<0.000000e+00> : vector<8xf32>
    %223 = vector.multi_reduction <add>, %222, %cst_158 [1] : vector<8x32xf32> to vector<8xf32>
    %224 = vector.shape_cast %223 : vector<8xf32> to vector<8x1xf32>
    %cst_159 = arith.constant 3.200000e+01 : f32
    %225 = vector.broadcast %cst_159 : f32 to vector<8x1xf32>
    %226 = arith.divf %224, %225 : vector<8x1xf32>
    %227 = vector.broadcast %219 : vector<8x1xf32> to vector<8x32xf32>
    %228 = arith.subf %211, %227 : vector<8x32xf32>
    %cst_160 = arith.constant 9.99999974E-6 : f32
    %229 = vector.broadcast %cst_160 : f32 to vector<8x1xf32>
    %230 = arith.addf %226, %229 : vector<8x1xf32>
    %231 = math.rsqrt %230 : vector<8x1xf32>
    %232 = vector.broadcast %231 : vector<8x1xf32> to vector<8x32xf32>
    %233 = arith.mulf %228, %232 : vector<8x32xf32>
    %234 = vector.broadcast %213 : vector<1x32xf32> to vector<8x32xf32>
    %235 = arith.mulf %233, %234 : vector<8x32xf32>
    %236 = vector.broadcast %215 : vector<1x32xf32> to vector<8x32xf32>
    %237 = arith.addf %235, %236 : vector<8x32xf32>
    %c0_161 = arith.constant 0 : index
    %c0_162 = arith.constant 0 : index
    %238 = vector.load %arg10[%c0_161, %c0_162] : memref<8x32xf32, #tpu.memory_space<vmem>>, vector<8x32xf32>
    tpu.vector_store %arg10[%c0_161, %c0_162], %237 {strides = array<i32>} : memref<8x32xf32, #tpu.memory_space<vmem>>, vector<8x32xf32>,
    return
  }
  func.func @transform_0(%arg0: i32) -> (i32, i32) {
    %c0_i32 = arith.constant 0 : i32
    %c0_i32_0 = arith.constant 0 : i32
    return %arg0, %c0_i32 : i32, i32
  }
  func.func @transform_1(%arg0: i32) -> (i32, i32) {
    %c0_i32 = arith.constant 0 : i32
    %c0_i32_0 = arith.constant 0 : i32
    return %arg0, %c0_i32 : i32, i32
  }
  func.func @transform_2(%arg0: i32) -> (i32, i32, i32, i32) {
    %c0_i32 = arith.constant 0 : i32
    %c0_i32_0 = arith.constant 0 : i32
    %c0_i32_1 = arith.constant 0 : i32
    %c0_i32_2 = arith.constant 0 : i32
    %c0_i32_3 = arith.constant 0 : i32
    return %c0_i32, %c0_i32_0, %c0_i32_1, %c0_i32_2 : i32, i32, i32, i32
  }
  func.func @transform_3(%arg0: i32) -> (i32, i32, i32, i32) {
    %c0_i32 = arith.constant 0 : i32
    %c0_i32_0 = arith.constant 0 : i32
    %c0_i32_1 = arith.constant 0 : i32
    %c0_i32_2 = arith.constant 0 : i32
    %c0_i32_3 = arith.constant 0 : i32
    return %c0_i32, %c0_i32_0, %c0_i32_1, %c0_i32_2 : i32, i32, i32, i32
  }
  func.func @transform_4(%arg0: i32) -> (i32, i32, i32) {
    %c0_i32 = arith.constant 0 : i32
    %c0_i32_0 = arith.constant 0 : i32
    %c0_i32_1 = arith.constant 0 : i32
    %c0_i32_2 = arith.constant 0 : i32
    return %c0_i32, %c0_i32_0, %c0_i32_1 : i32, i32, i32
  }
  func.func @transform_5(%arg0: i32) -> (i32, i32) {
    %c0_i32 = arith.constant 0 : i32
    %c0_i32_0 = arith.constant 0 : i32
    %c0_i32_1 = arith.constant 0 : i32
    return %c0_i32, %c0_i32_0 : i32, i32
  }
  func.func @transform_6(%arg0: i32) -> (i32, i32) {
    %c0_i32 = arith.constant 0 : i32
    %c0_i32_0 = arith.constant 0 : i32
    %c0_i32_1 = arith.constant 0 : i32
    return %c0_i32, %c0_i32_0 : i32, i32
  }
  func.func @transform_7(%arg0: i32) -> (i32, i32) {
    %c0_i32 = arith.constant 0 : i32
    %c0_i32_0 = arith.constant 0 : i32
    %c0_i32_1 = arith.constant 0 : i32
    return %c0_i32, %c0_i32_0 : i32, i32
  }
  func.func @transform_8(%arg0: i32) -> (i32, i32, i32) {
    %c0_i32 = arith.constant 0 : i32
    %c0_i32_0 = arith.constant 0 : i32
    %c0_i32_1 = arith.constant 0 : i32
    %c0_i32_2 = arith.constant 0 : i32
    return %c0_i32, %c0_i32_0, %c0_i32_1 : i32, i32, i32
  }
  func.func @transform_9(%arg0: i32) -> (i32, i32) {
    %c0_i32 = arith.constant 0 : i32
    %c0_i32_0 = arith.constant 0 : i32
    return %arg0, %c0_i32 : i32, i32
  }
}

</mosaic_0001>

<llo_original>
// kernel: encoder_layer.1
$region0: #{encoder_layer.1}
  #allocation0 [shape = 'u32[]', space=smem, size = 0x4, offset = 0x4, fixed_abs, tag = 'smem constant byte address 0x4 - core index']
  #allocation1 [shape = 'u32[144,128]{1,0:T(1,128)}', space=vmem, size = 0x12000, scoped, tag = 'internal scratch']
  %s0 = inlined_call_operand.hbm [shape: f32[16,32], index: 0, kind: input, shape index: {}]
  %s1 = inlined_call_operand.hbm [shape: f32[16,32], index: 1, kind: input, shape index: {}]
  %s2 = inlined_call_operand.vmem [shape: f32[3,4,8,32], index: 2, kind: input, shape index: {}]
  %s3 = inlined_call_operand.hbm [shape: f32[3,4,1,8], index: 3, kind: input, shape index: {}]
  %s4 = inlined_call_operand.vmem [shape: f32[4,8,32], index: 4, kind: input, shape index: {}]
  %s5 = inlined_call_operand.hbm [shape: f32[32,64], index: 5, kind: input, shape index: {}]
  %s6 = inlined_call_operand.vmem [shape: f32[1,64], index: 6, kind: input, shape index: {}]
  %s7 = inlined_call_operand.vmem [shape: f32[64,32], index: 7, kind: input, shape index: {}]
  %s8 = inlined_call_operand.hbm [shape: f32[6,1,32], index: 8, kind: input, shape index: {}]
  %s9 = inlined_call_operand.hbm [shape: f32[16,32], index: 9, kind: output, shape index: {}]
  %s10 = sld [smem:[#allocation0]]
  $region89: #{encoder_layer.1} parent=0
    _
  %s12 = ssub.s32 1, %s10
  %s13 = scalar_select 0, %s12, %s10
  $region1: #{encoder_layer.1} parent=0
    #allocation2 [shape = 'u8[8192]{0}', space=vmem, size = 0x2000, scoped, tag = 'input window, operand 0']
    #allocation3 [shape = 's32[2]{0}', space=sflag, size = 0x8, scoped, tag = 'scoped memory for encoder_layer.1']
    #allocation4 [shape = 's32[2]{0}', space=sflag, size = 0x8, scoped, tag = 'scoped memory for encoder_layer.1']
    #allocation5 [shape = 'u8[8192]{0}', space=vmem, size = 0x2000, scoped, tag = 'input window, operand 1']
    #allocation6 [shape = 's32[2]{0}', space=sflag, size = 0x8, scoped, tag = 'scoped memory for encoder_layer.1']
    #allocation7 [shape = 'u8[6144]{0}', space=vmem, size = 0x1800, scoped, tag = 'input window, operand 3, single buffered']
    #allocation8 [shape = 'u8[16384]{0}', space=vmem, size = 0x4000, scoped, tag = 'input window, operand 5, single buffered']
    #allocation9 [shape = 's32[1]{0}', space=sflag, size = 0x4, scoped, tag = 'scoped memory for encoder_layer.1']
    #allocation10 [shape = 'u8[3072]{0}', space=vmem, size = 0xc00, scoped, tag = 'input window, operand 8, single buffered']
    #allocation11 [shape = 'u8[8192]{0}', space=vmem, size = 0x2000, scoped, tag = 'output window, operand 0']
    %14 = vsyncpa [#allocation3], 0
    %s15 = scalar_lea.sflag [#allocation3], 1
    %16 = vsyncpa %s15, 0
    %17 = vsyncpa [#allocation6], 0
    %s18 = scalar_lea.sflag [#allocation6], 1
    %19 = vsyncpa %s18, 0
    %20 = vsyncpa [#allocation9], 0
    %21 = vsyncpa [#allocation4], 0
    %s22 = scalar_lea.sflag [#allocation4], 1
    %23 = vsyncpa %s22, 0
    loop: start=0, step=1, limit=4
    $region2: #{encoder_layer.1} parent=1 // loop_pre_header
      _
    $region3: #{encoder_layer.1} parent=1 // loop_header
      %s25 = sphi 0, %s29
      %p26 = scmp.ge.s32.totalorder %s25, 4
      %s35 = sphi 0, %s37
      %s38 = sphi 0, %s35
      %s39 = sphi 0, %s38
      %s55 = sphi 0, %s39
      %s61 = sphi 0, %s63
      %s64 = sphi 0, %s61
      %s65 = sphi 0, %s64
      %s81 = sphi 0, %s65
      %s85 = sphi 0, %s85
      %s87 = sphi 0, %s85
      %s88 = sphi 0, %s87
      %s102 = sphi 0, %s88
      %s106 = sphi 0, %s106
      %s108 = sphi 0, %s106
      %s109 = sphi 0, %s108
      %s123 = sphi 0, %s109
      %s127 = sphi 0, %s127
      %s129 = sphi 0, %s127
      %s130 = sphi 0, %s129
      %s144 = sphi 0, %s130
      %s148 = sphi 0, %s148
      %s150 = sphi 0, %s148
      %s151 = sphi 0, %s150
      %s165 = sphi 0, %s151
      %s169 = sphi 0, %s169
      %s171 = sphi 0, %s169
      %s172 = sphi 0, %s171
      %s186 = sphi 0, %s172
      %s190 = sphi 0, %s190
      %s192 = sphi 0, %s190
      %s193 = sphi 0, %s192
      %s207 = sphi 0, %s193
      %s211 = sphi 0, %s211
      %s213 = sphi 0, %s211
      %s214 = sphi 0, %s213
      %s228 = sphi 0, %s214
      %s234 = sphi 0, %s236
      %s237 = sphi 0, %s234
      %s238 = sphi 0, %s237
      %s254 = sphi 0, %s238
    $region4: #{encoder_layer.1} parent=1 // loop_header_branch
      %28 = sbr.rel (%p26) target = $region8
    $region5: #{encoder_layer.1} parent=1 // loop_body
      %s30 = ssub.s32 %s25, 1
      %s31 = ssub.s32 %s25, 2
      %s32 = sadd.s32 %s25, 1
      %s33 = ssub.s32 %s25, %s32
      %p34 = scmp.eq.s32.totalorder %s33, 0
      %s36 = sadd.s32 %s35, 1
      %s37 = scalar_select %p34, %s35, %s36
      %p40 = pneg %p34
      %p41 = scmp.eq.s32.totalorder %s25, 1
      %p42 = por %p40, %p41
      %p43 = scmp.ne.s32.totalorder %s35, %s38
      %p44 = scmp.eq.s32.totalorder %s25, 0
      %p45 = por %p43, %p44
      %p46 = scmp.ne.s32.totalorder %s35, %s38
      %p47 = scmp.eq.s32.totalorder %s30, 1
      %p48 = por %p46, %p47
      %p49 = scmp.ne.s32.totalorder %s38, %s39
      %p50 = scmp.eq.s32.totalorder %s30, 0
      %p51 = por %p49, %p50
      %p52 = scmp.ne.s32.totalorder %s38, %s39
      %p53 = scmp.eq.s32.totalorder %s31, 1
      %p54 = por %p52, %p53
      %p56 = scmp.ne.s32.totalorder %s39, %s55
      %p57 = scmp.eq.s32.totalorder %s31, 0
      %p58 = por %p56, %p57
      %s59 = ssub.s32 %s25, %s32
      %p60 = scmp.eq.s32.totalorder %s59, 0
      %s62 = sadd.s32 %s61, 1
      %s63 = scalar_select %p60, %s61, %s62
      %p66 = pneg %p60
      %p67 = scmp.eq.s32.totalorder %s25, 1
      %p68 = por %p66, %p67
      %p69 = scmp.ne.s32.totalorder %s61, %s64
      %p70 = scmp.eq.s32.totalorder %s25, 0
      %p71 = por %p69, %p70
      %p72 = scmp.ne.s32.totalorder %s61, %s64
      %p73 = scmp.eq.s32.totalorder %s30, 1
      %p74 = por %p72, %p73
      %p75 = scmp.ne.s32.totalorder %s64, %s65
      %p76 = scmp.eq.s32.totalorder %s30, 0
      %p77 = por %p75, %p76
      %p78 = scmp.ne.s32.totalorder %s64, %s65
      %p79 = scmp.eq.s32.totalorder %s31, 1
      %p80 = por %p78, %p79
      %p82 = scmp.ne.s32.totalorder %s65, %s81
      %p83 = scmp.eq.s32.totalorder %s31, 0
      %p84 = por %p82, %p83
      %s86 = sadd.s32 %s85, 1
      %p89 = scmp.eq.s32.totalorder %s25, 1
      %p90 = scmp.ne.s32.totalorder %s85, %s87
      %p91 = scmp.eq.s32.totalorder %s25, 0
      %p92 = por %p90, %p91
      %p93 = scmp.ne.s32.totalorder %s85, %s87
      %p94 = scmp.eq.s32.totalorder %s30, 1
      %p95 = por %p93, %p94
      %p96 = scmp.ne.s32.totalorder %s87, %s88
      %p97 = scmp.eq.s32.totalorder %s30, 0
      %p98 = por %p96, %p97
      %p99 = scmp.ne.s32.totalorder %s87, %s88
      %p100 = scmp.eq.s32.totalorder %s31, 1
      %p101 = por %p99, %p100
      %p103 = scmp.ne.s32.totalorder %s88, %s102
      %p104 = scmp.eq.s32.totalorder %s31, 0
      %p105 = por %p103, %p104
      %s107 = sadd.s32 %s106, 1
      %p110 = scmp.eq.s32.totalorder %s25, 1
      %p111 = scmp.ne.s32.totalorder %s106, %s108
      %p112 = scmp.eq.s32.totalorder %s25, 0
      %p113 = por %p111, %p112
      %p114 = scmp.ne.s32.totalorder %s106, %s108
      %p115 = scmp.eq.s32.totalorder %s30, 1
      %p116 = por %p114, %p115
      %p117 = scmp.ne.s32.totalorder %s108, %s109
      %p118 = scmp.eq.s32.totalorder %s30, 0
      %p119 = por %p117, %p118
      %p120 = scmp.ne.s32.totalorder %s108, %s109
      %p121 = scmp.eq.s32.totalorder %s31, 1
      %p122 = por %p120, %p121
      %p124 = scmp.ne.s32.totalorder %s109, %s123
      %p125 = scmp.eq.s32.totalorder %s31, 0
      %p126 = por %p124, %p125
      %s128 = sadd.s32 %s127, 1
      %p131 = scmp.eq.s32.totalorder %s25, 1
      %p132 = scmp.ne.s32.totalorder %s127, %s129
      %p133 = scmp.eq.s32.totalorder %s25, 0
      %p134 = por %p132, %p133
      %p135 = scmp.ne.s32.totalorder %s127, %s129
      %p136 = scmp.eq.s32.totalorder %s30, 1
      %p137 = por %p135, %p136
      %p138 = scmp.ne.s32.totalorder %s129, %s130
      %p139 = scmp.eq.s32.totalorder %s30, 0
      %p140 = por %p138, %p139
      %p141 = scmp.ne.s32.totalorder %s129, %s130
      %p142 = scmp.eq.s32.totalorder %s31, 1
      %p143 = por %p141, %p142
      %p145 = scmp.ne.s32.totalorder %s130, %s144
      %p146 = scmp.eq.s32.totalorder %s31, 0
      %p147 = por %p145, %p146
      %s149 = sadd.s32 %s148, 1
      %p152 = scmp.eq.s32.totalorder %s25, 1
      %p153 = scmp.ne.s32.totalorder %s148, %s150
      %p154 = scmp.eq.s32.totalorder %s25, 0
      %p155 = por %p153, %p154
      %p156 = scmp.ne.s32.totalorder %s148, %s150
      %p157 = scmp.eq.s32.totalorder %s30, 1
      %p158 = por %p156, %p157
      %p159 = scmp.ne.s32.totalorder %s150, %s151
      %p160 = scmp.eq.s32.totalorder %s30, 0
      %p161 = por %p159, %p160
      %p162 = scmp.ne.s32.totalorder %s150, %s151
      %p163 = scmp.eq.s32.totalorder %s31, 1
      %p164 = por %p162, %p163
      %p166 = scmp.ne.s32.totalorder %s151, %s165
      %p167 = scmp.eq.s32.totalorder %s31, 0
      %p168 = por %p166, %p167
      %s170 = sadd.s32 %s169, 1
      %p173 = scmp.eq.s32.totalorder %s25, 1
      %p174 = scmp.ne.s32.totalorder %s169, %s171
      %p175 = scmp.eq.s32.totalorder %s25, 0
      %p176 = por %p174, %p175
      %p177 = scmp.ne.s32.totalorder %s169, %s171
      %p178 = scmp.eq.s32.totalorder %s30, 1
      %p179 = por %p177, %p178
      %p180 = scmp.ne.s32.totalorder %s171, %s172
      %p181 = scmp.eq.s32.totalorder %s30, 0
      %p182 = por %p180, %p181
      %p183 = scmp.ne.s32.totalorder %s171, %s172
      %p184 = scmp.eq.s32.totalorder %s31, 1
      %p185 = por %p183, %p184
      %p187 = scmp.ne.s32.totalorder %s172, %s186
      %p188 = scmp.eq.s32.totalorder %s31, 0
      %p189 = por %p187, %p188
      %s191 = sadd.s32 %s190, 1
      %p194 = scmp.eq.s32.totalorder %s25, 1
      %p195 = scmp.ne.s32.totalorder %s190, %s192
      %p196 = scmp.eq.s32.totalorder %s25, 0
      %p197 = por %p195, %p196
      %p198 = scmp.ne.s32.totalorder %s190, %s192
      %p199 = scmp.eq.s32.totalorder %s30, 1
      %p200 = por %p198, %p199
      %p201 = scmp.ne.s32.totalorder %s192, %s193
      %p202 = scmp.eq.s32.totalorder %s30, 0
      %p203 = por %p201, %p202
      %p204 = scmp.ne.s32.totalorder %s192, %s193
      %p205 = scmp.eq.s32.totalorder %s31, 1
      %p206 = por %p204, %p205
      %p208 = scmp.ne.s32.totalorder %s193, %s207
      %p209 = scmp.eq.s32.totalorder %s31, 0
      %p210 = por %p208, %p209
      %s212 = sadd.s32 %s211, 1
      %p215 = scmp.eq.s32.totalorder %s25, 1
      %p216 = scmp.ne.s32.totalorder %s211, %s213
      %p217 = scmp.eq.s32.totalorder %s25, 0
      %p218 = por %p216, %p217
      %p219 = scmp.ne.s32.totalorder %s211, %s213
      %p220 = scmp.eq.s32.totalorder %s30, 1
      %p221 = por %p219, %p220
      %p222 = scmp.ne.s32.totalorder %s213, %s214
      %p223 = scmp.eq.s32.totalorder %s30, 0
      %p224 = por %p222, %p223
      %p225 = scmp.ne.s32.totalorder %s213, %s214
      %p226 = scmp.eq.s32.totalorder %s31, 1
      %p227 = por %p225, %p226
      %p229 = scmp.ne.s32.totalorder %s214, %s228
      %p230 = scmp.eq.s32.totalorder %s31, 0
      %p231 = por %p229, %p230
      %s232 = ssub.s32 %s25, %s32
      %p233 = scmp.eq.s32.totalorder %s232, 0
      %s235 = sadd.s32 %s234, 1
      %s236 = scalar_select %p233, %s234, %s235
      %p239 = pneg %p233
      %p240 = scmp.eq.s32.totalorder %s25, 1
      %p241 = por %p239, %p240
      %p242 = scmp.ne.s32.totalorder %s234, %s237
      %p243 = scmp.eq.s32.totalorder %s25, 0
      %p244 = por %p242, %p243
      %p245 = scmp.ne.s32.totalorder %s234, %s237
      %p246 = scmp.eq.s32.totalorder %s30, 1
      %p247 = por %p245, %p246
      %p248 = scmp.ne.s32.totalorder %s237, %s238
      %p249 = scmp.eq.s32.totalorder %s30, 0
      %p250 = por %p248, %p249
      %p251 = scmp.ne.s32.totalorder %s237, %s238
      %p252 = scmp.eq.s32.totalorder %s31, 1
      %p253 = por %p251, %p252
      %p255 = scmp.ne.s32.totalorder %s238, %s254
      %p256 = scmp.eq.s32.totalorder %s31, 0
      %p257 = por %p255, %p256
      %p258 = scmp.le.s32.totalorder 1, %s25
      %p259 = scmp.lt.s32.totalorder %s25, 3
      %p260 = pnand %p258, %p259
      %p261 = pneg %p260
      // Predicated region
      $region9: #{encoder_layer.1} parent=5 // pred_check
        _
      $region10: #{encoder_layer.1} parent=5 // pred_check_branch
        %263 = sbr.rel (%p260) target = $region12
      $region11: #{encoder_layer.1} parent=5 // pred_region
        %s264 = ssub.s32 %s25, 1
        // Predicated region
        $region13: #{encoder_layer.1} parent=11 // pred_check
          %p265 = pneg %p98
        $region14: #{encoder_layer.1} parent=11 // pred_check_branch
          %267 = sbr.rel (%p265) target = $region16
        $region15: #{encoder_layer.1} parent=11 // pred_region
          _
        $region16: #{encoder_layer.1} parent=11 // pred_fallthru
          _
        // Predicated region
        $region17: #{encoder_layer.1} parent=11 // pred_check
          %p268 = pneg %p119
        $region18: #{encoder_layer.1} parent=11 // pred_check_branch
          %270 = sbr.rel (%p268) target = $region20
        $region19: #{encoder_layer.1} parent=11 // pred_region
          %s272 = ssub.s32 192, 192
          %273 = vsyncadd [#allocation6], %s272
          %s274 = sshll.u32 [#allocation7], 4
          %s275 = int_to_ptr.vmem [resolvable:$true] %s274
          %280 = dma.hbm_to_vmem [thread:$0]  %s3, 192, %s275, [#allocation6], 16, 16, 1
        $region20: #{encoder_layer.1} parent=11 // pred_fallthru
          _
        // Predicated region
        $region21: #{encoder_layer.1} parent=11 // pred_check
          %p281 = pneg %p140
        $region22: #{encoder_layer.1} parent=11 // pred_check_branch
          %283 = sbr.rel (%p281) target = $region24
        $region23: #{encoder_layer.1} parent=11 // pred_region
          _
        $region24: #{encoder_layer.1} parent=11 // pred_fallthru
          _
        // Predicated region
        $region25: #{encoder_layer.1} parent=11 // pred_check
          %p284 = pneg %p161
        $region26: #{encoder_layer.1} parent=11 // pred_check_branch
          %286 = sbr.rel (%p284) target = $region28
        $region27: #{encoder_layer.1} parent=11 // pred_region
          %s288 = ssub.s32 512, 512
          %289 = vsyncadd [#allocation9], %s288
          %s290 = sshll.u32 [#allocation8], 4
          %s291 = int_to_ptr.vmem [resolvable:$true] %s290
          %296 = dma.hbm_to_vmem [thread:$0]  %s5, 512, %s291, [#allocation9], 128, 128, 8
        $region28: #{encoder_layer.1} parent=11 // pred_fallthru
          _
        // Predicated region
        $region29: #{encoder_layer.1} parent=11 // pred_check
          %p297 = pneg %p182
        $region30: #{encoder_layer.1} parent=11 // pred_check_branch
          %299 = sbr.rel (%p297) target = $region32
        $region31: #{encoder_layer.1} parent=11 // pred_region
          _
        $region32: #{encoder_layer.1} parent=11 // pred_fallthru
          _
        // Predicated region
        $region33: #{encoder_layer.1} parent=11 // pred_check
          %p300 = pneg %p203
        $region34: #{encoder_layer.1} parent=11 // pred_check_branch
          %302 = sbr.rel (%p300) target = $region36
        $region35: #{encoder_layer.1} parent=11 // pred_region
          _
        $region36: #{encoder_layer.1} parent=11 // pred_fallthru
          _
        // Predicated region
        $region37: #{encoder_layer.1} parent=11 // pred_check
          %p303 = pneg %p224
        $region38: #{encoder_layer.1} parent=11 // pred_check_branch
          %305 = sbr.rel (%p303) target = $region40
        $region39: #{encoder_layer.1} parent=11 // pred_region
          %s307 = ssub.s32 96, 96
          %308 = vsyncadd [#allocation9], %s307
          %s309 = sshll.u32 [#allocation10], 4
          %s310 = int_to_ptr.vmem [resolvable:$true] %s309
          %315 = dma.hbm_to_vmem [thread:$0]  %s8, 96, %s310, [#allocation9], 16, 16, 1
        $region40: #{encoder_layer.1} parent=11 // pred_fallthru
          _
      $region12: #{encoder_layer.1} parent=5 // pred_fallthru
        _
      %p316 = scmp.lt.s32.totalorder %s25, 2
      // Predicated region
      $region41: #{encoder_layer.1} parent=5 // pred_check
        %p317 = pneg %p316
      $region42: #{encoder_layer.1} parent=5 // pred_check_branch
        %319 = sbr.rel (%p317) target = $region44
      $region43: #{encoder_layer.1} parent=5 // pred_region
        // Predicated region
        $region45: #{encoder_layer.1} parent=43 // pred_check
          %p320 = pneg %p45
        $region46: #{encoder_layer.1} parent=43 // pred_check_branch
          %322 = sbr.rel (%p320) target = $region48
        $region47: #{encoder_layer.1} parent=43 // pred_region
          %s323 = sand.u32 %s35, 1
          %s324 = scalar_lea.sflag [#allocation3], %s323
          %s325 = sand.u32 %s35, 1
          %s326 = smul.addr %s325, 8
          %s327 = scalar_lea.vmem [#allocation2], %s326
          %s329 = ssub.s32 128, 128
          %330 = vsyncadd %s324, %s329
          %s331 = smul.addr %s25, 128
          %s332 = scalar_lea.hbm %s0, %s331
          %s334 = sshll.u32 %s327, 4
          %s335 = int_to_ptr.vmem [resolvable:$true] %s334
          %337 = dma.hbm_to_vmem [thread:$0]  %s332, 128, %s335, %s324
        $region48: #{encoder_layer.1} parent=43 // pred_fallthru
          _
        // Predicated region
        $region49: #{encoder_layer.1} parent=43 // pred_check
          %p338 = pneg %p71
        $region50: #{encoder_layer.1} parent=43 // pred_check_branch
          %340 = sbr.rel (%p338) target = $region52
        $region51: #{encoder_layer.1} parent=43 // pred_region
          %s341 = sand.u32 %s25, 1
          %s342 = scalar_lea.sflag [#allocation6], %s341
          %s343 = sand.u32 %s61, 1
          %s344 = smul.addr %s343, 8
          %s345 = scalar_lea.vmem [#allocation5], %s344
          %s347 = ssub.s32 128, 128
          %348 = vsyncadd %s342, %s347
          %s349 = smul.addr %s25, 128
          %s350 = scalar_lea.hbm %s1, %s349
          %s352 = sshll.u32 %s345, 4
          %s353 = int_to_ptr.vmem [resolvable:$true] %s352
          %355 = dma.hbm_to_vmem [thread:$0]  %s350, 128, %s353, %s342
        $region52: #{encoder_layer.1} parent=43 // pred_fallthru
          _
      $region44: #{encoder_layer.1} parent=5 // pred_fallthru
        _
      %p356 = scmp.le.s32.totalorder 1, %s25
      %p357 = scmp.lt.s32.totalorder %s25, 3
      %p358 = pnand %p356, %p357
      %p359 = pneg %p358
      // Predicated region
      $region53: #{encoder_layer.1} parent=5 // pred_check
        _
      $region54: #{encoder_layer.1} parent=5 // pred_check_branch
        %361 = sbr.rel (%p358) target = $region56
      $region55: #{encoder_layer.1} parent=5 // pred_region
        %s362 = ssub.s32 %s25, 1
        %s363 = sand.u32 %s38, 1
        %s364 = scalar_lea.sflag [#allocation3], %s363
        %s365 = sand.u32 %s38, 1
        %s366 = smul.addr %s365, 8
        %s367 = scalar_lea.vmem [#allocation2], %s366
        // Predicated region
        $region57: #{encoder_layer.1} parent=55 // pred_check
          %p368 = pneg %p51
        $region58: #{encoder_layer.1} parent=55 // pred_check_branch
          %370 = sbr.rel (%p368) target = $region60
        $region59: #{encoder_layer.1} parent=55 // pred_region
          %371 = dma.done %s364, 128
        $region60: #{encoder_layer.1} parent=55 // pred_fallthru
          _
        %s372 = sand.u32 %s30, 1
        %s373 = scalar_lea.sflag [#allocation6], %s372
        %s374 = sand.u32 %s64, 1
        %s375 = smul.addr %s374, 8
        %s376 = scalar_lea.vmem [#allocation5], %s375
        // Predicated region
        $region61: #{encoder_layer.1} parent=55 // pred_check
          %p377 = pneg %p77
        $region62: #{encoder_layer.1} parent=55 // pred_check_branch
          %379 = sbr.rel (%p377) target = $region64
        $region63: #{encoder_layer.1} parent=55 // pred_region
          %380 = dma.done %s373, 128
        $region64: #{encoder_layer.1} parent=55 // pred_fallthru
          _
        // Predicated region
        $region65: #{encoder_layer.1} parent=55 // pred_check
          %p381 = pneg %p119
        $region66: #{encoder_layer.1} parent=55 // pred_check_branch
          %383 = sbr.rel (%p381) target = $region68
        $region67: #{encoder_layer.1} parent=55 // pred_region
          %384 = dma.done [#allocation6], 192
        $region68: #{encoder_layer.1} parent=55 // pred_fallthru
          _
        // Predicated region
        $region69: #{encoder_layer.1} parent=55 // pred_check
          %p385 = pneg %p161
        $region70: #{encoder_layer.1} parent=55 // pred_check_branch
          %387 = sbr.rel (%p385) target = $region72
        $region71: #{encoder_layer.1} parent=55 // pred_region
          %388 = dma.done [#allocation9], 512
        $region72: #{encoder_layer.1} parent=55 // pred_fallthru
          _
        // Predicated region
        $region73: #{encoder_layer.1} parent=55 // pred_check
          %p389 = pneg %p224
        $region74: #{encoder_layer.1} parent=55 // pred_check_branch
          %391 = sbr.rel (%p389) target = $region76
        $region75: #{encoder_layer.1} parent=55 // pred_region
          %392 = dma.done [#allocation9], 96
        $region76: #{encoder_layer.1} parent=55 // pred_fallthru
          _
        %s393 = sand.u32 %s38, 1
        %s394 = scalar_lea.sflag [#allocation3], %s393
        %s395 = sand.u32 %s38, 1
        %s396 = smul.addr %s395, 8
        %s397 = scalar_lea.vmem [#allocation2], %s396
        %p398 = pneg %p51
        %p399 = pneg %p48
        %s400 = sand.u32 %s30, 1
        %s401 = scalar_lea.sflag [#allocation6], %s400
        %s402 = sand.u32 %s64, 1
        %s403 = smul.addr %s402, 8
        %s404 = scalar_lea.vmem [#allocation5], %s403
        %p405 = pneg %p77
        %p406 = pneg %p74
        %p407 = pneg %p98
        %p408 = pneg %p95
        %p409 = pneg %p119
        %p410 = pneg %p116
        %p411 = pneg %p140
        %p412 = pneg %p137
        %p413 = pneg %p161
        %p414 = pneg %p158
        %p415 = pneg %p182
        %p416 = pneg %p179
        %p417 = pneg %p203
        %p418 = pneg %p200
        %p419 = pneg %p224
        %p420 = pneg %p221
        %p421 = pneg %p250
        %p422 = pneg %p247
        %s423 = sand.u32 %s237, 1
        %s424 = scalar_lea.sflag [#allocation4], %s423
        %s425 = sand.u32 %s237, 1
        %s426 = smul.addr %s425, 8
        %s427 = scalar_lea.vmem [#allocation11], %s426
        %v428 = vld [vmem:[#allocation10] sm:$0x1]
        %v429 = vld [vmem:[#allocation10 + $0x1] sm:$0x1]
        %v430 = vld [vmem:[#allocation10 + $0x2] sm:$0x1]
        %v431 = vld [vmem:[#allocation10 + $0x3] sm:$0x1]
        %v432 = vld [vmem:[#allocation10 + $0x4] sm:$0x1]
        %v433 = vld [vmem:[#allocation10 + $0x5] sm:$0x1]
        %v434 = vld [vmem:[%s367] sm:$0xff]
        %v435 = vld [vmem:[%s376] sm:$0xff]
        %v436 = vadd.f32 %v434, %v435
        %v437 = vld [vmem:[%s2] sm:$0xff]
        %v438 = vld [vmem:[#allocation7] sm:$0x1]
        %v440 = vlaneseq
        %v441 = vshrl.u32 %v440, 7
        %v442 = vsub.s32 0, %v441
        %v443 = vrot.slane %v438, %v442
        %vm445 = vcmask 261120
        %v447 = vsel %vm445, %v436, 0
        %v450 = vsel %vm445, %v437, 0
        %452 = vmatprep.subr.mxu0 0.0
        %453 = vmatpush1.xpose.msra.mxu0 %v450
        %454 = vmatprep.subr.mxu0 0.0
        %455 = vmatpush1.xpose.msra.mxu0 0.0
        %456 = vmatprep.subr.mxu0 0.0
        %457 = vmatpush1.xpose.msra.mxu0 0.0
        %458 = vmatprep.subr.mxu0 0.0
        %459 = vmatpush1.xpose.msra.mxu0 0.0
        %460 = vmatprep.subr.mxu0 0.0
        %461 = vmatpush1.xpose.msra.mxu0 0.0
        %462 = vmatprep.subr.mxu0 0.0
        %463 = vmatpush1.xpose.msra.mxu0 0.0
        %464 = vmatprep.subr.mxu0 0.0
        %465 = vmatpush1.xpose.msra.mxu0 0.0
        %466 = vmatprep.subr.mxu0 0.0
        %467 = vmatpush1.xpose.msra.mxu0 0.0
        %468 = vmatprep.subr.mxu0 0.0
        %469 = vmatpush1.xpose.msra.mxu0 0.0
        %470 = vmatprep.subr.mxu0 0.0
        %471 = vmatpush1.xpose.msra.mxu0 0.0
        %472 = vmatprep.subr.mxu0 0.0
        %473 = vmatpush1.xpose.msra.mxu0 0.0
        %474 = vmatprep.subr.mxu0 0.0
        %475 = vmatpush1.xpose.msra.mxu0 0.0
        %476 = vmatprep.subr.mxu0 0.0
        %477 = vmatpush1.xpose.msra.mxu0 0.0
        %478 = vmatprep.subr.mxu0 0.0
        %479 = vmatpush1.xpose.msra.mxu0 0.0
        %480 = vmatprep.subr.mxu0 0.0
        %481 = vmatpush1.xpose.msra.mxu0 0.0
        %482 = vmatprep.subr.mxu0 0.0
        %483 = vmatpush1.xpose.msra.mxu0 0.0
        %484 = vmatprep.subr.mxu0 0.0
        %485 = vmatpush1.xpose.msra.mxu0 0.0
        %486 = vmatprep.subr.mxu0 0.0
        %487 = vmatpush1.xpose.msra.mxu0 0.0
        %488 = vmatprep.subr.mxu0 0.0
        %489 = vmatpush1.xpose.msra.mxu0 0.0
        %490 = vmatprep.subr.mxu0 0.0
        %491 = vmatpush1.xpose.msra.mxu0 0.0
        %492 = vmatprep.subr.mxu0 0.0
        %493 = vmatpush1.xpose.msra.mxu0 0.0
        %494 = vmatprep.subr.mxu0 0.0
        %495 = vmatpush1.xpose.msra.mxu0 0.0
        %496 = vmatprep.subr.mxu0 0.0
        %497 = vmatpush1.xpose.msra.mxu0 0.0
        %498 = vmatprep.subr.mxu0 0.0
        %499 = vmatpush1.xpose.msra.mxu0 0.0
        %500 = vmatprep.subr.mxu0 0.0
        %501 = vmatpush1.xpose.msra.mxu0 0.0
        %502 = vmatprep.subr.mxu0 0.0
        %503 = vmatpush1.xpose.msra.mxu0 0.0
        %504 = vmatprep.subr.mxu0 0.0
        %505 = vmatpush1.xpose.msra.mxu0 0.0
        %506 = vmatprep.subr.mxu0 0.0
        %507 = vmatpush1.xpose.msra.mxu0 0.0
        %508 = vmatprep.subr.mxu0 0.0
        %509 = vmatpush1.xpose.msra.mxu0 0.0
        %510 = vmatprep.subr.mxu0 0.0
        %511 = vmatpush1.xpose.msra.mxu0 0.0
        %512 = vmatprep.subr.mxu0 0.0
        %513 = vmatpush1.xpose.msra.mxu0 0.0
        %514 = vmatprep.subr.mxu0 0.0
        %515 = vmatpush1.xpose.msra.mxu0 0.0
        %516 = vmatprep.mubr.f32.mxu0 0.0
        %517 = vmatmul.mubr.f32.gmra.mrb[0].mxu0 %v447
        %v518 = vpop.f32.mrb[0].mxu0
        %v519 = vadd.f32 %v443, %v518
        %v520 = vpop.f32.mrb[0].mxu0
        %521 = vdwg.mxu0
        %s522 = scalar_lea.vmem %s2, 32
        %v523 = vld [vmem:[%s522] sm:$0xff]
        %s524 = scalar_lea.vmem [#allocation7], 4
        %v525 = vld [vmem:[%s524] sm:$0x1]
        %v527 = vlaneseq
        %v528 = vshrl.u32 %v527, 7
        %v529 = vsub.s32 0, %v528
        %v530 = vrot.slane %v525, %v529
        %v533 = vsel %vm445, %v523, 0
        %535 = vmatprep.subr.mxu0 0.0
        %536 = vmatpush1.xpose.msra.mxu0 %v533
        %537 = vmatprep.subr.mxu0 0.0
        %538 = vmatpush1.xpose.msra.mxu0 0.0
        %539 = vmatprep.subr.mxu0 0.0
        %540 = vmatpush1.xpose.msra.mxu0 0.0
        %541 = vmatprep.subr.mxu0 0.0
        %542 = vmatpush1.xpose.msra.mxu0 0.0
        %543 = vmatprep.subr.mxu0 0.0
        %544 = vmatpush1.xpose.msra.mxu0 0.0
        %545 = vmatprep.subr.mxu0 0.0
        %546 = vmatpush1.xpose.msra.mxu0 0.0
        %547 = vmatprep.subr.mxu0 0.0
        %548 = vmatpush1.xpose.msra.mxu0 0.0
        %549 = vmatprep.subr.mxu0 0.0
        %550 = vmatpush1.xpose.msra.mxu0 0.0
        %551 = vmatprep.subr.mxu0 0.0
        %552 = vmatpush1.xpose.msra.mxu0 0.0
        %553 = vmatprep.subr.mxu0 0.0
        %554 = vmatpush1.xpose.msra.mxu0 0.0
        %555 = vmatprep.subr.mxu0 0.0
        %556 = vmatpush1.xpose.msra.mxu0 0.0
        %557 = vmatprep.subr.mxu0 0.0
        %558 = vmatpush1.xpose.msra.mxu0 0.0
        %559 = vmatprep.subr.mxu0 0.0
        %560 = vmatpush1.xpose.msra.mxu0 0.0
        %561 = vmatprep.subr.mxu0 0.0
        %562 = vmatpush1.xpose.msra.mxu0 0.0
        %563 = vmatprep.subr.mxu0 0.0
        %564 = vmatpush1.xpose.msra.mxu0 0.0
        %565 = vmatprep.subr.mxu0 0.0
        %566 = vmatpush1.xpose.msra.mxu0 0.0
        %567 = vmatprep.subr.mxu0 0.0
        %568 = vmatpush1.xpose.msra.mxu0 0.0
        %569 = vmatprep.subr.mxu0 0.0
        %570 = vmatpush1.xpose.msra.mxu0 0.0
        %571 = vmatprep.subr.mxu0 0.0
        %572 = vmatpush1.xpose.msra.mxu0 0.0
        %573 = vmatprep.subr.mxu0 0.0
        %574 = vmatpush1.xpose.msra.mxu0 0.0
        %575 = vmatprep.subr.mxu0 0.0
        %576 = vmatpush1.xpose.msra.mxu0 0.0
        %577 = vmatprep.subr.mxu0 0.0
        %578 = vmatpush1.xpose.msra.mxu0 0.0
        %579 = vmatprep.subr.mxu0 0.0
        %580 = vmatpush1.xpose.msra.mxu0 0.0
        %581 = vmatprep.subr.mxu0 0.0
        %582 = vmatpush1.xpose.msra.mxu0 0.0
        %583 = vmatprep.subr.mxu0 0.0
        %584 = vmatpush1.xpose.msra.mxu0 0.0
        %585 = vmatprep.subr.mxu0 0.0
        %586 = vmatpush1.xpose.msra.mxu0 0.0
        %587 = vmatprep.subr.mxu0 0.0
        %588 = vmatpush1.xpose.msra.mxu0 0.0
        %589 = vmatprep.subr.mxu0 0.0
        %590 = vmatpush1.xpose.msra.mxu0 0.0
        %591 = vmatprep.subr.mxu0 0.0
        %592 = vmatpush1.xpose.msra.mxu0 0.0
        %593 = vmatprep.subr.mxu0 0.0
        %594 = vmatpush1.xpose.msra.mxu0 0.0
        %595 = vmatprep.subr.mxu0 0.0
        %596 = vmatpush1.xpose.msra.mxu0 0.0
        %597 = vmatprep.subr.mxu0 0.0
        %598 = vmatpush1.xpose.msra.mxu0 0.0
        %599 = vmatprep.mubr.f32.mxu0 0.0
        %600 = vmatmul.mubr.f32.gmra.mrb[0].mxu0 %v447
        %v601 = vpop.f32.mrb[0].mxu0
        %v602 = vadd.f32 %v530, %v601
        %v603 = vpop.f32.mrb[0].mxu0
        %604 = vdwg.mxu0
        %s605 = scalar_lea.vmem %s2, 64
        %v606 = vld [vmem:[%s605] sm:$0xff]
        %s607 = scalar_lea.vmem [#allocation7], 8
        %v608 = vld [vmem:[%s607] sm:$0x1]
        %v610 = vlaneseq
        %v611 = vshrl.u32 %v610, 7
        %v612 = vsub.s32 0, %v611
        %v613 = vrot.slane %v608, %v612
        %v616 = vsel %vm445, %v606, 0
        %618 = vmatprep.subr.mxu0 0.0
        %619 = vmatpush1.xpose.msra.mxu0 %v616
        %620 = vmatprep.subr.mxu0 0.0
        %621 = vmatpush1.xpose.msra.mxu0 0.0
        %622 = vmatprep.subr.mxu0 0.0
        %623 = vmatpush1.xpose.msra.mxu0 0.0
        %624 = vmatprep.subr.mxu0 0.0
        %625 = vmatpush1.xpose.msra.mxu0 0.0
        %626 = vmatprep.subr.mxu0 0.0
        %627 = vmatpush1.xpose.msra.mxu0 0.0
        %628 = vmatprep.subr.mxu0 0.0
        %629 = vmatpush1.xpose.msra.mxu0 0.0
        %630 = vmatprep.subr.mxu0 0.0
        %631 = vmatpush1.xpose.msra.mxu0 0.0
        %632 = vmatprep.subr.mxu0 0.0
        %633 = vmatpush1.xpose.msra.mxu0 0.0
        %634 = vmatprep.subr.mxu0 0.0
        %635 = vmatpush1.xpose.msra.mxu0 0.0
        %636 = vmatprep.subr.mxu0 0.0
        %637 = vmatpush1.xpose.msra.mxu0 0.0
        %638 = vmatprep.subr.mxu0 0.0
        %639 = vmatpush1.xpose.msra.mxu0 0.0
        %640 = vmatprep.subr.mxu0 0.0
        %641 = vmatpush1.xpose.msra.mxu0 0.0
        %642 = vmatprep.subr.mxu0 0.0
        %643 = vmatpush1.xpose.msra.mxu0 0.0
        %644 = vmatprep.subr.mxu0 0.0
        %645 = vmatpush1.xpose.msra.mxu0 0.0
        %646 = vmatprep.subr.mxu0 0.0
        %647 = vmatpush1.xpose.msra.mxu0 0.0
        %648 = vmatprep.subr.mxu0 0.0
        %649 = vmatpush1.xpose.msra.mxu0 0.0
        %650 = vmatprep.subr.mxu0 0.0
        %651 = vmatpush1.xpose.msra.mxu0 0.0
        %652 = vmatprep.subr.mxu0 0.0
        %653 = vmatpush1.xpose.msra.mxu0 0.0
        %654 = vmatprep.subr.mxu0 0.0
        %655 = vmatpush1.xpose.msra.mxu0 0.0
        %656 = vmatprep.subr.mxu0 0.0
        %657 = vmatpush1.xpose.msra.mxu0 0.0
        %658 = vmatprep.subr.mxu0 0.0
        %659 = vmatpush1.xpose.msra.mxu0 0.0
        %660 = vmatprep.subr.mxu0 0.0
        %661 = vmatpush1.xpose.msra.mxu0 0.0
        %662 = vmatprep.subr.mxu0 0.0
        %663 = vmatpush1.xpose.msra.mxu0 0.0
        %664 = vmatprep.subr.mxu0 0.0
        %665 = vmatpush1.xpose.msra.mxu0 0.0
        %666 = vmatprep.subr.mxu0 0.0
        %667 = vmatpush1.xpose.msra.mxu0 0.0
        %668 = vmatprep.subr.mxu0 0.0
        %669 = vmatpush1.xpose.msra.mxu0 0.0
        %670 = vmatprep.subr.mxu0 0.0
        %671 = vmatpush1.xpose.msra.mxu0 0.0
        %672 = vmatprep.subr.mxu0 0.0
        %673 = vmatpush1.xpose.msra.mxu0 0.0
        %674 = vmatprep.subr.mxu0 0.0
        %675 = vmatpush1.xpose.msra.mxu0 0.0
        %676 = vmatprep.subr.mxu0 0.0
        %677 = vmatpush1.xpose.msra.mxu0 0.0
        %678 = vmatprep.subr.mxu0 0.0
        %679 = vmatpush1.xpose.msra.mxu0 0.0
        %680 = vmatprep.subr.mxu0 0.0
        %681 = vmatpush1.xpose.msra.mxu0 0.0
        %682 = vmatprep.mubr.f32.mxu0 0.0
        %683 = vmatmul.mubr.f32.gmra.mrb[0].mxu0 %v447
        %v684 = vpop.f32.mrb[0].mxu0
        %v685 = vadd.f32 %v613, %v684
        %v686 = vpop.f32.mrb[0].mxu0
        %687 = vdwg.mxu0
        %vm688 = vcmask 64512
        %v690 = vsel %vm688, %v519, 0
        %v693 = vsel %vm688, %v602, 0
        %695 = vmatprep.subr.mxu0 0.0
        %696 = vmatpush1.xpose.msra.mxu0 %v693
        %697 = vmatprep.subr.mxu0 0.0
        %698 = vmatpush1.xpose.msra.mxu0 0.0
        %699 = vmatprep.subr.mxu0 0.0
        %700 = vmatpush1.xpose.msra.mxu0 0.0
        %701 = vmatprep.subr.mxu0 0.0
        %702 = vmatpush1.xpose.msra.mxu0 0.0
        %703 = vmatprep.subr.mxu0 0.0
        %704 = vmatpush1.xpose.msra.mxu0 0.0
        %705 = vmatprep.subr.mxu0 0.0
        %706 = vmatpush1.xpose.msra.mxu0 0.0
        %707 = vmatprep.subr.mxu0 0.0
        %708 = vmatpush1.xpose.msra.mxu0 0.0
        %709 = vmatprep.subr.mxu0 0.0
        %710 = vmatpush1.xpose.msra.mxu0 0.0
        %711 = vmatprep.subr.mxu0 0.0
        %712 = vmatpush1.xpose.msra.mxu0 0.0
        %713 = vmatprep.subr.mxu0 0.0
        %714 = vmatpush1.xpose.msra.mxu0 0.0
        %715 = vmatprep.subr.mxu0 0.0
        %716 = vmatpush1.xpose.msra.mxu0 0.0
        %717 = vmatprep.subr.mxu0 0.0
        %718 = vmatpush1.xpose.msra.mxu0 0.0
        %719 = vmatprep.subr.mxu0 0.0
        %720 = vmatpush1.xpose.msra.mxu0 0.0
        %721 = vmatprep.subr.mxu0 0.0
        %722 = vmatpush1.xpose.msra.mxu0 0.0
        %723 = vmatprep.subr.mxu0 0.0
        %724 = vmatpush1.xpose.msra.mxu0 0.0
        %725 = vmatprep.subr.mxu0 0.0
        %726 = vmatpush1.xpose.msra.mxu0 0.0
        %727 = vmatprep.subr.mxu0 0.0
        %728 = vmatpush1.xpose.msra.mxu0 0.0
        %729 = vmatprep.subr.mxu0 0.0
        %730 = vmatpush1.xpose.msra.mxu0 0.0
        %731 = vmatprep.subr.mxu0 0.0
        %732 = vmatpush1.xpose.msra.mxu0 0.0
        %733 = vmatprep.subr.mxu0 0.0
        %734 = vmatpush1.xpose.msra.mxu0 0.0
        %735 = vmatprep.subr.mxu0 0.0
        %736 = vmatpush1.xpose.msra.mxu0 0.0
        %737 = vmatprep.subr.mxu0 0.0
        %738 = vmatpush1.xpose.msra.mxu0 0.0
        %739 = vmatprep.subr.mxu0 0.0
        %740 = vmatpush1.xpose.msra.mxu0 0.0
        %741 = vmatprep.subr.mxu0 0.0
        %742 = vmatpush1.xpose.msra.mxu0 0.0
        %743 = vmatprep.subr.mxu0 0.0
        %744 = vmatpush1.xpose.msra.mxu0 0.0
        %745 = vmatprep.subr.mxu0 0.0
        %746 = vmatpush1.xpose.msra.mxu0 0.0
        %747 = vmatprep.subr.mxu0 0.0
        %748 = vmatpush1.xpose.msra.mxu0 0.0
        %749 = vmatprep.subr.mxu0 0.0
        %750 = vmatpush1.xpose.msra.mxu0 0.0
        %751 = vmatprep.subr.mxu0 0.0
        %752 = vmatpush1.xpose.msra.mxu0 0.0
        %753 = vmatprep.subr.mxu0 0.0
        %754 = vmatpush1.xpose.msra.mxu0 0.0
        %755 = vmatprep.subr.mxu0 0.0
        %756 = vmatpush1.xpose.msra.mxu0 0.0
        %757 = vmatprep.subr.mxu0 0.0
        %758 = vmatpush1.xpose.msra.mxu0 0.0
        %759 = vmatprep.mubr.f32.mxu0 0.0
        %760 = vmatmul.mubr.f32.gmra.mrb[0].mxu0 %v690
        %v761 = vpop.f32.mrb[0].mxu0
        %v762 = vadd.f32 0.0, %v761
        %v763 = vpop.f32.mrb[0].mxu0
        %764 = vdwg.mxu0
        %v765 = vsel %vm688, %v762, -inf
        %766 = vmax.xlane.f32.xlu0 %v765
        %v767 = vpop.xlane.xlu0 %766
        %v768 = vsub.f32 %v762, %v767
        %v769 = vmul.f32 %v768, 1.442695
        %v770 = vpow.pop %v769
        %v771 = vsel %vm688, %v770, 0.0
        %772 = vadd.xlane.f32.xlu0 %v771
        %v773 = vpop.xlane.xlu0 %772
        %v774 = vrcp.pop %v773
        %v775 = vmul.f32 %v770, %v774
        %v777 = vsel %vm688, %v775, 0
        %779 = vmatprep.subr.mxu0 0.0
        %780 = vmatpush1.msra.mxu0 %v685
        %781 = vmatprep.subr.mxu0 0.0
        %782 = vmatpush1.msra.mxu0 0.0
        %783 = vmatprep.subr.mxu0 0.0
        %784 = vmatpush1.msra.mxu0 0.0
        %785 = vmatprep.subr.mxu0 0.0
        %786 = vmatpush1.msra.mxu0 0.0
        %787 = vmatprep.subr.mxu0 0.0
        %788 = vmatpush1.msra.mxu0 0.0
        %789 = vmatprep.subr.mxu0 0.0
        %790 = vmatpush1.msra.mxu0 0.0
        %791 = vmatprep.subr.mxu0 0.0
        %792 = vmatpush1.msra.mxu0 0.0
        %793 = vmatprep.subr.mxu0 0.0
        %794 = vmatpush1.msra.mxu0 0.0
        %795 = vmatprep.subr.mxu0 0.0
        %796 = vmatpush1.msra.mxu0 0.0
        %797 = vmatprep.subr.mxu0 0.0
        %798 = vmatpush1.msra.mxu0 0.0
        %799 = vmatprep.subr.mxu0 0.0
        %800 = vmatpush1.msra.mxu0 0.0
        %801 = vmatprep.subr.mxu0 0.0
        %802 = vmatpush1.msra.mxu0 0.0
        %803 = vmatprep.subr.mxu0 0.0
        %804 = vmatpush1.msra.mxu0 0.0
        %805 = vmatprep.subr.mxu0 0.0
        %806 = vmatpush1.msra.mxu0 0.0
        %807 = vmatprep.subr.mxu0 0.0
        %808 = vmatpush1.msra.mxu0 0.0
        %809 = vmatprep.subr.mxu0 0.0
        %810 = vmatpush1.msra.mxu0 0.0
        %811 = vmatprep.subr.mxu0 0.0
        %812 = vmatpush1.msra.mxu0 0.0
        %813 = vmatprep.subr.mxu0 0.0
        %814 = vmatpush1.msra.mxu0 0.0
        %815 = vmatprep.subr.mxu0 0.0
        %816 = vmatpush1.msra.mxu0 0.0
        %817 = vmatprep.subr.mxu0 0.0
        %818 = vmatpush1.msra.mxu0 0.0
        %819 = vmatprep.subr.mxu0 0.0
        %820 = vmatpush1.msra.mxu0 0.0
        %821 = vmatprep.subr.mxu0 0.0
        %822 = vmatpush1.msra.mxu0 0.0
        %823 = vmatprep.subr.mxu0 0.0
        %824 = vmatpush1.msra.mxu0 0.0
        %825 = vmatprep.subr.mxu0 0.0
        %826 = vmatpush1.msra.mxu0 0.0
        %827 = vmatprep.subr.mxu0 0.0
        %828 = vmatpush1.msra.mxu0 0.0
        %829 = vmatprep.subr.mxu0 0.0
        %830 = vmatpush1.msra.mxu0 0.0
        %831 = vmatprep.subr.mxu0 0.0
        %832 = vmatpush1.msra.mxu0 0.0
        %833 = vmatprep.subr.mxu0 0.0
        %834 = vmatpush1.msra.mxu0 0.0
        %835 = vmatprep.subr.mxu0 0.0
        %836 = vmatpush1.msra.mxu0 0.0
        %837 = vmatprep.subr.mxu0 0.0
        %838 = vmatpush1.msra.mxu0 0.0
        %839 = vmatprep.subr.mxu0 0.0
        %840 = vmatpush1.msra.mxu0 0.0
        %841 = vmatprep.subr.mxu0 0.0
        %842 = vmatpush1.msra.mxu0 0.0
        %843 = vmatprep.mubr.f32.mxu0 0.0
        %844 = vmatmul.mubr.f32.gmra.mrb[0].mxu0 %v777
        %v845 = vpop.f32.mrb[0].mxu0
        %v846 = vadd.f32 0.0, %v845
        %v847 = vpop.f32.mrb[0].mxu0
        %848 = vdwg.mxu0
        %v849 = vld [vmem:[%s4] sm:$0xff]
        %s850 = scalar_lea.vmem %s2, 8
        %v851 = vld [vmem:[%s850] sm:$0xff]
        %s852 = scalar_lea.vmem [#allocation7], 1
        %v853 = vld [vmem:[%s852] sm:$0x1]
        %v855 = vlaneseq
        %v856 = vshrl.u32 %v855, 7
        %v857 = vsub.s32 0, %v856
        %v858 = vrot.slane %v853, %v857
        %v861 = vsel %vm445, %v851, 0
        %863 = vmatprep.subr.mxu0 0.0
        %864 = vmatpush1.xpose.msra.mxu0 %v861
        %865 = vmatprep.subr.mxu0 0.0
        %866 = vmatpush1.xpose.msra.mxu0 0.0
        %867 = vmatprep.subr.mxu0 0.0
        %868 = vmatpush1.xpose.msra.mxu0 0.0
        %869 = vmatprep.subr.mxu0 0.0
        %870 = vmatpush1.xpose.msra.mxu0 0.0
        %871 = vmatprep.subr.mxu0 0.0
        %872 = vmatpush1.xpose.msra.mxu0 0.0
        %873 = vmatprep.subr.mxu0 0.0
        %874 = vmatpush1.xpose.msra.mxu0 0.0
        %875 = vmatprep.subr.mxu0 0.0
        %876 = vmatpush1.xpose.msra.mxu0 0.0
        %877 = vmatprep.subr.mxu0 0.0
        %878 = vmatpush1.xpose.msra.mxu0 0.0
        %879 = vmatprep.subr.mxu0 0.0
        %880 = vmatpush1.xpose.msra.mxu0 0.0
        %881 = vmatprep.subr.mxu0 0.0
        %882 = vmatpush1.xpose.msra.mxu0 0.0
        %883 = vmatprep.subr.mxu0 0.0
        %884 = vmatpush1.xpose.msra.mxu0 0.0
        %885 = vmatprep.subr.mxu0 0.0
        %886 = vmatpush1.xpose.msra.mxu0 0.0
        %887 = vmatprep.subr.mxu0 0.0
        %888 = vmatpush1.xpose.msra.mxu0 0.0
        %889 = vmatprep.subr.mxu0 0.0
        %890 = vmatpush1.xpose.msra.mxu0 0.0
        %891 = vmatprep.subr.mxu0 0.0
        %892 = vmatpush1.xpose.msra.mxu0 0.0
        %893 = vmatprep.subr.mxu0 0.0
        %894 = vmatpush1.xpose.msra.mxu0 0.0
        %895 = vmatprep.subr.mxu0 0.0
        %896 = vmatpush1.xpose.msra.mxu0 0.0
        %897 = vmatprep.subr.mxu0 0.0
        %898 = vmatpush1.xpose.msra.mxu0 0.0
        %899 = vmatprep.subr.mxu0 0.0
        %900 = vmatpush1.xpose.msra.mxu0 0.0
        %901 = vmatprep.subr.mxu0 0.0
        %902 = vmatpush1.xpose.msra.mxu0 0.0
        %903 = vmatprep.subr.mxu0 0.0
        %904 = vmatpush1.xpose.msra.mxu0 0.0
        %905 = vmatprep.subr.mxu0 0.0
        %906 = vmatpush1.xpose.msra.mxu0 0.0
        %907 = vmatprep.subr.mxu0 0.0
        %908 = vmatpush1.xpose.msra.mxu0 0.0
        %909 = vmatprep.subr.mxu0 0.0
        %910 = vmatpush1.xpose.msra.mxu0 0.0
        %911 = vmatprep.subr.mxu0 0.0
        %912 = vmatpush1.xpose.msra.mxu0 0.0
        %913 = vmatprep.subr.mxu0 0.0
        %914 = vmatpush1.xpose.msra.mxu0 0.0
        %915 = vmatprep.subr.mxu0 0.0
        %916 = vmatpush1.xpose.msra.mxu0 0.0
        %917 = vmatprep.subr.mxu0 0.0
        %918 = vmatpush1.xpose.msra.mxu0 0.0
        %919 = vmatprep.subr.mxu0 0.0
        %920 = vmatpush1.xpose.msra.mxu0 0.0
        %921 = vmatprep.subr.mxu0 0.0
        %922 = vmatpush1.xpose.msra.mxu0 0.0
        %923 = vmatprep.subr.mxu0 0.0
        %924 = vmatpush1.xpose.msra.mxu0 0.0
        %925 = vmatprep.subr.mxu0 0.0
        %926 = vmatpush1.xpose.msra.mxu0 0.0
        %927 = vmatprep.mubr.f32.mxu0 0.0
        %928 = vmatmul.mubr.f32.gmra.mrb[0].mxu0 %v447
        %v929 = vpop.f32.mrb[0].mxu0
        %v930 = vadd.f32 %v858, %v929
        %v931 = vpop.f32.mrb[0].mxu0
        %932 = vdwg.mxu0
        %s933 = scalar_lea.vmem %s2, 40
        %v934 = vld [vmem:[%s933] sm:$0xff]
        %s935 = scalar_lea.vmem [#allocation7], 5
        %v936 = vld [vmem:[%s935] sm:$0x1]
        %v938 = vlaneseq
        %v939 = vshrl.u32 %v938, 7
        %v940 = vsub.s32 0, %v939
        %v941 = vrot.slane %v936, %v940
        %v944 = vsel %vm445, %v934, 0
        %946 = vmatprep.subr.mxu0 0.0
        %947 = vmatpush1.xpose.msra.mxu0 %v944
        %948 = vmatprep.subr.mxu0 0.0
        %949 = vmatpush1.xpose.msra.mxu0 0.0
        %950 = vmatprep.subr.mxu0 0.0
        %951 = vmatpush1.xpose.msra.mxu0 0.0
        %952 = vmatprep.subr.mxu0 0.0
        %953 = vmatpush1.xpose.msra.mxu0 0.0
        %954 = vmatprep.subr.mxu0 0.0
        %955 = vmatpush1.xpose.msra.mxu0 0.0
        %956 = vmatprep.subr.mxu0 0.0
        %957 = vmatpush1.xpose.msra.mxu0 0.0
        %958 = vmatprep.subr.mxu0 0.0
        %959 = vmatpush1.xpose.msra.mxu0 0.0
        %960 = vmatprep.subr.mxu0 0.0
        %961 = vmatpush1.xpose.msra.mxu0 0.0
        %962 = vmatprep.subr.mxu0 0.0
        %963 = vmatpush1.xpose.msra.mxu0 0.0
        %964 = vmatprep.subr.mxu0 0.0
        %965 = vmatpush1.xpose.msra.mxu0 0.0
        %966 = vmatprep.subr.mxu0 0.0
        %967 = vmatpush1.xpose.msra.mxu0 0.0
        %968 = vmatprep.subr.mxu0 0.0
        %969 = vmatpush1.xpose.msra.mxu0 0.0
        %970 = vmatprep.subr.mxu0 0.0
        %971 = vmatpush1.xpose.msra.mxu0 0.0
        %972 = vmatprep.subr.mxu0 0.0
        %973 = vmatpush1.xpose.msra.mxu0 0.0
        %974 = vmatprep.subr.mxu0 0.0
        %975 = vmatpush1.xpose.msra.mxu0 0.0
        %976 = vmatprep.subr.mxu0 0.0
        %977 = vmatpush1.xpose.msra.mxu0 0.0
        %978 = vmatprep.subr.mxu0 0.0
        %979 = vmatpush1.xpose.msra.mxu0 0.0
        %980 = vmatprep.subr.mxu0 0.0
        %981 = vmatpush1.xpose.msra.mxu0 0.0
        %982 = vmatprep.subr.mxu0 0.0
        %983 = vmatpush1.xpose.msra.mxu0 0.0
        %984 = vmatprep.subr.mxu0 0.0
        %985 = vmatpush1.xpose.msra.mxu0 0.0
        %986 = vmatprep.subr.mxu0 0.0
        %987 = vmatpush1.xpose.msra.mxu0 0.0
        %988 = vmatprep.subr.mxu0 0.0
        %989 = vmatpush1.xpose.msra.mxu0 0.0
        %990 = vmatprep.subr.mxu0 0.0
        %991 = vmatpush1.xpose.msra.mxu0 0.0
        %992 = vmatprep.subr.mxu0 0.0
        %993 = vmatpush1.xpose.msra.mxu0 0.0
        %994 = vmatprep.subr.mxu0 0.0
        %995 = vmatpush1.xpose.msra.mxu0 0.0
        %996 = vmatprep.subr.mxu0 0.0
        %997 = vmatpush1.xpose.msra.mxu0 0.0
        %998 = vmatprep.subr.mxu0 0.0
        %999 = vmatpush1.xpose.msra.mxu0 0.0
        %1000 = vmatprep.subr.mxu0 0.0
        %1001 = vmatpush1.xpose.msra.mxu0 0.0
        %1002 = vmatprep.subr.mxu0 0.0
        %1003 = vmatpush1.xpose.msra.mxu0 0.0
        %1004 = vmatprep.subr.mxu0 0.0
        %1005 = vmatpush1.xpose.msra.mxu0 0.0
        %1006 = vmatprep.subr.mxu0 0.0
        %1007 = vmatpush1.xpose.msra.mxu0 0.0
        %1008 = vmatprep.subr.mxu0 0.0
        %1009 = vmatpush1.xpose.msra.mxu0 0.0
        %1010 = vmatprep.mubr.f32.mxu0 0.0
        %1011 = vmatmul.mubr.f32.gmra.mrb[0].mxu0 %v447
        %v1012 = vpop.f32.mrb[0].mxu0
        %v1013 = vadd.f32 %v941, %v1012
        %v1014 = vpop.f32.mrb[0].mxu0
        %1015 = vdwg.mxu0
        %s1016 = scalar_lea.vmem %s2, 72
        %v1017 = vld [vmem:[%s1016] sm:$0xff]
        %s1018 = scalar_lea.vmem [#allocation7], 9
        %v1019 = vld [vmem:[%s1018] sm:$0x1]
        %v1021 = vlaneseq
        %v1022 = vshrl.u32 %v1021, 7
        %v1023 = vsub.s32 0, %v1022
        %v1024 = vrot.slane %v1019, %v1023
        %v1027 = vsel %vm445, %v1017, 0
        %1029 = vmatprep.subr.mxu0 0.0
        %1030 = vmatpush1.xpose.msra.mxu0 %v1027
        %1031 = vmatprep.subr.mxu0 0.0
        %1032 = vmatpush1.xpose.msra.mxu0 0.0
        %1033 = vmatprep.subr.mxu0 0.0
        %1034 = vmatpush1.xpose.msra.mxu0 0.0
        %1035 = vmatprep.subr.mxu0 0.0
        %1036 = vmatpush1.xpose.msra.mxu0 0.0
        %1037 = vmatprep.subr.mxu0 0.0
        %1038 = vmatpush1.xpose.msra.mxu0 0.0
        %1039 = vmatprep.subr.mxu0 0.0
        %1040 = vmatpush1.xpose.msra.mxu0 0.0
        %1041 = vmatprep.subr.mxu0 0.0
        %1042 = vmatpush1.xpose.msra.mxu0 0.0
        %1043 = vmatprep.subr.mxu0 0.0
        %1044 = vmatpush1.xpose.msra.mxu0 0.0
        %1045 = vmatprep.subr.mxu0 0.0
        %1046 = vmatpush1.xpose.msra.mxu0 0.0
        %1047 = vmatprep.subr.mxu0 0.0
        %1048 = vmatpush1.xpose.msra.mxu0 0.0
        %1049 = vmatprep.subr.mxu0 0.0
        %1050 = vmatpush1.xpose.msra.mxu0 0.0
        %1051 = vmatprep.subr.mxu0 0.0
        %1052 = vmatpush1.xpose.msra.mxu0 0.0
        %1053 = vmatprep.subr.mxu0 0.0
        %1054 = vmatpush1.xpose.msra.mxu0 0.0
        %1055 = vmatprep.subr.mxu0 0.0
        %1056 = vmatpush1.xpose.msra.mxu0 0.0
        %1057 = vmatprep.subr.mxu0 0.0
        %1058 = vmatpush1.xpose.msra.mxu0 0.0
        %1059 = vmatprep.subr.mxu0 0.0
        %1060 = vmatpush1.xpose.msra.mxu0 0.0
        %1061 = vmatprep.subr.mxu0 0.0
        %1062 = vmatpush1.xpose.msra.mxu0 0.0
        %1063 = vmatprep.subr.mxu0 0.0
        %1064 = vmatpush1.xpose.msra.mxu0 0.0
        %1065 = vmatprep.subr.mxu0 0.0
        %1066 = vmatpush1.xpose.msra.mxu0 0.0
        %1067 = vmatprep.subr.mxu0 0.0
        %1068 = vmatpush1.xpose.msra.mxu0 0.0
        %1069 = vmatprep.subr.mxu0 0.0
        %1070 = vmatpush1.xpose.msra.mxu0 0.0
        %1071 = vmatprep.subr.mxu0 0.0
        %1072 = vmatpush1.xpose.msra.mxu0 0.0
        %1073 = vmatprep.subr.mxu0 0.0
        %1074 = vmatpush1.xpose.msra.mxu0 0.0
        %1075 = vmatprep.subr.mxu0 0.0
        %1076 = vmatpush1.xpose.msra.mxu0 0.0
        %1077 = vmatprep.subr.mxu0 0.0
        %1078 = vmatpush1.xpose.msra.mxu0 0.0
        %1079 = vmatprep.subr.mxu0 0.0
        %1080 = vmatpush1.xpose.msra.mxu0 0.0
        %1081 = vmatprep.subr.mxu0 0.0
        %1082 = vmatpush1.xpose.msra.mxu0 0.0
        %1083 = vmatprep.subr.mxu0 0.0
        %1084 = vmatpush1.xpose.msra.mxu0 0.0
        %1085 = vmatprep.subr.mxu0 0.0
        %1086 = vmatpush1.xpose.msra.mxu0 0.0
        %1087 = vmatprep.subr.mxu0 0.0
        %1088 = vmatpush1.xpose.msra.mxu0 0.0
        %1089 = vmatprep.subr.mxu0 0.0
        %1090 = vmatpush1.xpose.msra.mxu0 0.0
        %1091 = vmatprep.subr.mxu0 0.0
        %1092 = vmatpush1.xpose.msra.mxu0 0.0
        %1093 = vmatprep.mubr.f32.mxu0 0.0
        %1094 = vmatmul.mubr.f32.gmra.mrb[0].mxu0 %v447
        %v1095 = vpop.f32.mrb[0].mxu0
        %v1096 = vadd.f32 %v1024, %v1095
        %v1097 = vpop.f32.mrb[0].mxu0
        %1098 = vdwg.mxu0
        %v1100 = vsel %vm688, %v930, 0
        %v1103 = vsel %vm688, %v1013, 0
        %1105 = vmatprep.subr.mxu0 0.0
        %1106 = vmatpush1.xpose.msra.mxu0 %v1103
        %1107 = vmatprep.subr.mxu0 0.0
        %1108 = vmatpush1.xpose.msra.mxu0 0.0
        %1109 = vmatprep.subr.mxu0 0.0
        %1110 = vmatpush1.xpose.msra.mxu0 0.0
        %1111 = vmatprep.subr.mxu0 0.0
        %1112 = vmatpush1.xpose.msra.mxu0 0.0
        %1113 = vmatprep.subr.mxu0 0.0
        %1114 = vmatpush1.xpose.msra.mxu0 0.0
        %1115 = vmatprep.subr.mxu0 0.0
        %1116 = vmatpush1.xpose.msra.mxu0 0.0
        %1117 = vmatprep.subr.mxu0 0.0
        %1118 = vmatpush1.xpose.msra.mxu0 0.0
        %1119 = vmatprep.subr.mxu0 0.0
        %1120 = vmatpush1.xpose.msra.mxu0 0.0
        %1121 = vmatprep.subr.mxu0 0.0
        %1122 = vmatpush1.xpose.msra.mxu0 0.0
        %1123 = vmatprep.subr.mxu0 0.0
        %1124 = vmatpush1.xpose.msra.mxu0 0.0
        %1125 = vmatprep.subr.mxu0 0.0
        %1126 = vmatpush1.xpose.msra.mxu0 0.0
        %1127 = vmatprep.subr.mxu0 0.0
        %1128 = vmatpush1.xpose.msra.mxu0 0.0
        %1129 = vmatprep.subr.mxu0 0.0
        %1130 = vmatpush1.xpose.msra.mxu0 0.0
        %1131 = vmatprep.subr.mxu0 0.0
        %1132 = vmatpush1.xpose.msra.mxu0 0.0
        %1133 = vmatprep.subr.mxu0 0.0
        %1134 = vmatpush1.xpose.msra.mxu0 0.0
        %1135 = vmatprep.subr.mxu0 0.0
        %1136 = vmatpush1.xpose.msra.mxu0 0.0
        %1137 = vmatprep.subr.mxu0 0.0
        %1138 = vmatpush1.xpose.msra.mxu0 0.0
        %1139 = vmatprep.subr.mxu0 0.0
        %1140 = vmatpush1.xpose.msra.mxu0 0.0
        %1141 = vmatprep.subr.mxu0 0.0
        %1142 = vmatpush1.xpose.msra.mxu0 0.0
        %1143 = vmatprep.subr.mxu0 0.0
        %1144 = vmatpush1.xpose.msra.mxu0 0.0
        %1145 = vmatprep.subr.mxu0 0.0
        %1146 = vmatpush1.xpose.msra.mxu0 0.0
        %1147 = vmatprep.subr.mxu0 0.0
        %1148 = vmatpush1.xpose.msra.mxu0 0.0
        %1149 = vmatprep.subr.mxu0 0.0
        %1150 = vmatpush1.xpose.msra.mxu0 0.0
        %1151 = vmatprep.subr.mxu0 0.0
        %1152 = vmatpush1.xpose.msra.mxu0 0.0
        %1153 = vmatprep.subr.mxu0 0.0
        %1154 = vmatpush1.xpose.msra.mxu0 0.0
        %1155 = vmatprep.subr.mxu0 0.0
        %1156 = vmatpush1.xpose.msra.mxu0 0.0
        %1157 = vmatprep.subr.mxu0 0.0
        %1158 = vmatpush1.xpose.msra.mxu0 0.0
        %1159 = vmatprep.subr.mxu0 0.0
        %1160 = vmatpush1.xpose.msra.mxu0 0.0
        %1161 = vmatprep.subr.mxu0 0.0
        %1162 = vmatpush1.xpose.msra.mxu0 0.0
        %1163 = vmatprep.subr.mxu0 0.0
        %1164 = vmatpush1.xpose.msra.mxu0 0.0
        %1165 = vmatprep.subr.mxu0 0.0
        %1166 = vmatpush1.xpose.msra.mxu0 0.0
        %1167 = vmatprep.subr.mxu0 0.0
        %1168 = vmatpush1.xpose.msra.mxu0 0.0
        %1169 = vmatprep.mubr.f32.mxu0 0.0
        %1170 = vmatmul.mubr.f32.gmra.mrb[0].mxu0 %v1100
        %v1171 = vpop.f32.mrb[0].mxu0
        %v1172 = vadd.f32 0.0, %v1171
        %v1173 = vpop.f32.mrb[0].mxu0
        %1174 = vdwg.mxu0
        %v1175 = vsel %vm688, %v1172, -inf
        %1176 = vmax.xlane.f32.xlu0 %v1175
        %v1177 = vpop.xlane.xlu0 %1176
        %v1178 = vsub.f32 %v1172, %v1177
        %v1179 = vmul.f32 %v1178, 1.442695
        %v1180 = vpow.pop %v1179
        %v1181 = vsel %vm688, %v1180, 0.0
        %1182 = vadd.xlane.f32.xlu0 %v1181
        %v1183 = vpop.xlane.xlu0 %1182
        %v1184 = vrcp.pop %v1183
        %v1185 = vmul.f32 %v1180, %v1184
        %v1187 = vsel %vm688, %v1185, 0
        %1189 = vmatprep.subr.mxu0 0.0
        %1190 = vmatpush1.msra.mxu0 %v1096
        %1191 = vmatprep.subr.mxu0 0.0
        %1192 = vmatpush1.msra.mxu0 0.0
        %1193 = vmatprep.subr.mxu0 0.0
        %1194 = vmatpush1.msra.mxu0 0.0
        %1195 = vmatprep.subr.mxu0 0.0
        %1196 = vmatpush1.msra.mxu0 0.0
        %1197 = vmatprep.subr.mxu0 0.0
        %1198 = vmatpush1.msra.mxu0 0.0
        %1199 = vmatprep.subr.mxu0 0.0
        %1200 = vmatpush1.msra.mxu0 0.0
        %1201 = vmatprep.subr.mxu0 0.0
        %1202 = vmatpush1.msra.mxu0 0.0
        %1203 = vmatprep.subr.mxu0 0.0
        %1204 = vmatpush1.msra.mxu0 0.0
        %1205 = vmatprep.subr.mxu0 0.0
        %1206 = vmatpush1.msra.mxu0 0.0
        %1207 = vmatprep.subr.mxu0 0.0
        %1208 = vmatpush1.msra.mxu0 0.0
        %1209 = vmatprep.subr.mxu0 0.0
        %1210 = vmatpush1.msra.mxu0 0.0
        %1211 = vmatprep.subr.mxu0 0.0
        %1212 = vmatpush1.msra.mxu0 0.0
        %1213 = vmatprep.subr.mxu0 0.0
        %1214 = vmatpush1.msra.mxu0 0.0
        %1215 = vmatprep.subr.mxu0 0.0
        %1216 = vmatpush1.msra.mxu0 0.0
        %1217 = vmatprep.subr.mxu0 0.0
        %1218 = vmatpush1.msra.mxu0 0.0
        %1219 = vmatprep.subr.mxu0 0.0
        %1220 = vmatpush1.msra.mxu0 0.0
        %1221 = vmatprep.subr.mxu0 0.0
        %1222 = vmatpush1.msra.mxu0 0.0
        %1223 = vmatprep.subr.mxu0 0.0
        %1224 = vmatpush1.msra.mxu0 0.0
        %1225 = vmatprep.subr.mxu0 0.0
        %1226 = vmatpush1.msra.mxu0 0.0
        %1227 = vmatprep.subr.mxu0 0.0
        %1228 = vmatpush1.msra.mxu0 0.0
        %1229 = vmatprep.subr.mxu0 0.0
        %1230 = vmatpush1.msra.mxu0 0.0
        %1231 = vmatprep.subr.mxu0 0.0
        %1232 = vmatpush1.msra.mxu0 0.0
        %1233 = vmatprep.subr.mxu0 0.0
        %1234 = vmatpush1.msra.mxu0 0.0
        %1235 = vmatprep.subr.mxu0 0.0
        %1236 = vmatpush1.msra.mxu0 0.0
        %1237 = vmatprep.subr.mxu0 0.0
        %1238 = vmatpush1.msra.mxu0 0.0
        %1239 = vmatprep.subr.mxu0 0.0
        %1240 = vmatpush1.msra.mxu0 0.0
        %1241 = vmatprep.subr.mxu0 0.0
        %1242 = vmatpush1.msra.mxu0 0.0
        %1243 = vmatprep.subr.mxu0 0.0
        %1244 = vmatpush1.msra.mxu0 0.0
        %1245 = vmatprep.subr.mxu0 0.0
        %1246 = vmatpush1.msra.mxu0 0.0
        %1247 = vmatprep.subr.mxu0 0.0
        %1248 = vmatpush1.msra.mxu0 0.0
        %1249 = vmatprep.subr.mxu0 0.0
        %1250 = vmatpush1.msra.mxu0 0.0
        %1251 = vmatprep.subr.mxu0 0.0
        %1252 = vmatpush1.msra.mxu0 0.0
        %1253 = vmatprep.mubr.f32.mxu0 0.0
        %1254 = vmatmul.mubr.f32.gmra.mrb[0].mxu0 %v1187
        %v1255 = vpop.f32.mrb[0].mxu0
        %v1256 = vadd.f32 0.0, %v1255
        %v1257 = vpop.f32.mrb[0].mxu0
        %1258 = vdwg.mxu0
        %s1259 = scalar_lea.vmem %s4, 8
        %v1260 = vld [vmem:[%s1259] sm:$0xff]
        %v1262 = vsel %vm688, %v1256, 0
        %1264 = vmatprep.subr.mxu0 0.0
        %1265 = vmatpush1.msra.mxu0 %v1260
        %1266 = vmatprep.subr.mxu0 0.0
        %1267 = vmatpush1.msra.mxu0 0.0
        %1268 = vmatprep.subr.mxu0 0.0
        %1269 = vmatpush1.msra.mxu0 0.0
        %1270 = vmatprep.subr.mxu0 0.0
        %1271 = vmatpush1.msra.mxu0 0.0
        %1272 = vmatprep.subr.mxu0 0.0
        %1273 = vmatpush1.msra.mxu0 0.0
        %1274 = vmatprep.subr.mxu0 0.0
        %1275 = vmatpush1.msra.mxu0 0.0
        %1276 = vmatprep.subr.mxu0 0.0
        %1277 = vmatpush1.msra.mxu0 0.0
        %1278 = vmatprep.subr.mxu0 0.0
        %1279 = vmatpush1.msra.mxu0 0.0
        %1280 = vmatprep.subr.mxu0 0.0
        %1281 = vmatpush1.msra.mxu0 0.0
        %1282 = vmatprep.subr.mxu0 0.0
        %1283 = vmatpush1.msra.mxu0 0.0
        %1284 = vmatprep.subr.mxu0 0.0
        %1285 = vmatpush1.msra.mxu0 0.0
        %1286 = vmatprep.subr.mxu0 0.0
        %1287 = vmatpush1.msra.mxu0 0.0
        %1288 = vmatprep.subr.mxu0 0.0
        %1289 = vmatpush1.msra.mxu0 0.0
        %1290 = vmatprep.subr.mxu0 0.0
        %1291 = vmatpush1.msra.mxu0 0.0
        %1292 = vmatprep.subr.mxu0 0.0
        %1293 = vmatpush1.msra.mxu0 0.0
        %1294 = vmatprep.subr.mxu0 0.0
        %1295 = vmatpush1.msra.mxu0 0.0
        %1296 = vmatprep.subr.mxu0 0.0
        %1297 = vmatpush1.msra.mxu0 0.0
        %1298 = vmatprep.subr.mxu0 0.0
        %1299 = vmatpush1.msra.mxu0 0.0
        %1300 = vmatprep.subr.mxu0 0.0
        %1301 = vmatpush1.msra.mxu0 0.0
        %1302 = vmatprep.subr.mxu0 0.0
        %1303 = vmatpush1.msra.mxu0 0.0
        %1304 = vmatprep.subr.mxu0 0.0
        %1305 = vmatpush1.msra.mxu0 0.0
        %1306 = vmatprep.subr.mxu0 0.0
        %1307 = vmatpush1.msra.mxu0 0.0
        %1308 = vmatprep.subr.mxu0 0.0
        %1309 = vmatpush1.msra.mxu0 0.0
        %1310 = vmatprep.subr.mxu0 0.0
        %1311 = vmatpush1.msra.mxu0 0.0
        %1312 = vmatprep.subr.mxu0 0.0
        %1313 = vmatpush1.msra.mxu0 0.0
        %1314 = vmatprep.subr.mxu0 0.0
        %1315 = vmatpush1.msra.mxu0 0.0
        %1316 = vmatprep.subr.mxu0 0.0
        %1317 = vmatpush1.msra.mxu0 0.0
        %1318 = vmatprep.subr.mxu0 0.0
        %1319 = vmatpush1.msra.mxu0 0.0
        %1320 = vmatprep.subr.mxu0 0.0
        %1321 = vmatpush1.msra.mxu0 0.0
        %1322 = vmatprep.subr.mxu0 0.0
        %1323 = vmatpush1.msra.mxu0 0.0
        %1324 = vmatprep.subr.mxu0 0.0
        %1325 = vmatpush1.msra.mxu0 0.0
        %1326 = vmatprep.subr.mxu0 0.0
        %1327 = vmatpush1.msra.mxu0 0.0
        %1328 = vmatprep.mubr.f32.mxu0 0.0
        %1329 = vmatmul.mubr.f32.gmra.mrb[0].mxu0 %v1262
        %v1330 = vpop.f32.mrb[0].mxu0
        %v1331 = vadd.f32 0.0, %v1330
        %v1332 = vpop.f32.mrb[0].mxu0
        %1333 = vdwg.mxu0
        %v1335 = vsel %vm688, %v846, 0
        %1337 = vmatprep.subr.mxu0 0.0
        %1338 = vmatpush1.msra.mxu0 %v849
        %1339 = vmatprep.subr.mxu0 0.0
        %1340 = vmatpush1.msra.mxu0 0.0
        %1341 = vmatprep.subr.mxu0 0.0
        %1342 = vmatpush1.msra.mxu0 0.0
        %1343 = vmatprep.subr.mxu0 0.0
        %1344 = vmatpush1.msra.mxu0 0.0
        %1345 = vmatprep.subr.mxu0 0.0
        %1346 = vmatpush1.msra.mxu0 0.0
        %1347 = vmatprep.subr.mxu0 0.0
        %1348 = vmatpush1.msra.mxu0 0.0
        %1349 = vmatprep.subr.mxu0 0.0
        %1350 = vmatpush1.msra.mxu0 0.0
        %1351 = vmatprep.subr.mxu0 0.0
        %1352 = vmatpush1.msra.mxu0 0.0
        %1353 = vmatprep.subr.mxu0 0.0
        %1354 = vmatpush1.msra.mxu0 0.0
        %1355 = vmatprep.subr.mxu0 0.0
        %1356 = vmatpush1.msra.mxu0 0.0
        %1357 = vmatprep.subr.mxu0 0.0
        %1358 = vmatpush1.msra.mxu0 0.0
        %1359 = vmatprep.subr.mxu0 0.0
        %1360 = vmatpush1.msra.mxu0 0.0
        %1361 = vmatprep.subr.mxu0 0.0
        %1362 = vmatpush1.msra.mxu0 0.0
        %1363 = vmatprep.subr.mxu0 0.0
        %1364 = vmatpush1.msra.mxu0 0.0
        %1365 = vmatprep.subr.mxu0 0.0
        %1366 = vmatpush1.msra.mxu0 0.0
        %1367 = vmatprep.subr.mxu0 0.0
        %1368 = vmatpush1.msra.mxu0 0.0
        %1369 = vmatprep.subr.mxu0 0.0
        %1370 = vmatpush1.msra.mxu0 0.0
        %1371 = vmatprep.subr.mxu0 0.0
        %1372 = vmatpush1.msra.mxu0 0.0
        %1373 = vmatprep.subr.mxu0 0.0
        %1374 = vmatpush1.msra.mxu0 0.0
        %1375 = vmatprep.subr.mxu0 0.0
        %1376 = vmatpush1.msra.mxu0 0.0
        %1377 = vmatprep.subr.mxu0 0.0
        %1378 = vmatpush1.msra.mxu0 0.0
        %1379 = vmatprep.subr.mxu0 0.0
        %1380 = vmatpush1.msra.mxu0 0.0
        %1381 = vmatprep.subr.mxu0 0.0
        %1382 = vmatpush1.msra.mxu0 0.0
        %1383 = vmatprep.subr.mxu0 0.0
        %1384 = vmatpush1.msra.mxu0 0.0
        %1385 = vmatprep.subr.mxu0 0.0
        %1386 = vmatpush1.msra.mxu0 0.0
        %1387 = vmatprep.subr.mxu0 0.0
        %1388 = vmatpush1.msra.mxu0 0.0
        %1389 = vmatprep.subr.mxu0 0.0
        %1390 = vmatpush1.msra.mxu0 0.0
        %1391 = vmatprep.subr.mxu0 0.0
        %1392 = vmatpush1.msra.mxu0 0.0
        %1393 = vmatprep.subr.mxu0 0.0
        %1394 = vmatpush1.msra.mxu0 0.0
        %1395 = vmatprep.subr.mxu0 0.0
        %1396 = vmatpush1.msra.mxu0 0.0
        %1397 = vmatprep.subr.mxu0 0.0
        %1398 = vmatpush1.msra.mxu0 0.0
        %1399 = vmatprep.subr.mxu0 0.0
        %1400 = vmatpush1.msra.mxu0 0.0
        %1401 = vmatprep.mubr.f32.mxu0 0.0
        %1402 = vmatmul.mubr.f32.gmra.mrb[0].mxu0 %v1335
        %v1403 = vpop.f32.mrb[0].mxu0
        %v1404 = vadd.f32 %v1331, %v1403
        %v1405 = vpop.f32.mrb[0].mxu0
        %1406 = vdwg.mxu0
        %s1407 = scalar_lea.vmem %s2, 16
        %v1408 = vld [vmem:[%s1407] sm:$0xff]
        %s1409 = scalar_lea.vmem [#allocation7], 2
        %v1410 = vld [vmem:[%s1409] sm:$0x1]
        %v1412 = vlaneseq
        %v1413 = vshrl.u32 %v1412, 7
        %v1414 = vsub.s32 0, %v1413
        %v1415 = vrot.slane %v1410, %v1414
        %v1418 = vsel %vm445, %v1408, 0
        %1420 = vmatprep.subr.mxu0 0.0
        %1421 = vmatpush1.xpose.msra.mxu0 %v1418
        %1422 = vmatprep.subr.mxu0 0.0
        %1423 = vmatpush1.xpose.msra.mxu0 0.0
        %1424 = vmatprep.subr.mxu0 0.0
        %1425 = vmatpush1.xpose.msra.mxu0 0.0
        %1426 = vmatprep.subr.mxu0 0.0
        %1427 = vmatpush1.xpose.msra.mxu0 0.0
        %1428 = vmatprep.subr.mxu0 0.0
        %1429 = vmatpush1.xpose.msra.mxu0 0.0
        %1430 = vmatprep.subr.mxu0 0.0
        %1431 = vmatpush1.xpose.msra.mxu0 0.0
        %1432 = vmatprep.subr.mxu0 0.0
        %1433 = vmatpush1.xpose.msra.mxu0 0.0
        %1434 = vmatprep.subr.mxu0 0.0
        %1435 = vmatpush1.xpose.msra.mxu0 0.0
        %1436 = vmatprep.subr.mxu0 0.0
        %1437 = vmatpush1.xpose.msra.mxu0 0.0
        %1438 = vmatprep.subr.mxu0 0.0
        %1439 = vmatpush1.xpose.msra.mxu0 0.0
        %1440 = vmatprep.subr.mxu0 0.0
        %1441 = vmatpush1.xpose.msra.mxu0 0.0
        %1442 = vmatprep.subr.mxu0 0.0
        %1443 = vmatpush1.xpose.msra.mxu0 0.0
        %1444 = vmatprep.subr.mxu0 0.0
        %1445 = vmatpush1.xpose.msra.mxu0 0.0
        %1446 = vmatprep.subr.mxu0 0.0
        %1447 = vmatpush1.xpose.msra.mxu0 0.0
        %1448 = vmatprep.subr.mxu0 0.0
        %1449 = vmatpush1.xpose.msra.mxu0 0.0
        %1450 = vmatprep.subr.mxu0 0.0
        %1451 = vmatpush1.xpose.msra.mxu0 0.0
        %1452 = vmatprep.subr.mxu0 0.0
        %1453 = vmatpush1.xpose.msra.mxu0 0.0
        %1454 = vmatprep.subr.mxu0 0.0
        %1455 = vmatpush1.xpose.msra.mxu0 0.0
        %1456 = vmatprep.subr.mxu0 0.0
        %1457 = vmatpush1.xpose.msra.mxu0 0.0
        %1458 = vmatprep.subr.mxu0 0.0
        %1459 = vmatpush1.xpose.msra.mxu0 0.0
        %1460 = vmatprep.subr.mxu0 0.0
        %1461 = vmatpush1.xpose.msra.mxu0 0.0
        %1462 = vmatprep.subr.mxu0 0.0
        %1463 = vmatpush1.xpose.msra.mxu0 0.0
        %1464 = vmatprep.subr.mxu0 0.0
        %1465 = vmatpush1.xpose.msra.mxu0 0.0
        %1466 = vmatprep.subr.mxu0 0.0
        %1467 = vmatpush1.xpose.msra.mxu0 0.0
        %1468 = vmatprep.subr.mxu0 0.0
        %1469 = vmatpush1.xpose.msra.mxu0 0.0
        %1470 = vmatprep.subr.mxu0 0.0
        %1471 = vmatpush1.xpose.msra.mxu0 0.0
        %1472 = vmatprep.subr.mxu0 0.0
        %1473 = vmatpush1.xpose.msra.mxu0 0.0
        %1474 = vmatprep.subr.mxu0 0.0
        %1475 = vmatpush1.xpose.msra.mxu0 0.0
        %1476 = vmatprep.subr.mxu0 0.0
        %1477 = vmatpush1.xpose.msra.mxu0 0.0
        %1478 = vmatprep.subr.mxu0 0.0
        %1479 = vmatpush1.xpose.msra.mxu0 0.0
        %1480 = vmatprep.subr.mxu0 0.0
        %1481 = vmatpush1.xpose.msra.mxu0 0.0
        %1482 = vmatprep.subr.mxu0 0.0
        %1483 = vmatpush1.xpose.msra.mxu0 0.0
        %1484 = vmatprep.mubr.f32.mxu0 0.0
        %1485 = vmatmul.mubr.f32.gmra.mrb[0].mxu0 %v447
        %v1486 = vpop.f32.mrb[0].mxu0
        %v1487 = vadd.f32 %v1415, %v1486
        %v1488 = vpop.f32.mrb[0].mxu0
        %1489 = vdwg.mxu0
        %s1490 = scalar_lea.vmem %s2, 48
        %v1491 = vld [vmem:[%s1490] sm:$0xff]
        %s1492 = scalar_lea.vmem [#allocation7], 6
        %v1493 = vld [vmem:[%s1492] sm:$0x1]
        %v1495 = vlaneseq
        %v1496 = vshrl.u32 %v1495, 7
        %v1497 = vsub.s32 0, %v1496
        %v1498 = vrot.slane %v1493, %v1497
        %v1501 = vsel %vm445, %v1491, 0
        %1503 = vmatprep.subr.mxu0 0.0
        %1504 = vmatpush1.xpose.msra.mxu0 %v1501
        %1505 = vmatprep.subr.mxu0 0.0
        %1506 = vmatpush1.xpose.msra.mxu0 0.0
        %1507 = vmatprep.subr.mxu0 0.0
        %1508 = vmatpush1.xpose.msra.mxu0 0.0
        %1509 = vmatprep.subr.mxu0 0.0
        %1510 = vmatpush1.xpose.msra.mxu0 0.0
        %1511 = vmatprep.subr.mxu0 0.0
        %1512 = vmatpush1.xpose.msra.mxu0 0.0
        %1513 = vmatprep.subr.mxu0 0.0
        %1514 = vmatpush1.xpose.msra.mxu0 0.0
        %1515 = vmatprep.subr.mxu0 0.0
        %1516 = vmatpush1.xpose.msra.mxu0 0.0
        %1517 = vmatprep.subr.mxu0 0.0
        %1518 = vmatpush1.xpose.msra.mxu0 0.0
        %1519 = vmatprep.subr.mxu0 0.0
        %1520 = vmatpush1.xpose.msra.mxu0 0.0
        %1521 = vmatprep.subr.mxu0 0.0
        %1522 = vmatpush1.xpose.msra.mxu0 0.0
        %1523 = vmatprep.subr.mxu0 0.0
        %1524 = vmatpush1.xpose.msra.mxu0 0.0
        %1525 = vmatprep.subr.mxu0 0.0
        %1526 = vmatpush1.xpose.msra.mxu0 0.0
        %1527 = vmatprep.subr.mxu0 0.0
        %1528 = vmatpush1.xpose.msra.mxu0 0.0
        %1529 = vmatprep.subr.mxu0 0.0
        %1530 = vmatpush1.xpose.msra.mxu0 0.0
        %1531 = vmatprep.subr.mxu0 0.0
        %1532 = vmatpush1.xpose.msra.mxu0 0.0
        %1533 = vmatprep.subr.mxu0 0.0
        %1534 = vmatpush1.xpose.msra.mxu0 0.0
        %1535 = vmatprep.subr.mxu0 0.0
        %1536 = vmatpush1.xpose.msra.mxu0 0.0
        %1537 = vmatprep.subr.mxu0 0.0
        %1538 = vmatpush1.xpose.msra.mxu0 0.0
        %1539 = vmatprep.subr.mxu0 0.0
        %1540 = vmatpush1.xpose.msra.mxu0 0.0
        %1541 = vmatprep.subr.mxu0 0.0
        %1542 = vmatpush1.xpose.msra.mxu0 0.0
        %1543 = vmatprep.subr.mxu0 0.0
        %1544 = vmatpush1.xpose.msra.mxu0 0.0
        %1545 = vmatprep.subr.mxu0 0.0
        %1546 = vmatpush1.xpose.msra.mxu0 0.0
        %1547 = vmatprep.subr.mxu0 0.0
        %1548 = vmatpush1.xpose.msra.mxu0 0.0
        %1549 = vmatprep.subr.mxu0 0.0
        %1550 = vmatpush1.xpose.msra.mxu0 0.0
        %1551 = vmatprep.subr.mxu0 0.0
        %1552 = vmatpush1.xpose.msra.mxu0 0.0
        %1553 = vmatprep.subr.mxu0 0.0
        %1554 = vmatpush1.xpose.msra.mxu0 0.0
        %1555 = vmatprep.subr.mxu0 0.0
        %1556 = vmatpush1.xpose.msra.mxu0 0.0
        %1557 = vmatprep.subr.mxu0 0.0
        %1558 = vmatpush1.xpose.msra.mxu0 0.0
        %1559 = vmatprep.subr.mxu0 0.0
        %1560 = vmatpush1.xpose.msra.mxu0 0.0
        %1561 = vmatprep.subr.mxu0 0.0
        %1562 = vmatpush1.xpose.msra.mxu0 0.0
        %1563 = vmatprep.subr.mxu0 0.0
        %1564 = vmatpush1.xpose.msra.mxu0 0.0
        %1565 = vmatprep.subr.mxu0 0.0
        %1566 = vmatpush1.xpose.msra.mxu0 0.0
        %1567 = vmatprep.mubr.f32.mxu0 0.0
        %1568 = vmatmul.mubr.f32.gmra.mrb[0].mxu0 %v447
        %v1569 = vpop.f32.mrb[0].mxu0
        %v1570 = vadd.f32 %v1498, %v1569
        %v1571 = vpop.f32.mrb[0].mxu0
        %1572 = vdwg.mxu0
        %s1573 = scalar_lea.vmem %s2, 80
        %v1574 = vld [vmem:[%s1573] sm:$0xff]
        %s1575 = scalar_lea.vmem [#allocation7], 10
        %v1576 = vld [vmem:[%s1575] sm:$0x1]
        %v1578 = vlaneseq
        %v1579 = vshrl.u32 %v1578, 7
        %v1580 = vsub.s32 0, %v1579
        %v1581 = vrot.slane %v1576, %v1580
        %v1584 = vsel %vm445, %v1574, 0
        %1586 = vmatprep.subr.mxu0 0.0
        %1587 = vmatpush1.xpose.msra.mxu0 %v1584
        %1588 = vmatprep.subr.mxu0 0.0
        %1589 = vmatpush1.xpose.msra.mxu0 0.0
        %1590 = vmatprep.subr.mxu0 0.0
        %1591 = vmatpush1.xpose.msra.mxu0 0.0
        %1592 = vmatprep.subr.mxu0 0.0
        %1593 = vmatpush1.xpose.msra.mxu0 0.0
        %1594 = vmatprep.subr.mxu0 0.0
        %1595 = vmatpush1.xpose.msra.mxu0 0.0
        %1596 = vmatprep.subr.mxu0 0.0
        %1597 = vmatpush1.xpose.msra.mxu0 0.0
        %1598 = vmatprep.subr.mxu0 0.0
        %1599 = vmatpush1.xpose.msra.mxu0 0.0
        %1600 = vmatprep.subr.mxu0 0.0
        %1601 = vmatpush1.xpose.msra.mxu0 0.0
        %1602 = vmatprep.subr.mxu0 0.0
        %1603 = vmatpush1.xpose.msra.mxu0 0.0
        %1604 = vmatprep.subr.mxu0 0.0
        %1605 = vmatpush1.xpose.msra.mxu0 0.0
        %1606 = vmatprep.subr.mxu0 0.0
        %1607 = vmatpush1.xpose.msra.mxu0 0.0
        %1608 = vmatprep.subr.mxu0 0.0
        %1609 = vmatpush1.xpose.msra.mxu0 0.0
        %1610 = vmatprep.subr.mxu0 0.0
        %1611 = vmatpush1.xpose.msra.mxu0 0.0
        %1612 = vmatprep.subr.mxu0 0.0
        %1613 = vmatpush1.xpose.msra.mxu0 0.0
        %1614 = vmatprep.subr.mxu0 0.0
        %1615 = vmatpush1.xpose.msra.mxu0 0.0
        %1616 = vmatprep.subr.mxu0 0.0
        %1617 = vmatpush1.xpose.msra.mxu0 0.0
        %1618 = vmatprep.subr.mxu0 0.0
        %1619 = vmatpush1.xpose.msra.mxu0 0.0
        %1620 = vmatprep.subr.mxu0 0.0
        %1621 = vmatpush1.xpose.msra.mxu0 0.0
        %1622 = vmatprep.subr.mxu0 0.0
        %1623 = vmatpush1.xpose.msra.mxu0 0.0
        %1624 = vmatprep.subr.mxu0 0.0
        %1625 = vmatpush1.xpose.msra.mxu0 0.0
        %1626 = vmatprep.subr.mxu0 0.0
        %1627 = vmatpush1.xpose.msra.mxu0 0.0
        %1628 = vmatprep.subr.mxu0 0.0
        %1629 = vmatpush1.xpose.msra.mxu0 0.0
        %1630 = vmatprep.subr.mxu0 0.0
        %1631 = vmatpush1.xpose.msra.mxu0 0.0
        %1632 = vmatprep.subr.mxu0 0.0
        %1633 = vmatpush1.xpose.msra.mxu0 0.0
        %1634 = vmatprep.subr.mxu0 0.0
        %1635 = vmatpush1.xpose.msra.mxu0 0.0
        %1636 = vmatprep.subr.mxu0 0.0
        %1637 = vmatpush1.xpose.msra.mxu0 0.0
        %1638 = vmatprep.subr.mxu0 0.0
        %1639 = vmatpush1.xpose.msra.mxu0 0.0
        %1640 = vmatprep.subr.mxu0 0.0
        %1641 = vmatpush1.xpose.msra.mxu0 0.0
        %1642 = vmatprep.subr.mxu0 0.0
        %1643 = vmatpush1.xpose.msra.mxu0 0.0
        %1644 = vmatprep.subr.mxu0 0.0
        %1645 = vmatpush1.xpose.msra.mxu0 0.0
        %1646 = vmatprep.subr.mxu0 0.0
        %1647 = vmatpush1.xpose.msra.mxu0 0.0
        %1648 = vmatprep.subr.mxu0 0.0
        %1649 = vmatpush1.xpose.msra.mxu0 0.0
        %1650 = vmatprep.mubr.f32.mxu0 0.0
        %1651 = vmatmul.mubr.f32.gmra.mrb[0].mxu0 %v447
        %v1652 = vpop.f32.mrb[0].mxu0
        %v1653 = vadd.f32 %v1581, %v1652
        %v1654 = vpop.f32.mrb[0].mxu0
        %1655 = vdwg.mxu0
        %v1657 = vsel %vm688, %v1487, 0
        %v1660 = vsel %vm688, %v1570, 0
        %1662 = vmatprep.subr.mxu0 0.0
        %1663 = vmatpush1.xpose.msra.mxu0 %v1660
        %1664 = vmatprep.subr.mxu0 0.0
        %1665 = vmatpush1.xpose.msra.mxu0 0.0
        %1666 = vmatprep.subr.mxu0 0.0
        %1667 = vmatpush1.xpose.msra.mxu0 0.0
        %1668 = vmatprep.subr.mxu0 0.0
        %1669 = vmatpush1.xpose.msra.mxu0 0.0
        %1670 = vmatprep.subr.mxu0 0.0
        %1671 = vmatpush1.xpose.msra.mxu0 0.0
        %1672 = vmatprep.subr.mxu0 0.0
        %1673 = vmatpush1.xpose.msra.mxu0 0.0
        %1674 = vmatprep.subr.mxu0 0.0
        %1675 = vmatpush1.xpose.msra.mxu0 0.0
        %1676 = vmatprep.subr.mxu0 0.0
        %1677 = vmatpush1.xpose.msra.mxu0 0.0
        %1678 = vmatprep.subr.mxu0 0.0
        %1679 = vmatpush1.xpose.msra.mxu0 0.0
        %1680 = vmatprep.subr.mxu0 0.0
        %1681 = vmatpush1.xpose.msra.mxu0 0.0
        %1682 = vmatprep.subr.mxu0 0.0
        %1683 = vmatpush1.xpose.msra.mxu0 0.0
        %1684 = vmatprep.subr.mxu0 0.0
        %1685 = vmatpush1.xpose.msra.mxu0 0.0
        %1686 = vmatprep.subr.mxu0 0.0
        %1687 = vmatpush1.xpose.msra.mxu0 0.0
        %1688 = vmatprep.subr.mxu0 0.0
        %1689 = vmatpush1.xpose.msra.mxu0 0.0
        %1690 = vmatprep.subr.mxu0 0.0
        %1691 = vmatpush1.xpose.msra.mxu0 0.0
        %1692 = vmatprep.subr.mxu0 0.0
        %1693 = vmatpush1.xpose.msra.mxu0 0.0
        %1694 = vmatprep.subr.mxu0 0.0
        %1695 = vmatpush1.xpose.msra.mxu0 0.0
        %1696 = vmatprep.subr.mxu0 0.0
        %1697 = vmatpush1.xpose.msra.mxu0 0.0
        %1698 = vmatprep.subr.mxu0 0.0
        %1699 = vmatpush1.xpose.msra.mxu0 0.0
        %1700 = vmatprep.subr.mxu0 0.0
        %1701 = vmatpush1.xpose.msra.mxu0 0.0
        %1702 = vmatprep.subr.mxu0 0.0
        %1703 = vmatpush1.xpose.msra.mxu0 0.0
        %1704 = vmatprep.subr.mxu0 0.0
        %1705 = vmatpush1.xpose.msra.mxu0 0.0
        %1706 = vmatprep.subr.mxu0 0.0
        %1707 = vmatpush1.xpose.msra.mxu0 0.0
        %1708 = vmatprep.subr.mxu0 0.0
        %1709 = vmatpush1.xpose.msra.mxu0 0.0
        %1710 = vmatprep.subr.mxu0 0.0
        %1711 = vmatpush1.xpose.msra.mxu0 0.0
        %1712 = vmatprep.subr.mxu0 0.0
        %1713 = vmatpush1.xpose.msra.mxu0 0.0
        %1714 = vmatprep.subr.mxu0 0.0
        %1715 = vmatpush1.xpose.msra.mxu0 0.0
        %1716 = vmatprep.subr.mxu0 0.0
        %1717 = vmatpush1.xpose.msra.mxu0 0.0
        %1718 = vmatprep.subr.mxu0 0.0
        %1719 = vmatpush1.xpose.msra.mxu0 0.0
        %1720 = vmatprep.subr.mxu0 0.0
        %1721 = vmatpush1.xpose.msra.mxu0 0.0
        %1722 = vmatprep.subr.mxu0 0.0
        %1723 = vmatpush1.xpose.msra.mxu0 0.0
        %1724 = vmatprep.subr.mxu0 0.0
        %1725 = vmatpush1.xpose.msra.mxu0 0.0
        %1726 = vmatprep.mubr.f32.mxu0 0.0
        %1727 = vmatmul.mubr.f32.gmra.mrb[0].mxu0 %v1657
        %v1728 = vpop.f32.mrb[0].mxu0
        %v1729 = vadd.f32 0.0, %v1728
        %v1730 = vpop.f32.mrb[0].mxu0
        %1731 = vdwg.mxu0
        %v1732 = vsel %vm688, %v1729, -inf
        %1733 = vmax.xlane.f32.xlu0 %v1732
        %v1734 = vpop.xlane.xlu0 %1733
        %v1735 = vsub.f32 %v1729, %v1734
        %v1736 = vmul.f32 %v1735, 1.442695
        %v1737 = vpow.pop %v1736
        %v1738 = vsel %vm688, %v1737, 0.0
        %1739 = vadd.xlane.f32.xlu0 %v1738
        %v1740 = vpop.xlane.xlu0 %1739
        %v1741 = vrcp.pop %v1740
        %v1742 = vmul.f32 %v1737, %v1741
        %v1744 = vsel %vm688, %v1742, 0
        %1746 = vmatprep.subr.mxu0 0.0
        %1747 = vmatpush1.msra.mxu0 %v1653
        %1748 = vmatprep.subr.mxu0 0.0
        %1749 = vmatpush1.msra.mxu0 0.0
        %1750 = vmatprep.subr.mxu0 0.0
        %1751 = vmatpush1.msra.mxu0 0.0
        %1752 = vmatprep.subr.mxu0 0.0
        %1753 = vmatpush1.msra.mxu0 0.0
        %1754 = vmatprep.subr.mxu0 0.0
        %1755 = vmatpush1.msra.mxu0 0.0
        %1756 = vmatprep.subr.mxu0 0.0
        %1757 = vmatpush1.msra.mxu0 0.0
        %1758 = vmatprep.subr.mxu0 0.0
        %1759 = vmatpush1.msra.mxu0 0.0
        %1760 = vmatprep.subr.mxu0 0.0
        %1761 = vmatpush1.msra.mxu0 0.0
        %1762 = vmatprep.subr.mxu0 0.0
        %1763 = vmatpush1.msra.mxu0 0.0
        %1764 = vmatprep.subr.mxu0 0.0
        %1765 = vmatpush1.msra.mxu0 0.0
        %1766 = vmatprep.subr.mxu0 0.0
        %1767 = vmatpush1.msra.mxu0 0.0
        %1768 = vmatprep.subr.mxu0 0.0
        %1769 = vmatpush1.msra.mxu0 0.0
        %1770 = vmatprep.subr.mxu0 0.0
        %1771 = vmatpush1.msra.mxu0 0.0
        %1772 = vmatprep.subr.mxu0 0.0
        %1773 = vmatpush1.msra.mxu0 0.0
        %1774 = vmatprep.subr.mxu0 0.0
        %1775 = vmatpush1.msra.mxu0 0.0
        %1776 = vmatprep.subr.mxu0 0.0
        %1777 = vmatpush1.msra.mxu0 0.0
        %1778 = vmatprep.subr.mxu0 0.0
        %1779 = vmatpush1.msra.mxu0 0.0
        %1780 = vmatprep.subr.mxu0 0.0
        %1781 = vmatpush1.msra.mxu0 0.0
        %1782 = vmatprep.subr.mxu0 0.0
        %1783 = vmatpush1.msra.mxu0 0.0
        %1784 = vmatprep.subr.mxu0 0.0
        %1785 = vmatpush1.msra.mxu0 0.0
        %1786 = vmatprep.subr.mxu0 0.0
        %1787 = vmatpush1.msra.mxu0 0.0
        %1788 = vmatprep.subr.mxu0 0.0
        %1789 = vmatpush1.msra.mxu0 0.0
        %1790 = vmatprep.subr.mxu0 0.0
        %1791 = vmatpush1.msra.mxu0 0.0
        %1792 = vmatprep.subr.mxu0 0.0
        %1793 = vmatpush1.msra.mxu0 0.0
        %1794 = vmatprep.subr.mxu0 0.0
        %1795 = vmatpush1.msra.mxu0 0.0
        %1796 = vmatprep.subr.mxu0 0.0
        %1797 = vmatpush1.msra.mxu0 0.0
        %1798 = vmatprep.subr.mxu0 0.0
        %1799 = vmatpush1.msra.mxu0 0.0
        %1800 = vmatprep.subr.mxu0 0.0
        %1801 = vmatpush1.msra.mxu0 0.0
        %1802 = vmatprep.subr.mxu0 0.0
        %1803 = vmatpush1.msra.mxu0 0.0
        %1804 = vmatprep.subr.mxu0 0.0
        %1805 = vmatpush1.msra.mxu0 0.0
        %1806 = vmatprep.subr.mxu0 0.0
        %1807 = vmatpush1.msra.mxu0 0.0
        %1808 = vmatprep.subr.mxu0 0.0
        %1809 = vmatpush1.msra.mxu0 0.0
        %1810 = vmatprep.mubr.f32.mxu0 0.0
        %1811 = vmatmul.mubr.f32.gmra.mrb[0].mxu0 %v1744
        %v1812 = vpop.f32.mrb[0].mxu0
        %v1813 = vadd.f32 0.0, %v1812
        %v1814 = vpop.f32.mrb[0].mxu0
        %1815 = vdwg.mxu0
        %s1816 = scalar_lea.vmem %s4, 16
        %v1817 = vld [vmem:[%s1816] sm:$0xff]
        %v1819 = vsel %vm688, %v1813, 0
        %1821 = vmatprep.subr.mxu0 0.0
        %1822 = vmatpush1.msra.mxu0 %v1817
        %1823 = vmatprep.subr.mxu0 0.0
        %1824 = vmatpush1.msra.mxu0 0.0
        %1825 = vmatprep.subr.mxu0 0.0
        %1826 = vmatpush1.msra.mxu0 0.0
        %1827 = vmatprep.subr.mxu0 0.0
        %1828 = vmatpush1.msra.mxu0 0.0
        %1829 = vmatprep.subr.mxu0 0.0
        %1830 = vmatpush1.msra.mxu0 0.0
        %1831 = vmatprep.subr.mxu0 0.0
        %1832 = vmatpush1.msra.mxu0 0.0
        %1833 = vmatprep.subr.mxu0 0.0
        %1834 = vmatpush1.msra.mxu0 0.0
        %1835 = vmatprep.subr.mxu0 0.0
        %1836 = vmatpush1.msra.mxu0 0.0
        %1837 = vmatprep.subr.mxu0 0.0
        %1838 = vmatpush1.msra.mxu0 0.0
        %1839 = vmatprep.subr.mxu0 0.0
        %1840 = vmatpush1.msra.mxu0 0.0
        %1841 = vmatprep.subr.mxu0 0.0
        %1842 = vmatpush1.msra.mxu0 0.0
        %1843 = vmatprep.subr.mxu0 0.0
        %1844 = vmatpush1.msra.mxu0 0.0
        %1845 = vmatprep.subr.mxu0 0.0
        %1846 = vmatpush1.msra.mxu0 0.0
        %1847 = vmatprep.subr.mxu0 0.0
        %1848 = vmatpush1.msra.mxu0 0.0
        %1849 = vmatprep.subr.mxu0 0.0
        %1850 = vmatpush1.msra.mxu0 0.0
        %1851 = vmatprep.subr.mxu0 0.0
        %1852 = vmatpush1.msra.mxu0 0.0
        %1853 = vmatprep.subr.mxu0 0.0
        %1854 = vmatpush1.msra.mxu0 0.0
        %1855 = vmatprep.subr.mxu0 0.0
        %1856 = vmatpush1.msra.mxu0 0.0
        %1857 = vmatprep.subr.mxu0 0.0
        %1858 = vmatpush1.msra.mxu0 0.0
        %1859 = vmatprep.subr.mxu0 0.0
        %1860 = vmatpush1.msra.mxu0 0.0
        %1861 = vmatprep.subr.mxu0 0.0
        %1862 = vmatpush1.msra.mxu0 0.0
        %1863 = vmatprep.subr.mxu0 0.0
        %1864 = vmatpush1.msra.mxu0 0.0
        %1865 = vmatprep.subr.mxu0 0.0
        %1866 = vmatpush1.msra.mxu0 0.0
        %1867 = vmatprep.subr.mxu0 0.0
        %1868 = vmatpush1.msra.mxu0 0.0
        %1869 = vmatprep.subr.mxu0 0.0
        %1870 = vmatpush1.msra.mxu0 0.0
        %1871 = vmatprep.subr.mxu0 0.0
        %1872 = vmatpush1.msra.mxu0 0.0
        %1873 = vmatprep.subr.mxu0 0.0
        %1874 = vmatpush1.msra.mxu0 0.0
        %1875 = vmatprep.subr.mxu0 0.0
        %1876 = vmatpush1.msra.mxu0 0.0
        %1877 = vmatprep.subr.mxu0 0.0
        %1878 = vmatpush1.msra.mxu0 0.0
        %1879 = vmatprep.subr.mxu0 0.0
        %1880 = vmatpush1.msra.mxu0 0.0
        %1881 = vmatprep.subr.mxu0 0.0
        %1882 = vmatpush1.msra.mxu0 0.0
        %1883 = vmatprep.subr.mxu0 0.0
        %1884 = vmatpush1.msra.mxu0 0.0
        %1885 = vmatprep.mubr.f32.mxu0 0.0
        %1886 = vmatmul.mubr.f32.gmra.mrb[0].mxu0 %v1819
        %v1887 = vpop.f32.mrb[0].mxu0
        %v1888 = vadd.f32 0.0, %v1887
        %v1889 = vpop.f32.mrb[0].mxu0
        %1890 = vdwg.mxu0
        %v1891 = vadd.f32 %v1404, %v1888
        %s1892 = scalar_lea.vmem %s2, 24
        %v1893 = vld [vmem:[%s1892] sm:$0xff]
        %s1894 = scalar_lea.vmem [#allocation7], 3
        %v1895 = vld [vmem:[%s1894] sm:$0x1]
        %v1897 = vlaneseq
        %v1898 = vshrl.u32 %v1897, 7
        %v1899 = vsub.s32 0, %v1898
        %v1900 = vrot.slane %v1895, %v1899
        %v1903 = vsel %vm445, %v1893, 0
        %1905 = vmatprep.subr.mxu0 0.0
        %1906 = vmatpush1.xpose.msra.mxu0 %v1903
        %1907 = vmatprep.subr.mxu0 0.0
        %1908 = vmatpush1.xpose.msra.mxu0 0.0
        %1909 = vmatprep.subr.mxu0 0.0
        %1910 = vmatpush1.xpose.msra.mxu0 0.0
        %1911 = vmatprep.subr.mxu0 0.0
        %1912 = vmatpush1.xpose.msra.mxu0 0.0
        %1913 = vmatprep.subr.mxu0 0.0
        %1914 = vmatpush1.xpose.msra.mxu0 0.0
        %1915 = vmatprep.subr.mxu0 0.0
        %1916 = vmatpush1.xpose.msra.mxu0 0.0
        %1917 = vmatprep.subr.mxu0 0.0
        %1918 = vmatpush1.xpose.msra.mxu0 0.0
        %1919 = vmatprep.subr.mxu0 0.0
        %1920 = vmatpush1.xpose.msra.mxu0 0.0
        %1921 = vmatprep.subr.mxu0 0.0
        %1922 = vmatpush1.xpose.msra.mxu0 0.0
        %1923 = vmatprep.subr.mxu0 0.0
        %1924 = vmatpush1.xpose.msra.mxu0 0.0
        %1925 = vmatprep.subr.mxu0 0.0
        %1926 = vmatpush1.xpose.msra.mxu0 0.0
        %1927 = vmatprep.subr.mxu0 0.0
        %1928 = vmatpush1.xpose.msra.mxu0 0.0
        %1929 = vmatprep.subr.mxu0 0.0
        %1930 = vmatpush1.xpose.msra.mxu0 0.0
        %1931 = vmatprep.subr.mxu0 0.0
        %1932 = vmatpush1.xpose.msra.mxu0 0.0
        %1933 = vmatprep.subr.mxu0 0.0
        %1934 = vmatpush1.xpose.msra.mxu0 0.0
        %1935 = vmatprep.subr.mxu0 0.0
        %1936 = vmatpush1.xpose.msra.mxu0 0.0
        %1937 = vmatprep.subr.mxu0 0.0
        %1938 = vmatpush1.xpose.msra.mxu0 0.0
        %1939 = vmatprep.subr.mxu0 0.0
        %1940 = vmatpush1.xpose.msra.mxu0 0.0
        %1941 = vmatprep.subr.mxu0 0.0
        %1942 = vmatpush1.xpose.msra.mxu0 0.0
        %1943 = vmatprep.subr.mxu0 0.0
        %1944 = vmatpush1.xpose.msra.mxu0 0.0
        %1945 = vmatprep.subr.mxu0 0.0
        %1946 = vmatpush1.xpose.msra.mxu0 0.0
        %1947 = vmatprep.subr.mxu0 0.0
        %1948 = vmatpush1.xpose.msra.mxu0 0.0
        %1949 = vmatprep.subr.mxu0 0.0
        %1950 = vmatpush1.xpose.msra.mxu0 0.0
        %1951 = vmatprep.subr.mxu0 0.0
        %1952 = vmatpush1.xpose.msra.mxu0 0.0
        %1953 = vmatprep.subr.mxu0 0.0
        %1954 = vmatpush1.xpose.msra.mxu0 0.0
        %1955 = vmatprep.subr.mxu0 0.0
        %1956 = vmatpush1.xpose.msra.mxu0 0.0
        %1957 = vmatprep.subr.mxu0 0.0
        %1958 = vmatpush1.xpose.msra.mxu0 0.0
        %1959 = vmatprep.subr.mxu0 0.0
        %1960 = vmatpush1.xpose.msra.mxu0 0.0
        %1961 = vmatprep.subr.mxu0 0.0
        %1962 = vmatpush1.xpose.msra.mxu0 0.0
        %1963 = vmatprep.subr.mxu0 0.0
        %1964 = vmatpush1.xpose.msra.mxu0 0.0
        %1965 = vmatprep.subr.mxu0 0.0
        %1966 = vmatpush1.xpose.msra.mxu0 0.0
        %1967 = vmatprep.subr.mxu0 0.0
        %1968 = vmatpush1.xpose.msra.mxu0 0.0
        %1969 = vmatprep.mubr.f32.mxu0 0.0
        %1970 = vmatmul.mubr.f32.gmra.mrb[0].mxu0 %v447
        %v1971 = vpop.f32.mrb[0].mxu0
        %v1972 = vadd.f32 %v1900, %v1971
        %v1973 = vpop.f32.mrb[0].mxu0
        %1974 = vdwg.mxu0
        %s1975 = scalar_lea.vmem %s2, 56
        %v1976 = vld [vmem:[%s1975] sm:$0xff]
        %s1977 = scalar_lea.vmem [#allocation7], 7
        %v1978 = vld [vmem:[%s1977] sm:$0x1]
        %v1980 = vlaneseq
        %v1981 = vshrl.u32 %v1980, 7
        %v1982 = vsub.s32 0, %v1981
        %v1983 = vrot.slane %v1978, %v1982
        %v1986 = vsel %vm445, %v1976, 0
        %1988 = vmatprep.subr.mxu0 0.0
        %1989 = vmatpush1.xpose.msra.mxu0 %v1986
        %1990 = vmatprep.subr.mxu0 0.0
        %1991 = vmatpush1.xpose.msra.mxu0 0.0
        %1992 = vmatprep.subr.mxu0 0.0
        %1993 = vmatpush1.xpose.msra.mxu0 0.0
        %1994 = vmatprep.subr.mxu0 0.0
        %1995 = vmatpush1.xpose.msra.mxu0 0.0
        %1996 = vmatprep.subr.mxu0 0.0
        %1997 = vmatpush1.xpose.msra.mxu0 0.0
        %1998 = vmatprep.subr.mxu0 0.0
        %1999 = vmatpush1.xpose.msra.mxu0 0.0
        %2000 = vmatprep.subr.mxu0 0.0
        %2001 = vmatpush1.xpose.msra.mxu0 0.0
        %2002 = vmatprep.subr.mxu0 0.0
        %2003 = vmatpush1.xpose.msra.mxu0 0.0
        %2004 = vmatprep.subr.mxu0 0.0
        %2005 = vmatpush1.xpose.msra.mxu0 0.0
        %2006 = vmatprep.subr.mxu0 0.0
        %2007 = vmatpush1.xpose.msra.mxu0 0.0
        %2008 = vmatprep.subr.mxu0 0.0
        %2009 = vmatpush1.xpose.msra.mxu0 0.0
        %2010 = vmatprep.subr.mxu0 0.0
        %2011 = vmatpush1.xpose.msra.mxu0 0.0
        %2012 = vmatprep.subr.mxu0 0.0
        %2013 = vmatpush1.xpose.msra.mxu0 0.0
        %2014 = vmatprep.subr.mxu0 0.0
        %2015 = vmatpush1.xpose.msra.mxu0 0.0
        %2016 = vmatprep.subr.mxu0 0.0
        %2017 = vmatpush1.xpose.msra.mxu0 0.0
        %2018 = vmatprep.subr.mxu0 0.0
        %2019 = vmatpush1.xpose.msra.mxu0 0.0
        %2020 = vmatprep.subr.mxu0 0.0
        %2021 = vmatpush1.xpose.msra.mxu0 0.0
        %2022 = vmatprep.subr.mxu0 0.0
        %2023 = vmatpush1.xpose.msra.mxu0 0.0
        %2024 = vmatprep.subr.mxu0 0.0
        %2025 = vmatpush1.xpose.msra.mxu0 0.0
        %2026 = vmatprep.subr.mxu0 0.0
        %2027 = vmatpush1.xpose.msra.mxu0 0.0
        %2028 = vmatprep.subr.mxu0 0.0
        %2029 = vmatpush1.xpose.msra.mxu0 0.0
        %2030 = vmatprep.subr.mxu0 0.0
        %2031 = vmatpush1.xpose.msra.mxu0 0.0
        %2032 = vmatprep.subr.mxu0 0.0
        %2033 = vmatpush1.xpose.msra.mxu0 0.0
        %2034 = vmatprep.subr.mxu0 0.0
        %2035 = vmatpush1.xpose.msra.mxu0 0.0
        %2036 = vmatprep.subr.mxu0 0.0
        %2037 = vmatpush1.xpose.msra.mxu0 0.0
        %2038 = vmatprep.subr.mxu0 0.0
        %2039 = vmatpush1.xpose.msra.mxu0 0.0
        %2040 = vmatprep.subr.mxu0 0.0
        %2041 = vmatpush1.xpose.msra.mxu0 0.0
        %2042 = vmatprep.subr.mxu0 0.0
        %2043 = vmatpush1.xpose.msra.mxu0 0.0
        %2044 = vmatprep.subr.mxu0 0.0
        %2045 = vmatpush1.xpose.msra.mxu0 0.0
        %2046 = vmatprep.subr.mxu0 0.0
        %2047 = vmatpush1.xpose.msra.mxu0 0.0
        %2048 = vmatprep.subr.mxu0 0.0
        %2049 = vmatpush1.xpose.msra.mxu0 0.0
        %2050 = vmatprep.subr.mxu0 0.0
        %2051 = vmatpush1.xpose.msra.mxu0 0.0
        %2052 = vmatprep.mubr.f32.mxu0 0.0
        %2053 = vmatmul.mubr.f32.gmra.mrb[0].mxu0 %v447
        %v2054 = vpop.f32.mrb[0].mxu0
        %v2055 = vadd.f32 %v1983, %v2054
        %v2056 = vpop.f32.mrb[0].mxu0
        %2057 = vdwg.mxu0
        %s2058 = scalar_lea.vmem %s2, 88
        %v2059 = vld [vmem:[%s2058] sm:$0xff]
        %s2060 = scalar_lea.vmem [#allocation7], 11
        %v2061 = vld [vmem:[%s2060] sm:$0x1]
        %v2063 = vlaneseq
        %v2064 = vshrl.u32 %v2063, 7
        %v2065 = vsub.s32 0, %v2064
        %v2066 = vrot.slane %v2061, %v2065
        %v2069 = vsel %vm445, %v2059, 0
        %2071 = vmatprep.subr.mxu0 0.0
        %2072 = vmatpush1.xpose.msra.mxu0 %v2069
        %2073 = vmatprep.subr.mxu0 0.0
        %2074 = vmatpush1.xpose.msra.mxu0 0.0
        %2075 = vmatprep.subr.mxu0 0.0
        %2076 = vmatpush1.xpose.msra.mxu0 0.0
        %2077 = vmatprep.subr.mxu0 0.0
        %2078 = vmatpush1.xpose.msra.mxu0 0.0
        %2079 = vmatprep.subr.mxu0 0.0
        %2080 = vmatpush1.xpose.msra.mxu0 0.0
        %2081 = vmatprep.subr.mxu0 0.0
        %2082 = vmatpush1.xpose.msra.mxu0 0.0
        %2083 = vmatprep.subr.mxu0 0.0
        %2084 = vmatpush1.xpose.msra.mxu0 0.0
        %2085 = vmatprep.subr.mxu0 0.0
        %2086 = vmatpush1.xpose.msra.mxu0 0.0
        %2087 = vmatprep.subr.mxu0 0.0
        %2088 = vmatpush1.xpose.msra.mxu0 0.0
        %2089 = vmatprep.subr.mxu0 0.0
        %2090 = vmatpush1.xpose.msra.mxu0 0.0
        %2091 = vmatprep.subr.mxu0 0.0
        %2092 = vmatpush1.xpose.msra.mxu0 0.0
        %2093 = vmatprep.subr.mxu0 0.0
        %2094 = vmatpush1.xpose.msra.mxu0 0.0
        %2095 = vmatprep.subr.mxu0 0.0
        %2096 = vmatpush1.xpose.msra.mxu0 0.0
        %2097 = vmatprep.subr.mxu0 0.0
        %2098 = vmatpush1.xpose.msra.mxu0 0.0
        %2099 = vmatprep.subr.mxu0 0.0
        %2100 = vmatpush1.xpose.msra.mxu0 0.0
        %2101 = vmatprep.subr.mxu0 0.0
        %2102 = vmatpush1.xpose.msra.mxu0 0.0
        %2103 = vmatprep.subr.mxu0 0.0
        %2104 = vmatpush1.xpose.msra.mxu0 0.0
        %2105 = vmatprep.subr.mxu0 0.0
        %2106 = vmatpush1.xpose.msra.mxu0 0.0
        %2107 = vmatprep.subr.mxu0 0.0
        %2108 = vmatpush1.xpose.msra.mxu0 0.0
        %2109 = vmatprep.subr.mxu0 0.0
        %2110 = vmatpush1.xpose.msra.mxu0 0.0
        %2111 = vmatprep.subr.mxu0 0.0
        %2112 = vmatpush1.xpose.msra.mxu0 0.0
        %2113 = vmatprep.subr.mxu0 0.0
        %2114 = vmatpush1.xpose.msra.mxu0 0.0
        %2115 = vmatprep.subr.mxu0 0.0
        %2116 = vmatpush1.xpose.msra.mxu0 0.0
        %2117 = vmatprep.subr.mxu0 0.0
        %2118 = vmatpush1.xpose.msra.mxu0 0.0
        %2119 = vmatprep.subr.mxu0 0.0
        %2120 = vmatpush1.xpose.msra.mxu0 0.0
        %2121 = vmatprep.subr.mxu0 0.0
        %2122 = vmatpush1.xpose.msra.mxu0 0.0
        %2123 = vmatprep.subr.mxu0 0.0
        %2124 = vmatpush1.xpose.msra.mxu0 0.0
        %2125 = vmatprep.subr.mxu0 0.0
        %2126 = vmatpush1.xpose.msra.mxu0 0.0
        %2127 = vmatprep.subr.mxu0 0.0
        %2128 = vmatpush1.xpose.msra.mxu0 0.0
        %2129 = vmatprep.subr.mxu0 0.0
        %2130 = vmatpush1.xpose.msra.mxu0 0.0
        %2131 = vmatprep.subr.mxu0 0.0
        %2132 = vmatpush1.xpose.msra.mxu0 0.0
        %2133 = vmatprep.subr.mxu0 0.0
        %2134 = vmatpush1.xpose.msra.mxu0 0.0
        %2135 = vmatprep.mubr.f32.mxu0 0.0
        %2136 = vmatmul.mubr.f32.gmra.mrb[0].mxu0 %v447
        %v2137 = vpop.f32.mrb[0].mxu0
        %v2138 = vadd.f32 %v2066, %v2137
        %v2139 = vpop.f32.mrb[0].mxu0
        %2140 = vdwg.mxu0
        %v2142 = vsel %vm688, %v1972, 0
        %v2145 = vsel %vm688, %v2055, 0
        %2147 = vmatprep.subr.mxu0 0.0
        %2148 = vmatpush1.xpose.msra.mxu0 %v2145
        %2149 = vmatprep.subr.mxu0 0.0
        %2150 = vmatpush1.xpose.msra.mxu0 0.0
        %2151 = vmatprep.subr.mxu0 0.0
        %2152 = vmatpush1.xpose.msra.mxu0 0.0
        %2153 = vmatprep.subr.mxu0 0.0
        %2154 = vmatpush1.xpose.msra.mxu0 0.0
        %2155 = vmatprep.subr.mxu0 0.0
        %2156 = vmatpush1.xpose.msra.mxu0 0.0
        %2157 = vmatprep.subr.mxu0 0.0
        %2158 = vmatpush1.xpose.msra.mxu0 0.0
        %2159 = vmatprep.subr.mxu0 0.0
        %2160 = vmatpush1.xpose.msra.mxu0 0.0
        %2161 = vmatprep.subr.mxu0 0.0
        %2162 = vmatpush1.xpose.msra.mxu0 0.0
        %2163 = vmatprep.subr.mxu0 0.0
        %2164 = vmatpush1.xpose.msra.mxu0 0.0
        %2165 = vmatprep.subr.mxu0 0.0
        %2166 = vmatpush1.xpose.msra.mxu0 0.0
        %2167 = vmatprep.subr.mxu0 0.0
        %2168 = vmatpush1.xpose.msra.mxu0 0.0
        %2169 = vmatprep.subr.mxu0 0.0
        %2170 = vmatpush1.xpose.msra.mxu0 0.0
        %2171 = vmatprep.subr.mxu0 0.0
        %2172 = vmatpush1.xpose.msra.mxu0 0.0
        %2173 = vmatprep.subr.mxu0 0.0
        %2174 = vmatpush1.xpose.msra.mxu0 0.0
        %2175 = vmatprep.subr.mxu0 0.0
        %2176 = vmatpush1.xpose.msra.mxu0 0.0
        %2177 = vmatprep.subr.mxu0 0.0
        %2178 = vmatpush1.xpose.msra.mxu0 0.0
        %2179 = vmatprep.subr.mxu0 0.0
        %2180 = vmatpush1.xpose.msra.mxu0 0.0
        %2181 = vmatprep.subr.mxu0 0.0
        %2182 = vmatpush1.xpose.msra.mxu0 0.0
        %2183 = vmatprep.subr.mxu0 0.0
        %2184 = vmatpush1.xpose.msra.mxu0 0.0
        %2185 = vmatprep.subr.mxu0 0.0
        %2186 = vmatpush1.xpose.msra.mxu0 0.0
        %2187 = vmatprep.subr.mxu0 0.0
        %2188 = vmatpush1.xpose.msra.mxu0 0.0
        %2189 = vmatprep.subr.mxu0 0.0
        %2190 = vmatpush1.xpose.msra.mxu0 0.0
        %2191 = vmatprep.subr.mxu0 0.0
        %2192 = vmatpush1.xpose.msra.mxu0 0.0
        %2193 = vmatprep.subr.mxu0 0.0
        %2194 = vmatpush1.xpose.msra.mxu0 0.0
        %2195 = vmatprep.subr.mxu0 0.0
        %2196 = vmatpush1.xpose.msra.mxu0 0.0
        %2197 = vmatprep.subr.mxu0 0.0
        %2198 = vmatpush1.xpose.msra.mxu0 0.0
        %2199 = vmatprep.subr.mxu0 0.0
        %2200 = vmatpush1.xpose.msra.mxu0 0.0
        %2201 = vmatprep.subr.mxu0 0.0
        %2202 = vmatpush1.xpose.msra.mxu0 0.0
        %2203 = vmatprep.subr.mxu0 0.0
        %2204 = vmatpush1.xpose.msra.mxu0 0.0
        %2205 = vmatprep.subr.mxu0 0.0
        %2206 = vmatpush1.xpose.msra.mxu0 0.0
        %2207 = vmatprep.subr.mxu0 0.0
        %2208 = vmatpush1.xpose.msra.mxu0 0.0
        %2209 = vmatprep.subr.mxu0 0.0
        %2210 = vmatpush1.xpose.msra.mxu0 0.0
        %2211 = vmatprep.mubr.f32.mxu0 0.0
        %2212 = vmatmul.mubr.f32.gmra.mrb[0].mxu0 %v2142
        %v2213 = vpop.f32.mrb[0].mxu0
        %v2214 = vadd.f32 0.0, %v2213
        %v2215 = vpop.f32.mrb[0].mxu0
        %2216 = vdwg.mxu0
        %v2217 = vsel %vm688, %v2214, -inf
        %2218 = vmax.xlane.f32.xlu0 %v2217
        %v2219 = vpop.xlane.xlu0 %2218
        %v2220 = vsub.f32 %v2214, %v2219
        %v2221 = vmul.f32 %v2220, 1.442695
        %v2222 = vpow.pop %v2221
        %v2223 = vsel %vm688, %v2222, 0.0
        %2224 = vadd.xlane.f32.xlu0 %v2223
        %v2225 = vpop.xlane.xlu0 %2224
        %v2226 = vrcp.pop %v2225
        %v2227 = vmul.f32 %v2222, %v2226
        %v2229 = vsel %vm688, %v2227, 0
        %2231 = vmatprep.subr.mxu0 0.0
        %2232 = vmatpush1.msra.mxu0 %v2138
        %2233 = vmatprep.subr.mxu0 0.0
        %2234 = vmatpush1.msra.mxu0 0.0
        %2235 = vmatprep.subr.mxu0 0.0
        %2236 = vmatpush1.msra.mxu0 0.0
        %2237 = vmatprep.subr.mxu0 0.0
        %2238 = vmatpush1.msra.mxu0 0.0
        %2239 = vmatprep.subr.mxu0 0.0
        %2240 = vmatpush1.msra.mxu0 0.0
        %2241 = vmatprep.subr.mxu0 0.0
        %2242 = vmatpush1.msra.mxu0 0.0
        %2243 = vmatprep.subr.mxu0 0.0
        %2244 = vmatpush1.msra.mxu0 0.0
        %2245 = vmatprep.subr.mxu0 0.0
        %2246 = vmatpush1.msra.mxu0 0.0
        %2247 = vmatprep.subr.mxu0 0.0
        %2248 = vmatpush1.msra.mxu0 0.0
        %2249 = vmatprep.subr.mxu0 0.0
        %2250 = vmatpush1.msra.mxu0 0.0
        %2251 = vmatprep.subr.mxu0 0.0
        %2252 = vmatpush1.msra.mxu0 0.0
        %2253 = vmatprep.subr.mxu0 0.0
        %2254 = vmatpush1.msra.mxu0 0.0
        %2255 = vmatprep.subr.mxu0 0.0
        %2256 = vmatpush1.msra.mxu0 0.0
        %2257 = vmatprep.subr.mxu0 0.0
        %2258 = vmatpush1.msra.mxu0 0.0
        %2259 = vmatprep.subr.mxu0 0.0
        %2260 = vmatpush1.msra.mxu0 0.0
        %2261 = vmatprep.subr.mxu0 0.0
        %2262 = vmatpush1.msra.mxu0 0.0
        %2263 = vmatprep.subr.mxu0 0.0
        %2264 = vmatpush1.msra.mxu0 0.0
        %2265 = vmatprep.subr.mxu0 0.0
        %2266 = vmatpush1.msra.mxu0 0.0
        %2267 = vmatprep.subr.mxu0 0.0
        %2268 = vmatpush1.msra.mxu0 0.0
        %2269 = vmatprep.subr.mxu0 0.0
        %2270 = vmatpush1.msra.mxu0 0.0
        %2271 = vmatprep.subr.mxu0 0.0
        %2272 = vmatpush1.msra.mxu0 0.0
        %2273 = vmatprep.subr.mxu0 0.0
        %2274 = vmatpush1.msra.mxu0 0.0
        %2275 = vmatprep.subr.mxu0 0.0
        %2276 = vmatpush1.msra.mxu0 0.0
        %2277 = vmatprep.subr.mxu0 0.0
        %2278 = vmatpush1.msra.mxu0 0.0
        %2279 = vmatprep.subr.mxu0 0.0
        %2280 = vmatpush1.msra.mxu0 0.0
        %2281 = vmatprep.subr.mxu0 0.0
        %2282 = vmatpush1.msra.mxu0 0.0
        %2283 = vmatprep.subr.mxu0 0.0
        %2284 = vmatpush1.msra.mxu0 0.0
        %2285 = vmatprep.subr.mxu0 0.0
        %2286 = vmatpush1.msra.mxu0 0.0
        %2287 = vmatprep.subr.mxu0 0.0
        %2288 = vmatpush1.msra.mxu0 0.0
        %2289 = vmatprep.subr.mxu0 0.0
        %2290 = vmatpush1.msra.mxu0 0.0
        %2291 = vmatprep.subr.mxu0 0.0
        %2292 = vmatpush1.msra.mxu0 0.0
        %2293 = vmatprep.subr.mxu0 0.0
        %2294 = vmatpush1.msra.mxu0 0.0
        %2295 = vmatprep.mubr.f32.mxu0 0.0
        %2296 = vmatmul.mubr.f32.gmra.mrb[0].mxu0 %v2229
        %v2297 = vpop.f32.mrb[0].mxu0
        %v2298 = vadd.f32 0.0, %v2297
        %v2299 = vpop.f32.mrb[0].mxu0
        %2300 = vdwg.mxu0
        %s2301 = scalar_lea.vmem %s4, 24
        %v2302 = vld [vmem:[%s2301] sm:$0xff]
        %v2304 = vsel %vm688, %v2298, 0
        %2306 = vmatprep.subr.mxu0 0.0
        %2307 = vmatpush1.msra.mxu0 %v2302
        %2308 = vmatprep.subr.mxu0 0.0
        %2309 = vmatpush1.msra.mxu0 0.0
        %2310 = vmatprep.subr.mxu0 0.0
        %2311 = vmatpush1.msra.mxu0 0.0
        %2312 = vmatprep.subr.mxu0 0.0
        %2313 = vmatpush1.msra.mxu0 0.0
        %2314 = vmatprep.subr.mxu0 0.0
        %2315 = vmatpush1.msra.mxu0 0.0
        %2316 = vmatprep.subr.mxu0 0.0
        %2317 = vmatpush1.msra.mxu0 0.0
        %2318 = vmatprep.subr.mxu0 0.0
        %2319 = vmatpush1.msra.mxu0 0.0
        %2320 = vmatprep.subr.mxu0 0.0
        %2321 = vmatpush1.msra.mxu0 0.0
        %2322 = vmatprep.subr.mxu0 0.0
        %2323 = vmatpush1.msra.mxu0 0.0
        %2324 = vmatprep.subr.mxu0 0.0
        %2325 = vmatpush1.msra.mxu0 0.0
        %2326 = vmatprep.subr.mxu0 0.0
        %2327 = vmatpush1.msra.mxu0 0.0
        %2328 = vmatprep.subr.mxu0 0.0
        %2329 = vmatpush1.msra.mxu0 0.0
        %2330 = vmatprep.subr.mxu0 0.0
        %2331 = vmatpush1.msra.mxu0 0.0
        %2332 = vmatprep.subr.mxu0 0.0
        %2333 = vmatpush1.msra.mxu0 0.0
        %2334 = vmatprep.subr.mxu0 0.0
        %2335 = vmatpush1.msra.mxu0 0.0
        %2336 = vmatprep.subr.mxu0 0.0
        %2337 = vmatpush1.msra.mxu0 0.0
        %2338 = vmatprep.subr.mxu0 0.0
        %2339 = vmatpush1.msra.mxu0 0.0
        %2340 = vmatprep.subr.mxu0 0.0
        %2341 = vmatpush1.msra.mxu0 0.0
        %2342 = vmatprep.subr.mxu0 0.0
        %2343 = vmatpush1.msra.mxu0 0.0
        %2344 = vmatprep.subr.mxu0 0.0
        %2345 = vmatpush1.msra.mxu0 0.0
        %2346 = vmatprep.subr.mxu0 0.0
        %2347 = vmatpush1.msra.mxu0 0.0
        %2348 = vmatprep.subr.mxu0 0.0
        %2349 = vmatpush1.msra.mxu0 0.0
        %2350 = vmatprep.subr.mxu0 0.0
        %2351 = vmatpush1.msra.mxu0 0.0
        %2352 = vmatprep.subr.mxu0 0.0
        %2353 = vmatpush1.msra.mxu0 0.0
        %2354 = vmatprep.subr.mxu0 0.0
        %2355 = vmatpush1.msra.mxu0 0.0
        %2356 = vmatprep.subr.mxu0 0.0
        %2357 = vmatpush1.msra.mxu0 0.0
        %2358 = vmatprep.subr.mxu0 0.0
        %2359 = vmatpush1.msra.mxu0 0.0
        %2360 = vmatprep.subr.mxu0 0.0
        %2361 = vmatpush1.msra.mxu0 0.0
        %2362 = vmatprep.subr.mxu0 0.0
        %2363 = vmatpush1.msra.mxu0 0.0
        %2364 = vmatprep.subr.mxu0 0.0
        %2365 = vmatpush1.msra.mxu0 0.0
        %2366 = vmatprep.subr.mxu0 0.0
        %2367 = vmatpush1.msra.mxu0 0.0
        %2368 = vmatprep.subr.mxu0 0.0
        %2369 = vmatpush1.msra.mxu0 0.0
        %2370 = vmatprep.mubr.f32.mxu0 0.0
        %2371 = vmatmul.mubr.f32.gmra.mrb[0].mxu0 %v2304
        %v2372 = vpop.f32.mrb[0].mxu0
        %v2373 = vadd.f32 0.0, %v2372
        %v2374 = vpop.f32.mrb[0].mxu0
        %2375 = vdwg.mxu0
        %v2376 = vadd.f32 %v1891, %v2373
        %v2377 = vadd.f32 %v436, %v2376
        %v2379 = vlaneseq
        %v2380 = vshrl.u32 %v2379, 7
        %v2381 = vsub.s32 0, %v2380
        %v2382 = vrot.slane %v428, %v2381
        %v2384 = vadd.f32 %v2377, %v2382
        %v2385 = vsel %vm445, %v2384, 0.0
        %2386 = vadd.xlane.f32.xlu0 %v2385
        %v2387 = vpop.xlane.xlu0 %2386
        %v2388 = vrcp.pop 32.0
        %v2389 = vmul.f32 %v2387, %v2388
        %v2390 = vsub.f32 %v2384, %v2389
        %v2391 = vmul.f32 %v2390, %v2390
        %v2392 = vsel %vm445, %v2391, 0.0
        %2393 = vadd.xlane.f32.xlu0 %v2392
        %v2394 = vpop.xlane.xlu0 %2393
        %v2395 = vmul.f32 %v2394, %v2388
        %v2396 = vadd.f32 %v2395, 1e-05
        %v2397 = vrsqrt.pop %v2396
        %v2398 = vmul.f32 %v2390, %v2397
        %v2400 = vlaneseq
        %v2401 = vshrl.u32 %v2400, 7
        %v2402 = vsub.s32 0, %v2401
        %v2403 = vrot.slane %v429, %v2402
        %v2405 = vmul.f32 %v2398, %v2403
        %v2407 = vlaneseq
        %v2408 = vshrl.u32 %v2407, 7
        %v2409 = vsub.s32 0, %v2408
        %v2410 = vrot.slane %v430, %v2409
        %v2412 = vadd.f32 %v2405, %v2410
        %v2413 = vld [vmem:[#allocation8] sm:$0xff]
        %v2414 = vld [vmem:[#allocation8 + $0x8] sm:$0xff]
        %v2415 = vld [vmem:[#allocation8 + $0x10] sm:$0xff]
        %v2416 = vld [vmem:[#allocation8 + $0x18] sm:$0xff]
        %v2417 = vld [vmem:[%s6] sm:$0x1]
        %v2419 = vlaneseq
        %v2420 = vshrl.u32 %v2419, 7
        %v2421 = vsub.s32 0, %v2420
        %v2422 = vrot.slane %v2417, %v2421
        %v2425 = vsel %vm445, %v2412, 0
        %2427 = vmatprep.subr.mxu0 0.0
        %2428 = vmatpush1.msra.mxu0 %v2413
        %2429 = vmatprep.subr.mxu0 0.0
        %2430 = vmatpush1.msra.mxu0 %v2414
        %2431 = vmatprep.subr.mxu0 0.0
        %2432 = vmatpush1.msra.mxu0 %v2415
        %2433 = vmatprep.subr.mxu0 0.0
        %2434 = vmatpush1.msra.mxu0 %v2416
        %2435 = vmatprep.subr.mxu0 0.0
        %2436 = vmatpush1.msra.mxu0 0.0
        %2437 = vmatprep.subr.mxu0 0.0
        %2438 = vmatpush1.msra.mxu0 0.0
        %2439 = vmatprep.subr.mxu0 0.0
        %2440 = vmatpush1.msra.mxu0 0.0
        %2441 = vmatprep.subr.mxu0 0.0
        %2442 = vmatpush1.msra.mxu0 0.0
        %2443 = vmatprep.subr.mxu0 0.0
        %2444 = vmatpush1.msra.mxu0 0.0
        %2445 = vmatprep.subr.mxu0 0.0
        %2446 = vmatpush1.msra.mxu0 0.0
        %2447 = vmatprep.subr.mxu0 0.0
        %2448 = vmatpush1.msra.mxu0 0.0
        %2449 = vmatprep.subr.mxu0 0.0
        %2450 = vmatpush1.msra.mxu0 0.0
        %2451 = vmatprep.subr.mxu0 0.0
        %2452 = vmatpush1.msra.mxu0 0.0
        %2453 = vmatprep.subr.mxu0 0.0
        %2454 = vmatpush1.msra.mxu0 0.0
        %2455 = vmatprep.subr.mxu0 0.0
        %2456 = vmatpush1.msra.mxu0 0.0
        %2457 = vmatprep.subr.mxu0 0.0
        %2458 = vmatpush1.msra.mxu0 0.0
        %2459 = vmatprep.subr.mxu0 0.0
        %2460 = vmatpush1.msra.mxu0 0.0
        %2461 = vmatprep.subr.mxu0 0.0
        %2462 = vmatpush1.msra.mxu0 0.0
        %2463 = vmatprep.subr.mxu0 0.0
        %2464 = vmatpush1.msra.mxu0 0.0
        %2465 = vmatprep.subr.mxu0 0.0
        %2466 = vmatpush1.msra.mxu0 0.0
        %2467 = vmatprep.subr.mxu0 0.0
        %2468 = vmatpush1.msra.mxu0 0.0
        %2469 = vmatprep.subr.mxu0 0.0
        %2470 = vmatpush1.msra.mxu0 0.0
        %2471 = vmatprep.subr.mxu0 0.0
        %2472 = vmatpush1.msra.mxu0 0.0
        %2473 = vmatprep.subr.mxu0 0.0
        %2474 = vmatpush1.msra.mxu0 0.0
        %2475 = vmatprep.subr.mxu0 0.0
        %2476 = vmatpush1.msra.mxu0 0.0
        %2477 = vmatprep.subr.mxu0 0.0
        %2478 = vmatpush1.msra.mxu0 0.0
        %2479 = vmatprep.subr.mxu0 0.0
        %2480 = vmatpush1.msra.mxu0 0.0
        %2481 = vmatprep.subr.mxu0 0.0
        %2482 = vmatpush1.msra.mxu0 0.0
        %2483 = vmatprep.subr.mxu0 0.0
        %2484 = vmatpush1.msra.mxu0 0.0
        %2485 = vmatprep.subr.mxu0 0.0
        %2486 = vmatpush1.msra.mxu0 0.0
        %2487 = vmatprep.subr.mxu0 0.0
        %2488 = vmatpush1.msra.mxu0 0.0
        %2489 = vmatprep.subr.mxu0 0.0
        %2490 = vmatpush1.msra.mxu0 0.0
        %2491 = vmatprep.mubr.f32.mxu0 0.0
        %2492 = vmatmul.mubr.f32.gmra.mrb[0].mxu0 %v2425
        %v2493 = vpop.f32.mrb[0].mxu0
        %v2494 = vadd.f32 %v2422, %v2493
        %v2495 = vpop.f32.mrb[0].mxu0
        %2496 = vdwg.mxu0
        %v2497 = vmax.f32 %v2494, 0.0
        %v2498 = vld [vmem:[%s7] sm:$0xff]
        %v2499 = vld [vmem:[%s7 + $0x8] sm:$0xff]
        %v2500 = vld [vmem:[%s7 + $0x10] sm:$0xff]
        %v2501 = vld [vmem:[%s7 + $0x18] sm:$0xff]
        %v2502 = vld [vmem:[%s7 + $0x20] sm:$0xff]
        %v2503 = vld [vmem:[%s7 + $0x28] sm:$0xff]
        %v2504 = vld [vmem:[%s7 + $0x30] sm:$0xff]
        %v2505 = vld [vmem:[%s7 + $0x38] sm:$0xff]
        %vm2506 = vcmask 523264
        %v2508 = vsel %vm2506, %v2497, 0
        %2510 = vmatprep.subr.mxu0 0.0
        %2511 = vmatpush1.msra.mxu0 %v2498
        %2512 = vmatprep.subr.mxu0 0.0
        %2513 = vmatpush1.msra.mxu0 %v2499
        %2514 = vmatprep.subr.mxu0 0.0
        %2515 = vmatpush1.msra.mxu0 %v2500
        %2516 = vmatprep.subr.mxu0 0.0
        %2517 = vmatpush1.msra.mxu0 %v2501
        %2518 = vmatprep.subr.mxu0 0.0
        %2519 = vmatpush1.msra.mxu0 %v2502
        %2520 = vmatprep.subr.mxu0 0.0
        %2521 = vmatpush1.msra.mxu0 %v2503
        %2522 = vmatprep.subr.mxu0 0.0
        %2523 = vmatpush1.msra.mxu0 %v2504
        %2524 = vmatprep.subr.mxu0 0.0
        %2525 = vmatpush1.msra.mxu0 %v2505
        %2526 = vmatprep.subr.mxu0 0.0
        %2527 = vmatpush1.msra.mxu0 0.0
        %2528 = vmatprep.subr.mxu0 0.0
        %2529 = vmatpush1.msra.mxu0 0.0
        %2530 = vmatprep.subr.mxu0 0.0
        %2531 = vmatpush1.msra.mxu0 0.0
        %2532 = vmatprep.subr.mxu0 0.0
        %2533 = vmatpush1.msra.mxu0 0.0
        %2534 = vmatprep.subr.mxu0 0.0
        %2535 = vmatpush1.msra.mxu0 0.0
        %2536 = vmatprep.subr.mxu0 0.0
        %2537 = vmatpush1.msra.mxu0 0.0
        %2538 = vmatprep.subr.mxu0 0.0
        %2539 = vmatpush1.msra.mxu0 0.0
        %2540 = vmatprep.subr.mxu0 0.0
        %2541 = vmatpush1.msra.mxu0 0.0
        %2542 = vmatprep.subr.mxu0 0.0
        %2543 = vmatpush1.msra.mxu0 0.0
        %2544 = vmatprep.subr.mxu0 0.0
        %2545 = vmatpush1.msra.mxu0 0.0
        %2546 = vmatprep.subr.mxu0 0.0
        %2547 = vmatpush1.msra.mxu0 0.0
        %2548 = vmatprep.subr.mxu0 0.0
        %2549 = vmatpush1.msra.mxu0 0.0
        %2550 = vmatprep.subr.mxu0 0.0
        %2551 = vmatpush1.msra.mxu0 0.0
        %2552 = vmatprep.subr.mxu0 0.0
        %2553 = vmatpush1.msra.mxu0 0.0
        %2554 = vmatprep.subr.mxu0 0.0
        %2555 = vmatpush1.msra.mxu0 0.0
        %2556 = vmatprep.subr.mxu0 0.0
        %2557 = vmatpush1.msra.mxu0 0.0
        %2558 = vmatprep.subr.mxu0 0.0
        %2559 = vmatpush1.msra.mxu0 0.0
        %2560 = vmatprep.subr.mxu0 0.0
        %2561 = vmatpush1.msra.mxu0 0.0
        %2562 = vmatprep.subr.mxu0 0.0
        %2563 = vmatpush1.msra.mxu0 0.0
        %2564 = vmatprep.subr.mxu0 0.0
        %2565 = vmatpush1.msra.mxu0 0.0
        %2566 = vmatprep.subr.mxu0 0.0
        %2567 = vmatpush1.msra.mxu0 0.0
        %2568 = vmatprep.subr.mxu0 0.0
        %2569 = vmatpush1.msra.mxu0 0.0
        %2570 = vmatprep.subr.mxu0 0.0
        %2571 = vmatpush1.msra.mxu0 0.0
        %2572 = vmatprep.subr.mxu0 0.0
        %2573 = vmatpush1.msra.mxu0 0.0
        %2574 = vmatprep.mubr.f32.mxu0 0.0
        %2575 = vmatmul.mubr.f32.gmra.mrb[0].mxu0 %v2508
        %v2576 = vpop.f32.mrb[0].mxu0
        %v2577 = vadd.f32 0.0, %v2576
        %v2578 = vpop.f32.mrb[0].mxu0
        %2579 = vdwg.mxu0
        %v2580 = vadd.f32 %v2412, %v2577
        %v2582 = vlaneseq
        %v2583 = vshrl.u32 %v2582, 7
        %v2584 = vsub.s32 0, %v2583
        %v2585 = vrot.slane %v431, %v2584
        %v2587 = vadd.f32 %v2580, %v2585
        %v2588 = vsel %vm445, %v2587, 0.0
        %2589 = vadd.xlane.f32.xlu0 %v2588
        %v2590 = vpop.xlane.xlu0 %2589
        %v2591 = vmul.f32 %v2590, %v2388
        %v2592 = vsub.f32 %v2587, %v2591
        %v2593 = vmul.f32 %v2592, %v2592
        %v2594 = vsel %vm445, %v2593, 0.0
        %2595 = vadd.xlane.f32.xlu0 %v2594
        %v2596 = vpop.xlane.xlu0 %2595
        %v2597 = vmul.f32 %v2596, %v2388
        %v2598 = vadd.f32 %v2597, 1e-05
        %v2599 = vrsqrt.pop %v2598
        %v2600 = vmul.f32 %v2592, %v2599
        %v2602 = vlaneseq
        %v2603 = vshrl.u32 %v2602, 7
        %v2604 = vsub.s32 0, %v2603
        %v2605 = vrot.slane %v432, %v2604
        %v2607 = vmul.f32 %v2600, %v2605
        %v2609 = vlaneseq
        %v2610 = vshrl.u32 %v2609, 7
        %v2611 = vsub.s32 0, %v2610
        %v2612 = vrot.slane %v433, %v2611
        %v2614 = vadd.f32 %v2607, %v2612
        %2615 = vst.msk [vmem:[%s427] sm:$0xff] %vm445, %v2614
        %s2616 = sand.u32 %s237, 1
        %s2617 = scalar_lea.sflag [#allocation4], %s2616
        %s2618 = sand.u32 %s237, 1
        %s2619 = smul.addr %s2618, 8
        %s2620 = scalar_lea.vmem [#allocation11], %s2619
        // Predicated region
        $region77: #{encoder_layer.1} parent=55 // pred_check
          %p2621 = pneg %p247
        $region78: #{encoder_layer.1} parent=55 // pred_check_branch
          %2623 = sbr.rel (%p2621) target = $region80
        $region79: #{encoder_layer.1} parent=55 // pred_region
          %s2625 = ssub.s32 128, 128
          %2626 = vsyncadd %s2617, %s2625
          %s2627 = smul.addr %s30, 128
          %s2628 = scalar_lea.hbm %s9, %s2627
          %s2630 = sshll.u32 %s2620, 4
          %s2631 = int_to_ptr.vmem [resolvable:$true] %s2630
          %2633 = dma.vmem_to_hbm [thread:$0]  %s2631, 128, %s2628, %s2617
        $region80: #{encoder_layer.1} parent=55 // pred_fallthru
          _
      $region56: #{encoder_layer.1} parent=5 // pred_fallthru
        _
      %p2634 = scmp.le.s32.totalorder 2, %s25
      // Predicated region
      $region81: #{encoder_layer.1} parent=5 // pred_check
        %p2635 = pneg %p2634
      $region82: #{encoder_layer.1} parent=5 // pred_check_branch
        %2637 = sbr.rel (%p2635) target = $region84
      $region83: #{encoder_layer.1} parent=5 // pred_region
        %s2638 = ssub.s32 %s25, 2
        // Predicated region
        $region85: #{encoder_layer.1} parent=83 // pred_check
          %p2639 = pneg %p253
        $region86: #{encoder_layer.1} parent=83 // pred_check_branch
          %2641 = sbr.rel (%p2639) target = $region88
        $region87: #{encoder_layer.1} parent=83 // pred_region
          %s2642 = sand.u32 %s238, 1
          %s2643 = scalar_lea.sflag [#allocation4], %s2642
          %s2644 = sand.u32 %s238, 1
          %s2645 = smul.addr %s2644, 8
          %s2646 = scalar_lea.vmem [#allocation11], %s2645
          %2647 = dma.done %s2643, 128
        $region88: #{encoder_layer.1} parent=83 // pred_fallthru
          _
      $region84: #{encoder_layer.1} parent=5 // pred_fallthru
        _
    $region6: #{encoder_layer.1} parent=1 // loop_footer
      %s29 = sadd.s32 1, %s25
    $region7: #{encoder_layer.1} parent=1 // loop_footer_branch
      %24 = sbr.rel target = $region3
    $region8: #{encoder_layer.1} parent=1 // loop_exit
      _
    %2648 = vsyncpa [#allocation3], 1
    %s2649 = scalar_lea.sflag [#allocation3], 1
    %2650 = vsyncpa %s2649, 1
    %2651 = vsyncpa [#allocation6], 1
    %s2652 = scalar_lea.sflag [#allocation6], 1
    %2653 = vsyncpa %s2652, 1
    %2654 = vsyncpa [#allocation9], 1
    %2655 = vsyncpa [#allocation4], 1
    %s2656 = scalar_lea.sflag [#allocation4], 1
    %2657 = vsyncpa %s2656, 1

</llo_original>
